<compile_context>
chip_gen: v7x
topology: tpu7x:2x2x1
jax: 0.10.0
libtpu: 0.0.40
codegen_flags: <defaults>
</compile_context>

<pallas_src>
import math

import numpy as np
import jax
import jax.numpy as jnp
from jax import lax
from jax.experimental import pallas as pl
from jax.experimental.pallas import tpu as pltpu


# -----------------------------------------------------------------------------
# Fused kernel: LayerNorm -> GRU -> time_fc  +  freq 1x1 conv -> axial attention
#               -> out 1x1 conv -> residual.  One program per batch element.
# -----------------------------------------------------------------------------
def make_fused_asa_kernel(inv_cf, alpha1, alpha2, eps=1e-5):
    def kernel(x_ref, mask_ref,
               ln_g_ref, ln_b_ref,
               wih_ref, bih_ref, whh_ref, bhh_ref, wfc_ref, bfc_ref,
               w1_ref, s1_ref, b1_ref, w2_ref, s2_ref, b2_ref,
               o_ref,
               xproj_ref, h_all_ref):
        _, T, K, N = x_ref.shape
        H = whh_ref.shape[0]          # GRU hidden (= 2N)
        Nh = wfc_ref.shape[1]         # N // 2

        x = x_ref[0]                  # (T, K, N) f32

        # ---------------- time branch: LayerNorm -> GRU -> Linear ----------------
        mean = jnp.mean(x, axis=-1, keepdims=True)
        var = jnp.mean((x - mean) ** 2, axis=-1, keepdims=True)
        xn = (x - mean) * lax.rsqrt(var + eps)
        xn = xn * ln_g_ref[...] + ln_b_ref[...]                     # (T, K, N)

        # Input projection for all (t, k) at once: (T*K, N) @ (N, 3H), bf16 on MXU.
        gx_all = jnp.dot(xn.reshape(T * K, N).astype(jnp.bfloat16), wih_ref[...],
                         preferred_element_type=jnp.float32)
        gx_all = gx_all + bih_ref[...]                              # (T*K, 3H)
        xproj_ref[...] = gx_all.reshape(T, K, 3 * H)                # stage in VMEM

        whh = whh_ref[...]            # (H, 3H) f32 (recurrent matmul kept f32)
        bhh = bhh_ref[...]            # (1, 3H)

        def gru_step(t, h):
            gx = xproj_ref[t]                                       # (K, 3H), leading-axis load
            gh = jnp.dot(h, whh, preferred_element_type=jnp.float32) + bhh
            # PyTorch GRU gate order: r, z, n ; b_hn stays inside r * (.)
            r = jax.nn.sigmoid(gx[:, 0:H] + gh[:, 0:H])
            z = jax.nn.sigmoid(gx[:, H:2 * H] + gh[:, H:2 * H])
            n = jnp.tanh(gx[:, 2 * H:3 * H] + r * gh[:, 2 * H:3 * H])
            h_new = (1.0 - z) * n + z * h
            h_all_ref[t] = h_new
            return h_new

        h0 = jnp.zeros((K, H), jnp.float32)                         # h_0 = 0 (PyTorch default)
        _ = lax.fori_loop(0, T, gru_step, h0, unroll=True)

        # time_fc for all steps at once: (T*K, H) @ (H, Nh).
        out_t = jnp.dot(h_all_ref[...].reshape(T * K, H).astype(jnp.bfloat16),
                        wfc_ref[...], preferred_element_type=jnp.float32)
        out_t = (out_t + bfc_ref[...]).reshape(T, K, Nh)

        # -------- frequency branch: 1x1 conv (no bias) + folded BN + PReLU -------
        xf = jnp.dot(x.reshape(T * K, N).astype(jnp.bfloat16), w1_ref[...],
                     preferred_element_type=jnp.float32)
        xf = xf * s1_ref[...] + b1_ref[...]
        xf = jnp.where(xf >= 0.0, xf, alpha1 * xf)
        xf = xf.reshape(T, K, Nh)

        # ---------------- axial attention over sub-bands (per time step) ---------
        xf16 = xf.astype(jnp.bfloat16)
        logits = jnp.einsum('tkc,tjc->tkj', xf16, xf16,
                            preferred_element_type=jnp.float32) * inv_cf
        logits = logits + mask_ref[...]                             # (T, K, K)
        m = jnp.max(logits, axis=-1, keepdims=True)
        e = jnp.exp(logits - m)
        attn = e * pl.reciprocal(jnp.sum(e, axis=-1, keepdims=True), approx=True)

        out_f = jnp.einsum('tkj,tjc->tkc', attn.astype(jnp.bfloat16),
                           out_t.astype(jnp.bfloat16),
                           preferred_element_type=jnp.float32)      # (T, K, Nh)

        # -------- out_conv: 1x1 conv (no bias) + folded BN + PReLU + residual -----
        y = jnp.dot(out_f.reshape(T * K, Nh).astype(jnp.bfloat16), w2_ref[...],
                    preferred_element_type=jnp.float32)
        y = y * s2_ref[...] + b2_ref[...]
        y = jnp.where(y >= 0.0, y, alpha2 * y)
        o_ref[0] = x + y.reshape(T, K, N)

    return kernel


def fused_asa_pallas(x_btkn, mask, kp, inv_cf, alpha1=0.25, alpha2=0.25):
    B, T, K, N = x_btkn.shape
    H = kp['whh_t'].shape[0]

    def rep(arr):
        nd = arr.ndim
        return pl.BlockSpec(arr.shape, lambda b, _nd=nd: (0,) * _nd)

    kernel = make_fused_asa_kernel(inv_cf, alpha1, alpha2)
    return pl.pallas_call(
        kernel,
        out_shape=jax.ShapeDtypeStruct((B, T, K, N), jnp.float32),
        grid=(B,),
        in_specs=[
            pl.BlockSpec((1, T, K, N), lambda b: (b, 0, 0, 0)),     # x
            rep(mask),
            rep(kp['ln_g']), rep(kp['ln_b']),
            rep(kp['wih_t']), rep(kp['bih']),
            rep(kp['whh_t']), rep(kp['bhh']),
            rep(kp['wfc_t']), rep(kp['bfc']),
            rep(kp['w1_t']), rep(kp['s1']), rep(kp['b1']),
            rep(kp['w2_t']), rep(kp['s2']), rep(kp['b2']),
        ],
        out_specs=pl.BlockSpec((1, T, K, N), lambda b: (b, 0, 0, 0)),
        scratch_shapes=[
            pltpu.VMEM((T, K, 3 * H), jnp.float32),                 # staged input projection
            pltpu.VMEM((T, K, H), jnp.float32),                     # all GRU hidden states
        ],
        compiler_params=pltpu.CompilerParams(
            dimension_semantics=("parallel",)),                     # v7x: B split across TCs
    )(x_btkn, mask, kp['ln_g'], kp['ln_b'],
      kp['wih_t'], kp['bih'], kp['whh_t'], kp['bhh'], kp['wfc_t'], kp['bfc'],
      kp['w1_t'], kp['s1'], kp['b1'], kp['w2_t'], kp['s2'], kp['b2'])


# -----------------------------------------------------------------------------
# Full forward (glue JAX only for the NCHW <-> NHWC permutes at the interface).
# -----------------------------------------------------------------------------
def prepare_kernel_params(p):
    bf = jnp.bfloat16
    return dict(
        ln_g=p['ln_g'], ln_b=p['ln_b'],
        wih_t=p['wih'].T.astype(bf), bih=p['bih'],
        whh_t=p['whh'].T.astype(jnp.float32), bhh=p['bhh'],
        wfc_t=p['wfc'].T.astype(bf), bfc=p['bfc'],
        w1_t=p['w1'].T.astype(bf), s1=p['s1'], b1=p['b1'],
        w2_t=p['w2'].T.astype(bf), s2=p['s2'], b2=p['b2'],
    )


def axial_self_attention_forward(x, p, mask, cf):
    kp = prepare_kernel_params(p)
    x_btkn = jnp.transpose(x, (0, 2, 3, 1)).astype(jnp.float32)     # (B, T, K, N)
    out = fused_asa_pallas(x_btkn, mask, kp, 1.0 / float(cf))
    return jnp.transpose(out, (0, 3, 1, 2))                         # (B, N, T, K)


# -----------------------------------------------------------------------------
# Pure-JAX f32 reference (mirrors the PyTorch forward) for a numerical check.
# -----------------------------------------------------------------------------
def reference(x, p, mask, cf):
    B, N, T, K = x.shape
    Nh, H = N // 2, 2 * N
    xt = jnp.transpose(x, (0, 3, 2, 1)).reshape(B * K, T, N)
    mean = xt.mean(-1, keepdims=True)
    var = ((xt - mean) ** 2).mean(-1, keepdims=True)
    xn = (xt - mean) / jnp.sqrt(var + 1e-5) * p['ln_g'] + p['ln_b']

    def gru_step(h, xcur):
        gx = xcur @ p['wih'].T + p['bih']
        gh = h @ p['whh'].T + p['bhh']
        r = jax.nn.sigmoid(gx[:, :H] + gh[:, :H])
        z = jax.nn.sigmoid(gx[:, H:2 * H] + gh[:, H:2 * H])
        n = jnp.tanh(gx[:, 2 * H:] + r * gh[:, 2 * H:])
        hn = (1.0 - z) * n + z * h
        return hn, hn

    h0 = jnp.zeros((B * K, H), jnp.float32)
    _, hs = lax.scan(gru_step, h0, jnp.transpose(xn, (1, 0, 2)))
    hs = jnp.transpose(hs, (1, 0, 2))                               # (B*K, T, H)
    out_t = hs @ p['wfc'].T + p['bfc']
    out_t = out_t.reshape(B, K, T, Nh).transpose(0, 2, 1, 3)        # (B, T, K, N/2)

    xl = jnp.transpose(x, (0, 2, 3, 1))                             # (B, T, K, N)
    xf = (xl @ p['w1'].T) * p['s1'] + p['b1']
    xf = jnp.where(xf >= 0, xf, 0.25 * xf)
    attn = jnp.einsum('btkc,btjc->btkj', xf, xf) / cf + mask
    attn = jax.nn.softmax(attn, axis=-1)
    of = jnp.einsum('btkj,btjc->btkc', attn, out_t)
    y = (of @ p['w2'].T) * p['s2'] + p['b2']
    y = jnp.where(y >= 0, y, 0.25 * y)
    out = xl + y
    return jnp.transpose(out, (0, 3, 1, 2))


# -----------------------------------------------------------------------------
# Deterministic parameter initialization (synthetic; mirrors __init__ shapes).
# -----------------------------------------------------------------------------
def init_params(key, sub_bands, chunk_size, encoded_dim):
    N, K = encoded_dim, sub_bands
    Nh, H = N // 2, 2 * N
    ks = jax.random.split(key, 16)
    s = 0.1
    eps = 1e-5

    def fold_bn(kg, kb, km, C):
        gamma = 1.0 + s * jax.random.normal(kg, (C,), jnp.float32)
        beta = s * jax.random.normal(kb, (C,), jnp.float32)
        rmean = s * jax.random.normal(km, (C,), jnp.float32)
        rvar = jnp.ones((C,), jnp.float32)
        scale = gamma / jnp.sqrt(rvar + eps)
        bias = beta - rmean * scale
        return scale.reshape(1, C), bias.reshape(1, C)

    s1, b1 = fold_bn(ks[0], ks[1], ks[2], Nh)
    s2, b2 = fold_bn(ks[3], ks[4], ks[5], N)
    p = dict(
        w1=s * jax.random.normal(ks[6], (Nh, N), jnp.float32),   # Conv2d(N->N/2, 1x1)
        s1=s1, b1=b1,
        w2=s * jax.random.normal(ks[7], (N, Nh), jnp.float32),   # Conv2d(N/2->N, 1x1)
        s2=s2, b2=b2,
        ln_g=(1.0 + s * jax.random.normal(ks[8], (N,), jnp.float32)).reshape(1, N),
        ln_b=(s * jax.random.normal(ks[9], (N,), jnp.float32)).reshape(1, N),
        wih=s * jax.random.normal(ks[10], (3 * H, N), jnp.float32),
        whh=s * jax.random.normal(ks[11], (3 * H, H), jnp.float32),
        bih=(s * jax.random.normal(ks[12], (3 * H,), jnp.float32)).reshape(1, 3 * H),
        bhh=(s * jax.random.normal(ks[13], (3 * H,), jnp.float32)).reshape(1, 3 * H),
        wfc=s * jax.random.normal(ks[14], (Nh, H), jnp.float32),
        bfc=(s * jax.random.normal(ks[15], (Nh,), jnp.float32)).reshape(1, Nh),
    )
    # local band mask over sub-bands (see TODO(synk) above).
    idx = jnp.arange(K)
    band = jnp.abs(idx[:, None] - idx[None, :]) <= chunk_size
    mask = jnp.where(band, 0.0, -1e9).astype(jnp.float32)
    cf = math.sqrt(K * N / 2.0)
    return p, mask, cf


if __name__ == "__main__":
    B, N, T, K = 2, 32, 8, 16          # batch, encoded_dim, time, sub_bands
    chunk_size = 4
    assert chunk_size < K

    key = jax.random.PRNGKey(0)
    kx, kp = jax.random.split(key)
    x = jax.random.normal(kx, (B, N, T, K), jnp.float32)
    params, mask, cf = init_params(kp, K, chunk_size, N)

    out = axial_self_attention_forward(x, params, mask, cf)
    out = jax.block_until_ready(out)

    ref = reference(x, params, mask, cf)
    # bf16 MXU matmuls vs the pure-f32 reference -> loose-but-meaningful tolerance.
    np.testing.assert_allclose(np.asarray(out), np.asarray(ref),
                               atol=5e-2, rtol=5e-2)
    assert out.shape == (B, N, T, K)
    print("KERNEL_OK")
</pallas_src>

<mosaic_0001>
module attributes {stable_mosaic.version = 11 : i64} {
  func.func @kernel(%arg0: i32, %arg1: memref<1x8x16x32xf32, #tpu.memory_space<vmem>>, %arg2: memref<16x16xf32, #tpu.memory_space<vmem>>, %arg3: memref<1x32xf32, #tpu.memory_space<vmem>>, %arg4: memref<1x32xf32, #tpu.memory_space<vmem>>, %arg5: memref<32x192xbf16, #tpu.memory_space<vmem>>, %arg6: memref<1x192xf32, #tpu.memory_space<vmem>>, %arg7: memref<64x192xf32, #tpu.memory_space<vmem>>, %arg8: memref<1x192xf32, #tpu.memory_space<vmem>>, %arg9: memref<64x16xbf16, #tpu.memory_space<vmem>>, %arg10: memref<1x16xf32, #tpu.memory_space<vmem>>, %arg11: memref<32x16xbf16, #tpu.memory_space<vmem>>, %arg12: memref<1x16xf32, #tpu.memory_space<vmem>>, %arg13: memref<1x16xf32, #tpu.memory_space<vmem>>, %arg14: memref<16x32xbf16, #tpu.memory_space<vmem>>, %arg15: memref<1x32xf32, #tpu.memory_space<vmem>>, %arg16: memref<1x32xf32, #tpu.memory_space<vmem>>, %arg17: memref<1x8x16x32xf32, #tpu.memory_space<vmem>>, %arg18: memref<8x16x192xf32, #tpu.memory_space<vmem>>, %arg19: memref<8x16x64xf32, #tpu.memory_space<vmem>>) attributes {dimension_semantics = [#tpu.dimension_semantics<parallel>], iteration_bounds = array<i64: 2>, scalar_prefetch = 0 : i64, scratch_operands = 2 : i64, tpu.core_type = #tpu.core_type<tc>, window_params = [{transform_indices = @transform_0, window_bounds = array<i64: 1, 8, 16, 32>}, {pipeline_mode = #tpu.pipeline_mode<synchronous>, transform_indices = @transform_1, window_bounds = array<i64: 16, 16>}, {pipeline_mode = #tpu.pipeline_mode<synchronous>, transform_indices = @transform_2, window_bounds = array<i64: 1, 32>}, {pipeline_mode = #tpu.pipeline_mode<synchronous>, transform_indices = @transform_3, window_bounds = array<i64: 1, 32>}, {pipeline_mode = #tpu.pipeline_mode<synchronous>, transform_indices = @transform_4, window_bounds = array<i64: 32, 192>}, {pipeline_mode = #tpu.pipeline_mode<synchronous>, transform_indices = @transform_5, window_bounds = array<i64: 1, 192>}, {pipeline_mode = #tpu.pipeline_mode<synchronous>, transform_indices = @transform_6, window_bounds = array<i64: 64, 192>}, {pipeline_mode = #tpu.pipeline_mode<synchronous>, transform_indices = @transform_7, window_bounds = array<i64: 1, 192>}, {pipeline_mode = #tpu.pipeline_mode<synchronous>, transform_indices = @transform_8, window_bounds = array<i64: 64, 16>}, {pipeline_mode = #tpu.pipeline_mode<synchronous>, transform_indices = @transform_9, window_bounds = array<i64: 1, 16>}, {pipeline_mode = #tpu.pipeline_mode<synchronous>, transform_indices = @transform_10, window_bounds = array<i64: 32, 16>}, {pipeline_mode = #tpu.pipeline_mode<synchronous>, transform_indices = @transform_11, window_bounds = array<i64: 1, 16>}, {pipeline_mode = #tpu.pipeline_mode<synchronous>, transform_indices = @transform_12, window_bounds = array<i64: 1, 16>}, {pipeline_mode = #tpu.pipeline_mode<synchronous>, transform_indices = @transform_13, window_bounds = array<i64: 16, 32>}, {pipeline_mode = #tpu.pipeline_mode<synchronous>, transform_indices = @transform_14, window_bounds = array<i64: 1, 32>}, {pipeline_mode = #tpu.pipeline_mode<synchronous>, transform_indices = @transform_15, window_bounds = array<i64: 1, 32>}, {transform_indices = @transform_16, window_bounds = array<i64: 1, 8, 16, 32>}]} {
    %c0 = arith.constant 0 : index
    %c0_0 = arith.constant 0 : index
    %c0_1 = arith.constant 0 : index
    %c0_2 = arith.constant 0 : index
    %0 = vector.load %arg1[%c0, %c0_0, %c0_1, %c0_2] : memref<1x8x16x32xf32, #tpu.memory_space<vmem>>, vector<1x8x16x32xf32>
    %1 = vector.shape_cast %0 : vector<1x8x16x32xf32> to vector<8x16x32xf32>
    %cst = arith.constant dense<0.000000e+00> : vector<8x16xf32>
    %2 = vector.multi_reduction <add>, %1, %cst [2] : vector<8x16x32xf32> to vector<8x16xf32>
    %3 = vector.shape_cast %2 : vector<8x16xf32> to vector<8x16x1xf32>
    %cst_3 = arith.constant 3.200000e+01 : f32
    %4 = vector.broadcast %cst_3 : f32 to vector<8x16x1xf32>
    %5 = arith.divf %3, %4 : vector<8x16x1xf32>
    %6 = vector.broadcast %5 : vector<8x16x1xf32> to vector<8x16x32xf32>
    %7 = arith.subf %1, %6 : vector<8x16x32xf32>
    %8 = arith.mulf %7, %7 : vector<8x16x32xf32>
    %cst_4 = arith.constant dense<0.000000e+00> : vector<8x16xf32>
    %9 = vector.multi_reduction <add>, %8, %cst_4 [2] : vector<8x16x32xf32> to vector<8x16xf32>
    %10 = vector.shape_cast %9 : vector<8x16xf32> to vector<8x16x1xf32>
    %cst_5 = arith.constant 3.200000e+01 : f32
    %11 = vector.broadcast %cst_5 : f32 to vector<8x16x1xf32>
    %12 = arith.divf %10, %11 : vector<8x16x1xf32>
    %13 = vector.broadcast %5 : vector<8x16x1xf32> to vector<8x16x32xf32>
    %14 = arith.subf %1, %13 : vector<8x16x32xf32>
    %cst_6 = arith.constant 9.99999974E-6 : f32
    %15 = vector.broadcast %cst_6 : f32 to vector<8x16x1xf32>
    %16 = arith.addf %12, %15 : vector<8x16x1xf32>
    %17 = math.rsqrt %16 : vector<8x16x1xf32>
    %18 = vector.broadcast %17 : vector<8x16x1xf32> to vector<8x16x32xf32>
    %19 = arith.mulf %14, %18 : vector<8x16x32xf32>
    %c0_7 = arith.constant 0 : index
    %c0_8 = arith.constant 0 : index
    %20 = vector.load %arg3[%c0_7, %c0_8] : memref<1x32xf32, #tpu.memory_space<vmem>>, vector<1x32xf32>
    %21 = vector.shape_cast %20 : vector<1x32xf32> to vector<1x1x32xf32>
    %22 = vector.broadcast %21 : vector<1x1x32xf32> to vector<8x16x32xf32>
    %23 = arith.mulf %19, %22 : vector<8x16x32xf32>
    %c0_9 = arith.constant 0 : index
    %c0_10 = arith.constant 0 : index
    %24 = vector.load %arg4[%c0_9, %c0_10] : memref<1x32xf32, #tpu.memory_space<vmem>>, vector<1x32xf32>
    %25 = vector.shape_cast %24 : vector<1x32xf32> to vector<1x1x32xf32>
    %26 = vector.broadcast %25 : vector<1x1x32xf32> to vector<8x16x32xf32>
    %27 = arith.addf %23, %26 : vector<8x16x32xf32>
    %28 = vector.shape_cast %27 : vector<8x16x32xf32> to vector<128x32xf32>
    %29 = arith.truncf %28 : vector<128x32xf32> to vector<128x32xbf16>
    %c0_11 = arith.constant 0 : index
    %c0_12 = arith.constant 0 : index
    %30 = vector.load %arg5[%c0_11, %c0_12] : memref<32x192xbf16, #tpu.memory_space<vmem>>, vector<32x192xbf16>
    %cst_13 = arith.constant dense<0.000000e+00> : vector<128x192xf32>
    %31 = tpu.matmul %29, %30, %cst_13 {dimension_numbers = #tpu.dot_dimension_numbers<[1], [0], [0], [1], [0, 0, 1, 1], [], []>} : vector<128x32xbf16>, vector<32x192xbf16>, vector<128x192xf32> -> vector<128x192xf32>
    %c0_14 = arith.constant 0 : index
    %c0_15 = arith.constant 0 : index
    %32 = vector.load %arg6[%c0_14, %c0_15] : memref<1x192xf32, #tpu.memory_space<vmem>>, vector<1x192xf32>
    %33 = vector.broadcast %32 : vector<1x192xf32> to vector<128x192xf32>
    %34 = arith.addf %31, %33 : vector<128x192xf32>
    %35 = vector.shape_cast %34 : vector<128x192xf32> to vector<8x16x192xf32>
    %c0_16 = arith.constant 0 : index
    %c0_17 = arith.constant 0 : index
    %c0_18 = arith.constant 0 : index
    %36 = vector.load %arg18[%c0_16, %c0_17, %c0_18] : memref<8x16x192xf32, #tpu.memory_space<vmem>>, vector<8x16x192xf32>
    tpu.vector_store %arg18[%c0_16, %c0_17, %c0_18], %35 {strides = array<i32>} : memref<8x16x192xf32, #tpu.memory_space<vmem>>, vector<8x16x192xf32>,
    %c0_19 = arith.constant 0 : index
    %c0_20 = arith.constant 0 : index
    %37 = vector.load %arg7[%c0_19, %c0_20] : memref<64x192xf32, #tpu.memory_space<vmem>>, vector<64x192xf32>
    %c0_21 = arith.constant 0 : index
    %c0_22 = arith.constant 0 : index
    %38 = vector.load %arg8[%c0_21, %c0_22] : memref<1x192xf32, #tpu.memory_space<vmem>>, vector<1x192xf32>
    %cst_23 = arith.constant 0.000000e+00 : f32
    %39 = vector.broadcast %cst_23 : f32 to vector<16x64xf32>
    %c0_i32 = arith.constant 0 : i32
    %40 = arith.index_cast %c0_i32 : i32 to index
    %c0_24 = arith.constant 0 : index
    %c0_25 = arith.constant 0 : index
    %41 = vector.load %arg18[%40, %c0_24, %c0_25] : memref<8x16x192xf32, #tpu.memory_space<vmem>>, vector<1x16x192xf32>
    %42 = vector.shape_cast %41 : vector<1x16x192xf32> to vector<16x192xf32>
    %cst_26 = arith.constant dense<0.000000e+00> : vector<16x192xf32>
    %43 = tpu.matmul %39, %37, %cst_26 {dimension_numbers = #tpu.dot_dimension_numbers<[1], [0], [0], [1], [0, 0, 1, 1], [], []>} : vector<16x64xf32>, vector<64x192xf32>, vector<16x192xf32> -> vector<16x192xf32>
    %44 = vector.broadcast %38 : vector<1x192xf32> to vector<16x192xf32>
    %45 = arith.addf %43, %44 : vector<16x192xf32>
    %46 = vector.extract_strided_slice %42 {offsets = [0, 0], sizes = [16, 64], strides = [1, 1]} : vector<16x192xf32> to vector<16x64xf32>
    %47 = vector.extract_strided_slice %45 {offsets = [0, 0], sizes = [16, 64], strides = [1, 1]} : vector<16x192xf32> to vector<16x64xf32>
    %48 = arith.addf %46, %47 : vector<16x64xf32>
    %49 = arith.negf %48 : vector<16x64xf32>
    %50 = math.exp %49 : vector<16x64xf32>
    %cst_27 = arith.constant 1.000000e+00 : f32
    %51 = vector.broadcast %cst_27 : f32 to vector<16x64xf32>
    %52 = arith.addf %51, %50 : vector<16x64xf32>
    %53 = arith.divf %51, %52 : vector<16x64xf32>
    %54 = vector.extract_strided_slice %42 {offsets = [0, 64], sizes = [16, 64], strides = [1, 1]} : vector<16x192xf32> to vector<16x64xf32>
    %55 = vector.extract_strided_slice %45 {offsets = [0, 64], sizes = [16, 64], strides = [1, 1]} : vector<16x192xf32> to vector<16x64xf32>
    %56 = arith.addf %54, %55 : vector<16x64xf32>
    %57 = arith.negf %56 : vector<16x64xf32>
    %58 = math.exp %57 : vector<16x64xf32>
    %cst_28 = arith.constant 1.000000e+00 : f32
    %59 = vector.broadcast %cst_28 : f32 to vector<16x64xf32>
    %60 = arith.addf %59, %58 : vector<16x64xf32>
    %61 = arith.divf %59, %60 : vector<16x64xf32>
    %62 = vector.extract_strided_slice %42 {offsets = [0, 128], sizes = [16, 64], strides = [1, 1]} : vector<16x192xf32> to vector<16x64xf32>
    %63 = vector.extract_strided_slice %45 {offsets = [0, 128], sizes = [16, 64], strides = [1, 1]} : vector<16x192xf32> to vector<16x64xf32>
    %64 = arith.mulf %53, %63 : vector<16x64xf32>
    %65 = arith.addf %62, %64 : vector<16x64xf32>
    %66 = math.tanh %65 : vector<16x64xf32>
    %cst_29 = arith.constant 1.000000e+00 : f32
    %67 = vector.broadcast %cst_29 : f32 to vector<16x64xf32>
    %68 = arith.subf %67, %61 : vector<16x64xf32>
    %69 = arith.mulf %68, %66 : vector<16x64xf32>
    %70 = arith.mulf %61, %39 : vector<16x64xf32>
    %71 = arith.addf %69, %70 : vector<16x64xf32>
    %72 = arith.index_cast %c0_i32 : i32 to index
    %c0_30 = arith.constant 0 : index
    %c0_31 = arith.constant 0 : index
    %73 = vector.load %arg19[%72, %c0_30, %c0_31] : memref<8x16x64xf32, #tpu.memory_space<vmem>>, vector<1x16x64xf32>
    %74 = vector.shape_cast %73 : vector<1x16x64xf32> to vector<16x64xf32>
    %75 = vector.shape_cast %71 : vector<16x64xf32> to vector<1x16x64xf32>
    tpu.vector_store %arg19[%72, %c0_30, %c0_31], %75 {strides = array<i32>} : memref<8x16x64xf32, #tpu.memory_space<vmem>>, vector<1x16x64xf32>,
    %c1_i32 = arith.constant 1 : i32
    %76 = arith.index_cast %c1_i32 : i32 to index
    %c0_32 = arith.constant 0 : index
    %c0_33 = arith.constant 0 : index
    %77 = vector.load %arg18[%76, %c0_32, %c0_33] : memref<8x16x192xf32, #tpu.memory_space<vmem>>, vector<1x16x192xf32>
    %78 = vector.shape_cast %77 : vector<1x16x192xf32> to vector<16x192xf32>
    %cst_34 = arith.constant dense<0.000000e+00> : vector<16x192xf32>
    %79 = tpu.matmul %71, %37, %cst_34 {dimension_numbers = #tpu.dot_dimension_numbers<[1], [0], [0], [1], [0, 0, 1, 1], [], []>} : vector<16x64xf32>, vector<64x192xf32>, vector<16x192xf32> -> vector<16x192xf32>
    %80 = vector.broadcast %38 : vector<1x192xf32> to vector<16x192xf32>
    %81 = arith.addf %79, %80 : vector<16x192xf32>
    %82 = vector.extract_strided_slice %78 {offsets = [0, 0], sizes = [16, 64], strides = [1, 1]} : vector<16x192xf32> to vector<16x64xf32>
    %83 = vector.extract_strided_slice %81 {offsets = [0, 0], sizes = [16, 64], strides = [1, 1]} : vector<16x192xf32> to vector<16x64xf32>
    %84 = arith.addf %82, %83 : vector<16x64xf32>
    %85 = arith.negf %84 : vector<16x64xf32>
    %86 = math.exp %85 : vector<16x64xf32>
    %cst_35 = arith.constant 1.000000e+00 : f32
    %87 = vector.broadcast %cst_35 : f32 to vector<16x64xf32>
    %88 = arith.addf %87, %86 : vector<16x64xf32>
    %89 = arith.divf %87, %88 : vector<16x64xf32>
    %90 = vector.extract_strided_slice %78 {offsets = [0, 64], sizes = [16, 64], strides = [1, 1]} : vector<16x192xf32> to vector<16x64xf32>
    %91 = vector.extract_strided_slice %81 {offsets = [0, 64], sizes = [16, 64], strides = [1, 1]} : vector<16x192xf32> to vector<16x64xf32>
    %92 = arith.addf %90, %91 : vector<16x64xf32>
    %93 = arith.negf %92 : vector<16x64xf32>
    %94 = math.exp %93 : vector<16x64xf32>
    %cst_36 = arith.constant 1.000000e+00 : f32
    %95 = vector.broadcast %cst_36 : f32 to vector<16x64xf32>
    %96 = arith.addf %95, %94 : vector<16x64xf32>
    %97 = arith.divf %95, %96 : vector<16x64xf32>
    %98 = vector.extract_strided_slice %78 {offsets = [0, 128], sizes = [16, 64], strides = [1, 1]} : vector<16x192xf32> to vector<16x64xf32>
    %99 = vector.extract_strided_slice %81 {offsets = [0, 128], sizes = [16, 64], strides = [1, 1]} : vector<16x192xf32> to vector<16x64xf32>
    %100 = arith.mulf %89, %99 : vector<16x64xf32>
    %101 = arith.addf %98, %100 : vector<16x64xf32>
    %102 = math.tanh %101 : vector<16x64xf32>
    %cst_37 = arith.constant 1.000000e+00 : f32
    %103 = vector.broadcast %cst_37 : f32 to vector<16x64xf32>
    %104 = arith.subf %103, %97 : vector<16x64xf32>
    %105 = arith.mulf %104, %102 : vector<16x64xf32>
    %106 = arith.mulf %97, %71 : vector<16x64xf32>
    %107 = arith.addf %105, %106 : vector<16x64xf32>
    %108 = arith.index_cast %c1_i32 : i32 to index
    %c0_38 = arith.constant 0 : index
    %c0_39 = arith.constant 0 : index
    %109 = vector.load %arg19[%108, %c0_38, %c0_39] : memref<8x16x64xf32, #tpu.memory_space<vmem>>, vector<1x16x64xf32>
    %110 = vector.shape_cast %109 : vector<1x16x64xf32> to vector<16x64xf32>
    %111 = vector.shape_cast %107 : vector<16x64xf32> to vector<1x16x64xf32>
    tpu.vector_store %arg19[%108, %c0_38, %c0_39], %111 {strides = array<i32>} : memref<8x16x64xf32, #tpu.memory_space<vmem>>, vector<1x16x64xf32>,
    %c2_i32 = arith.constant 2 : i32
    %112 = arith.index_cast %c2_i32 : i32 to index
    %c0_40 = arith.constant 0 : index
    %c0_41 = arith.constant 0 : index
    %113 = vector.load %arg18[%112, %c0_40, %c0_41] : memref<8x16x192xf32, #tpu.memory_space<vmem>>, vector<1x16x192xf32>
    %114 = vector.shape_cast %113 : vector<1x16x192xf32> to vector<16x192xf32>
    %cst_42 = arith.constant dense<0.000000e+00> : vector<16x192xf32>
    %115 = tpu.matmul %107, %37, %cst_42 {dimension_numbers = #tpu.dot_dimension_numbers<[1], [0], [0], [1], [0, 0, 1, 1], [], []>} : vector<16x64xf32>, vector<64x192xf32>, vector<16x192xf32> -> vector<16x192xf32>
    %116 = vector.broadcast %38 : vector<1x192xf32> to vector<16x192xf32>
    %117 = arith.addf %115, %116 : vector<16x192xf32>
    %118 = vector.extract_strided_slice %114 {offsets = [0, 0], sizes = [16, 64], strides = [1, 1]} : vector<16x192xf32> to vector<16x64xf32>
    %119 = vector.extract_strided_slice %117 {offsets = [0, 0], sizes = [16, 64], strides = [1, 1]} : vector<16x192xf32> to vector<16x64xf32>
    %120 = arith.addf %118, %119 : vector<16x64xf32>
    %121 = arith.negf %120 : vector<16x64xf32>
    %122 = math.exp %121 : vector<16x64xf32>
    %cst_43 = arith.constant 1.000000e+00 : f32
    %123 = vector.broadcast %cst_43 : f32 to vector<16x64xf32>
    %124 = arith.addf %123, %122 : vector<16x64xf32>
    %125 = arith.divf %123, %124 : vector<16x64xf32>
    %126 = vector.extract_strided_slice %114 {offsets = [0, 64], sizes = [16, 64], strides = [1, 1]} : vector<16x192xf32> to vector<16x64xf32>
    %127 = vector.extract_strided_slice %117 {offsets = [0, 64], sizes = [16, 64], strides = [1, 1]} : vector<16x192xf32> to vector<16x64xf32>
    %128 = arith.addf %126, %127 : vector<16x64xf32>
    %129 = arith.negf %128 : vector<16x64xf32>
    %130 = math.exp %129 : vector<16x64xf32>
    %cst_44 = arith.constant 1.000000e+00 : f32
    %131 = vector.broadcast %cst_44 : f32 to vector<16x64xf32>
    %132 = arith.addf %131, %130 : vector<16x64xf32>
    %133 = arith.divf %131, %132 : vector<16x64xf32>
    %134 = vector.extract_strided_slice %114 {offsets = [0, 128], sizes = [16, 64], strides = [1, 1]} : vector<16x192xf32> to vector<16x64xf32>
    %135 = vector.extract_strided_slice %117 {offsets = [0, 128], sizes = [16, 64], strides = [1, 1]} : vector<16x192xf32> to vector<16x64xf32>
    %136 = arith.mulf %125, %135 : vector<16x64xf32>
    %137 = arith.addf %134, %136 : vector<16x64xf32>
    %138 = math.tanh %137 : vector<16x64xf32>
    %cst_45 = arith.constant 1.000000e+00 : f32
    %139 = vector.broadcast %cst_45 : f32 to vector<16x64xf32>
    %140 = arith.subf %139, %133 : vector<16x64xf32>
    %141 = arith.mulf %140, %138 : vector<16x64xf32>
    %142 = arith.mulf %133, %107 : vector<16x64xf32>
    %143 = arith.addf %141, %142 : vector<16x64xf32>
    %144 = arith.index_cast %c2_i32 : i32 to index
    %c0_46 = arith.constant 0 : index
    %c0_47 = arith.constant 0 : index
    %145 = vector.load %arg19[%144, %c0_46, %c0_47] : memref<8x16x64xf32, #tpu.memory_space<vmem>>, vector<1x16x64xf32>
    %146 = vector.shape_cast %145 : vector<1x16x64xf32> to vector<16x64xf32>
    %147 = vector.shape_cast %143 : vector<16x64xf32> to vector<1x16x64xf32>
    tpu.vector_store %arg19[%144, %c0_46, %c0_47], %147 {strides = array<i32>} : memref<8x16x64xf32, #tpu.memory_space<vmem>>, vector<1x16x64xf32>,
    %c3_i32 = arith.constant 3 : i32
    %148 = arith.index_cast %c3_i32 : i32 to index
    %c0_48 = arith.constant 0 : index
    %c0_49 = arith.constant 0 : index
    %149 = vector.load %arg18[%148, %c0_48, %c0_49] : memref<8x16x192xf32, #tpu.memory_space<vmem>>, vector<1x16x192xf32>
    %150 = vector.shape_cast %149 : vector<1x16x192xf32> to vector<16x192xf32>
    %cst_50 = arith.constant dense<0.000000e+00> : vector<16x192xf32>
    %151 = tpu.matmul %143, %37, %cst_50 {dimension_numbers = #tpu.dot_dimension_numbers<[1], [0], [0], [1], [0, 0, 1, 1], [], []>} : vector<16x64xf32>, vector<64x192xf32>, vector<16x192xf32> -> vector<16x192xf32>
    %152 = vector.broadcast %38 : vector<1x192xf32> to vector<16x192xf32>
    %153 = arith.addf %151, %152 : vector<16x192xf32>
    %154 = vector.extract_strided_slice %150 {offsets = [0, 0], sizes = [16, 64], strides = [1, 1]} : vector<16x192xf32> to vector<16x64xf32>
    %155 = vector.extract_strided_slice %153 {offsets = [0, 0], sizes = [16, 64], strides = [1, 1]} : vector<16x192xf32> to vector<16x64xf32>
    %156 = arith.addf %154, %155 : vector<16x64xf32>
    %157 = arith.negf %156 : vector<16x64xf32>
    %158 = math.exp %157 : vector<16x64xf32>
    %cst_51 = arith.constant 1.000000e+00 : f32
    %159 = vector.broadcast %cst_51 : f32 to vector<16x64xf32>
    %160 = arith.addf %159, %158 : vector<16x64xf32>
    %161 = arith.divf %159, %160 : vector<16x64xf32>
    %162 = vector.extract_strided_slice %150 {offsets = [0, 64], sizes = [16, 64], strides = [1, 1]} : vector<16x192xf32> to vector<16x64xf32>
    %163 = vector.extract_strided_slice %153 {offsets = [0, 64], sizes = [16, 64], strides = [1, 1]} : vector<16x192xf32> to vector<16x64xf32>
    %164 = arith.addf %162, %163 : vector<16x64xf32>
    %165 = arith.negf %164 : vector<16x64xf32>
    %166 = math.exp %165 : vector<16x64xf32>
    %cst_52 = arith.constant 1.000000e+00 : f32
    %167 = vector.broadcast %cst_52 : f32 to vector<16x64xf32>
    %168 = arith.addf %167, %166 : vector<16x64xf32>
    %169 = arith.divf %167, %168 : vector<16x64xf32>
    %170 = vector.extract_strided_slice %150 {offsets = [0, 128], sizes = [16, 64], strides = [1, 1]} : vector<16x192xf32> to vector<16x64xf32>
    %171 = vector.extract_strided_slice %153 {offsets = [0, 128], sizes = [16, 64], strides = [1, 1]} : vector<16x192xf32> to vector<16x64xf32>
    %172 = arith.mulf %161, %171 : vector<16x64xf32>
    %173 = arith.addf %170, %172 : vector<16x64xf32>
    %174 = math.tanh %173 : vector<16x64xf32>
    %cst_53 = arith.constant 1.000000e+00 : f32
    %175 = vector.broadcast %cst_53 : f32 to vector<16x64xf32>
    %176 = arith.subf %175, %169 : vector<16x64xf32>
    %177 = arith.mulf %176, %174 : vector<16x64xf32>
    %178 = arith.mulf %169, %143 : vector<16x64xf32>
    %179 = arith.addf %177, %178 : vector<16x64xf32>
    %180 = arith.index_cast %c3_i32 : i32 to index
    %c0_54 = arith.constant 0 : index
    %c0_55 = arith.constant 0 : index
    %181 = vector.load %arg19[%180, %c0_54, %c0_55] : memref<8x16x64xf32, #tpu.memory_space<vmem>>, vector<1x16x64xf32>
    %182 = vector.shape_cast %181 : vector<1x16x64xf32> to vector<16x64xf32>
    %183 = vector.shape_cast %179 : vector<16x64xf32> to vector<1x16x64xf32>
    tpu.vector_store %arg19[%180, %c0_54, %c0_55], %183 {strides = array<i32>} : memref<8x16x64xf32, #tpu.memory_space<vmem>>, vector<1x16x64xf32>,
    %c4_i32 = arith.constant 4 : i32
    %184 = arith.index_cast %c4_i32 : i32 to index
    %c0_56 = arith.constant 0 : index
    %c0_57 = arith.constant 0 : index
    %185 = vector.load %arg18[%184, %c0_56, %c0_57] : memref<8x16x192xf32, #tpu.memory_space<vmem>>, vector<1x16x192xf32>
    %186 = vector.shape_cast %185 : vector<1x16x192xf32> to vector<16x192xf32>
    %cst_58 = arith.constant dense<0.000000e+00> : vector<16x192xf32>
    %187 = tpu.matmul %179, %37, %cst_58 {dimension_numbers = #tpu.dot_dimension_numbers<[1], [0], [0], [1], [0, 0, 1, 1], [], []>} : vector<16x64xf32>, vector<64x192xf32>, vector<16x192xf32> -> vector<16x192xf32>
    %188 = vector.broadcast %38 : vector<1x192xf32> to vector<16x192xf32>
    %189 = arith.addf %187, %188 : vector<16x192xf32>
    %190 = vector.extract_strided_slice %186 {offsets = [0, 0], sizes = [16, 64], strides = [1, 1]} : vector<16x192xf32> to vector<16x64xf32>
    %191 = vector.extract_strided_slice %189 {offsets = [0, 0], sizes = [16, 64], strides = [1, 1]} : vector<16x192xf32> to vector<16x64xf32>
    %192 = arith.addf %190, %191 : vector<16x64xf32>
    %193 = arith.negf %192 : vector<16x64xf32>
    %194 = math.exp %193 : vector<16x64xf32>
    %cst_59 = arith.constant 1.000000e+00 : f32
    %195 = vector.broadcast %cst_59 : f32 to vector<16x64xf32>
    %196 = arith.addf %195, %194 : vector<16x64xf32>
    %197 = arith.divf %195, %196 : vector<16x64xf32>
    %198 = vector.extract_strided_slice %186 {offsets = [0, 64], sizes = [16, 64], strides = [1, 1]} : vector<16x192xf32> to vector<16x64xf32>
    %199 = vector.extract_strided_slice %189 {offsets = [0, 64], sizes = [16, 64], strides = [1, 1]} : vector<16x192xf32> to vector<16x64xf32>
    %200 = arith.addf %198, %199 : vector<16x64xf32>
    %201 = arith.negf %200 : vector<16x64xf32>
    %202 = math.exp %201 : vector<16x64xf32>
    %cst_60 = arith.constant 1.000000e+00 : f32
    %203 = vector.broadcast %cst_60 : f32 to vector<16x64xf32>
    %204 = arith.addf %203, %202 : vector<16x64xf32>
    %205 = arith.divf %203, %204 : vector<16x64xf32>
    %206 = vector.extract_strided_slice %186 {offsets = [0, 128], sizes = [16, 64], strides = [1, 1]} : vector<16x192xf32> to vector<16x64xf32>
    %207 = vector.extract_strided_slice %189 {offsets = [0, 128], sizes = [16, 64], strides = [1, 1]} : vector<16x192xf32> to vector<16x64xf32>
    %208 = arith.mulf %197, %207 : vector<16x64xf32>
    %209 = arith.addf %206, %208 : vector<16x64xf32>
    %210 = math.tanh %209 : vector<16x64xf32>
    %cst_61 = arith.constant 1.000000e+00 : f32
    %211 = vector.broadcast %cst_61 : f32 to vector<16x64xf32>
    %212 = arith.subf %211, %205 : vector<16x64xf32>
    %213 = arith.mulf %212, %210 : vector<16x64xf32>
    %214 = arith.mulf %205, %179 : vector<16x64xf32>
    %215 = arith.addf %213, %214 : vector<16x64xf32>
    %216 = arith.index_cast %c4_i32 : i32 to index
    %c0_62 = arith.constant 0 : index
    %c0_63 = arith.constant 0 : index
    %217 = vector.load %arg19[%216, %c0_62, %c0_63] : memref<8x16x64xf32, #tpu.memory_space<vmem>>, vector<1x16x64xf32>
    %218 = vector.shape_cast %217 : vector<1x16x64xf32> to vector<16x64xf32>
    %219 = vector.shape_cast %215 : vector<16x64xf32> to vector<1x16x64xf32>
    tpu.vector_store %arg19[%216, %c0_62, %c0_63], %219 {strides = array<i32>} : memref<8x16x64xf32, #tpu.memory_space<vmem>>, vector<1x16x64xf32>,
    %c5_i32 = arith.constant 5 : i32
    %220 = arith.index_cast %c5_i32 : i32 to index
    %c0_64 = arith.constant 0 : index
    %c0_65 = arith.constant 0 : index
    %221 = vector.load %arg18[%220, %c0_64, %c0_65] : memref<8x16x192xf32, #tpu.memory_space<vmem>>, vector<1x16x192xf32>
    %222 = vector.shape_cast %221 : vector<1x16x192xf32> to vector<16x192xf32>
    %cst_66 = arith.constant dense<0.000000e+00> : vector<16x192xf32>
    %223 = tpu.matmul %215, %37, %cst_66 {dimension_numbers = #tpu.dot_dimension_numbers<[1], [0], [0], [1], [0, 0, 1, 1], [], []>} : vector<16x64xf32>, vector<64x192xf32>, vector<16x192xf32> -> vector<16x192xf32>
    %224 = vector.broadcast %38 : vector<1x192xf32> to vector<16x192xf32>
    %225 = arith.addf %223, %224 : vector<16x192xf32>
    %226 = vector.extract_strided_slice %222 {offsets = [0, 0], sizes = [16, 64], strides = [1, 1]} : vector<16x192xf32> to vector<16x64xf32>
    %227 = vector.extract_strided_slice %225 {offsets = [0, 0], sizes = [16, 64], strides = [1, 1]} : vector<16x192xf32> to vector<16x64xf32>
    %228 = arith.addf %226, %227 : vector<16x64xf32>
    %229 = arith.negf %228 : vector<16x64xf32>
    %230 = math.exp %229 : vector<16x64xf32>
    %cst_67 = arith.constant 1.000000e+00 : f32
    %231 = vector.broadcast %cst_67 : f32 to vector<16x64xf32>
    %232 = arith.addf %231, %230 : vector<16x64xf32>
    %233 = arith.divf %231, %232 : vector<16x64xf32>
    %234 = vector.extract_strided_slice %222 {offsets = [0, 64], sizes = [16, 64], strides = [1, 1]} : vector<16x192xf32> to vector<16x64xf32>
    %235 = vector.extract_strided_slice %225 {offsets = [0, 64], sizes = [16, 64], strides = [1, 1]} : vector<16x192xf32> to vector<16x64xf32>
    %236 = arith.addf %234, %235 : vector<16x64xf32>
    %237 = arith.negf %236 : vector<16x64xf32>
    %238 = math.exp %237 : vector<16x64xf32>
    %cst_68 = arith.constant 1.000000e+00 : f32
    %239 = vector.broadcast %cst_68 : f32 to vector<16x64xf32>
    %240 = arith.addf %239, %238 : vector<16x64xf32>
    %241 = arith.divf %239, %240 : vector<16x64xf32>
    %242 = vector.extract_strided_slice %222 {offsets = [0, 128], sizes = [16, 64], strides = [1, 1]} : vector<16x192xf32> to vector<16x64xf32>
    %243 = vector.extract_strided_slice %225 {offsets = [0, 128], sizes = [16, 64], strides = [1, 1]} : vector<16x192xf32> to vector<16x64xf32>
    %244 = arith.mulf %233, %243 : vector<16x64xf32>
    %245 = arith.addf %242, %244 : vector<16x64xf32>
    %246 = math.tanh %245 : vector<16x64xf32>
    %cst_69 = arith.constant 1.000000e+00 : f32
    %247 = vector.broadcast %cst_69 : f32 to vector<16x64xf32>
    %248 = arith.subf %247, %241 : vector<16x64xf32>
    %249 = arith.mulf %248, %246 : vector<16x64xf32>
    %250 = arith.mulf %241, %215 : vector<16x64xf32>
    %251 = arith.addf %249, %250 : vector<16x64xf32>
    %252 = arith.index_cast %c5_i32 : i32 to index
    %c0_70 = arith.constant 0 : index
    %c0_71 = arith.constant 0 : index
    %253 = vector.load %arg19[%252, %c0_70, %c0_71] : memref<8x16x64xf32, #tpu.memory_space<vmem>>, vector<1x16x64xf32>
    %254 = vector.shape_cast %253 : vector<1x16x64xf32> to vector<16x64xf32>
    %255 = vector.shape_cast %251 : vector<16x64xf32> to vector<1x16x64xf32>
    tpu.vector_store %arg19[%252, %c0_70, %c0_71], %255 {strides = array<i32>} : memref<8x16x64xf32, #tpu.memory_space<vmem>>, vector<1x16x64xf32>,
    %c6_i32 = arith.constant 6 : i32
    %256 = arith.index_cast %c6_i32 : i32 to index
    %c0_72 = arith.constant 0 : index
    %c0_73 = arith.constant 0 : index
    %257 = vector.load %arg18[%256, %c0_72, %c0_73] : memref<8x16x192xf32, #tpu.memory_space<vmem>>, vector<1x16x192xf32>
    %258 = vector.shape_cast %257 : vector<1x16x192xf32> to vector<16x192xf32>
    %cst_74 = arith.constant dense<0.000000e+00> : vector<16x192xf32>
    %259 = tpu.matmul %251, %37, %cst_74 {dimension_numbers = #tpu.dot_dimension_numbers<[1], [0], [0], [1], [0, 0, 1, 1], [], []>} : vector<16x64xf32>, vector<64x192xf32>, vector<16x192xf32> -> vector<16x192xf32>
    %260 = vector.broadcast %38 : vector<1x192xf32> to vector<16x192xf32>
    %261 = arith.addf %259, %260 : vector<16x192xf32>
    %262 = vector.extract_strided_slice %258 {offsets = [0, 0], sizes = [16, 64], strides = [1, 1]} : vector<16x192xf32> to vector<16x64xf32>
    %263 = vector.extract_strided_slice %261 {offsets = [0, 0], sizes = [16, 64], strides = [1, 1]} : vector<16x192xf32> to vector<16x64xf32>
    %264 = arith.addf %262, %263 : vector<16x64xf32>
    %265 = arith.negf %264 : vector<16x64xf32>
    %266 = math.exp %265 : vector<16x64xf32>
    %cst_75 = arith.constant 1.000000e+00 : f32
    %267 = vector.broadcast %cst_75 : f32 to vector<16x64xf32>
    %268 = arith.addf %267, %266 : vector<16x64xf32>
    %269 = arith.divf %267, %268 : vector<16x64xf32>
    %270 = vector.extract_strided_slice %258 {offsets = [0, 64], sizes = [16, 64], strides = [1, 1]} : vector<16x192xf32> to vector<16x64xf32>
    %271 = vector.extract_strided_slice %261 {offsets = [0, 64], sizes = [16, 64], strides = [1, 1]} : vector<16x192xf32> to vector<16x64xf32>
    %272 = arith.addf %270, %271 : vector<16x64xf32>
    %273 = arith.negf %272 : vector<16x64xf32>
    %274 = math.exp %273 : vector<16x64xf32>
    %cst_76 = arith.constant 1.000000e+00 : f32
    %275 = vector.broadcast %cst_76 : f32 to vector<16x64xf32>
    %276 = arith.addf %275, %274 : vector<16x64xf32>
    %277 = arith.divf %275, %276 : vector<16x64xf32>
    %278 = vector.extract_strided_slice %258 {offsets = [0, 128], sizes = [16, 64], strides = [1, 1]} : vector<16x192xf32> to vector<16x64xf32>
    %279 = vector.extract_strided_slice %261 {offsets = [0, 128], sizes = [16, 64], strides = [1, 1]} : vector<16x192xf32> to vector<16x64xf32>
    %280 = arith.mulf %269, %279 : vector<16x64xf32>
    %281 = arith.addf %278, %280 : vector<16x64xf32>
    %282 = math.tanh %281 : vector<16x64xf32>
    %cst_77 = arith.constant 1.000000e+00 : f32
    %283 = vector.broadcast %cst_77 : f32 to vector<16x64xf32>
    %284 = arith.subf %283, %277 : vector<16x64xf32>
    %285 = arith.mulf %284, %282 : vector<16x64xf32>
    %286 = arith.mulf %277, %251 : vector<16x64xf32>
    %287 = arith.addf %285, %286 : vector<16x64xf32>
    %288 = arith.index_cast %c6_i32 : i32 to index
    %c0_78 = arith.constant 0 : index
    %c0_79 = arith.constant 0 : index
    %289 = vector.load %arg19[%288, %c0_78, %c0_79] : memref<8x16x64xf32, #tpu.memory_space<vmem>>, vector<1x16x64xf32>
    %290 = vector.shape_cast %289 : vector<1x16x64xf32> to vector<16x64xf32>
    %291 = vector.shape_cast %287 : vector<16x64xf32> to vector<1x16x64xf32>
    tpu.vector_store %arg19[%288, %c0_78, %c0_79], %291 {strides = array<i32>} : memref<8x16x64xf32, #tpu.memory_space<vmem>>, vector<1x16x64xf32>,
    %c7_i32 = arith.constant 7 : i32
    %292 = arith.index_cast %c7_i32 : i32 to index
    %c0_80 = arith.constant 0 : index
    %c0_81 = arith.constant 0 : index
    %293 = vector.load %arg18[%292, %c0_80, %c0_81] : memref<8x16x192xf32, #tpu.memory_space<vmem>>, vector<1x16x192xf32>
    %294 = vector.shape_cast %293 : vector<1x16x192xf32> to vector<16x192xf32>
    %cst_82 = arith.constant dense<0.000000e+00> : vector<16x192xf32>
    %295 = tpu.matmul %287, %37, %cst_82 {dimension_numbers = #tpu.dot_dimension_numbers<[1], [0], [0], [1], [0, 0, 1, 1], [], []>} : vector<16x64xf32>, vector<64x192xf32>, vector<16x192xf32> -> vector<16x192xf32>
    %296 = vector.broadcast %38 : vector<1x192xf32> to vector<16x192xf32>
    %297 = arith.addf %295, %296 : vector<16x192xf32>
    %298 = vector.extract_strided_slice %294 {offsets = [0, 0], sizes = [16, 64], strides = [1, 1]} : vector<16x192xf32> to vector<16x64xf32>
    %299 = vector.extract_strided_slice %297 {offsets = [0, 0], sizes = [16, 64], strides = [1, 1]} : vector<16x192xf32> to vector<16x64xf32>
    %300 = arith.addf %298, %299 : vector<16x64xf32>
    %301 = arith.negf %300 : vector<16x64xf32>
    %302 = math.exp %301 : vector<16x64xf32>
    %cst_83 = arith.constant 1.000000e+00 : f32
    %303 = vector.broadcast %cst_83 : f32 to vector<16x64xf32>
    %304 = arith.addf %303, %302 : vector<16x64xf32>
    %305 = arith.divf %303, %304 : vector<16x64xf32>
    %306 = vector.extract_strided_slice %294 {offsets = [0, 64], sizes = [16, 64], strides = [1, 1]} : vector<16x192xf32> to vector<16x64xf32>
    %307 = vector.extract_strided_slice %297 {offsets = [0, 64], sizes = [16, 64], strides = [1, 1]} : vector<16x192xf32> to vector<16x64xf32>
    %308 = arith.addf %306, %307 : vector<16x64xf32>
    %309 = arith.negf %308 : vector<16x64xf32>
    %310 = math.exp %309 : vector<16x64xf32>
    %cst_84 = arith.constant 1.000000e+00 : f32
    %311 = vector.broadcast %cst_84 : f32 to vector<16x64xf32>
    %312 = arith.addf %311, %310 : vector<16x64xf32>
    %313 = arith.divf %311, %312 : vector<16x64xf32>
    %314 = vector.extract_strided_slice %294 {offsets = [0, 128], sizes = [16, 64], strides = [1, 1]} : vector<16x192xf32> to vector<16x64xf32>
    %315 = vector.extract_strided_slice %297 {offsets = [0, 128], sizes = [16, 64], strides = [1, 1]} : vector<16x192xf32> to vector<16x64xf32>
    %316 = arith.mulf %305, %315 : vector<16x64xf32>
    %317 = arith.addf %314, %316 : vector<16x64xf32>
    %318 = math.tanh %317 : vector<16x64xf32>
    %cst_85 = arith.constant 1.000000e+00 : f32
    %319 = vector.broadcast %cst_85 : f32 to vector<16x64xf32>
    %320 = arith.subf %319, %313 : vector<16x64xf32>
    %321 = arith.mulf %320, %318 : vector<16x64xf32>
    %322 = arith.mulf %313, %287 : vector<16x64xf32>
    %323 = arith.addf %321, %322 : vector<16x64xf32>
    %324 = arith.index_cast %c7_i32 : i32 to index
    %c0_86 = arith.constant 0 : index
    %c0_87 = arith.constant 0 : index
    %325 = vector.load %arg19[%324, %c0_86, %c0_87] : memref<8x16x64xf32, #tpu.memory_space<vmem>>, vector<1x16x64xf32>
    %326 = vector.shape_cast %325 : vector<1x16x64xf32> to vector<16x64xf32>
    %327 = vector.shape_cast %323 : vector<16x64xf32> to vector<1x16x64xf32>
    tpu.vector_store %arg19[%324, %c0_86, %c0_87], %327 {strides = array<i32>} : memref<8x16x64xf32, #tpu.memory_space<vmem>>, vector<1x16x64xf32>,
    %c8_i32 = arith.constant 8 : i32
    %c0_88 = arith.constant 0 : index
    %c0_89 = arith.constant 0 : index
    %c0_90 = arith.constant 0 : index
    %328 = vector.load %arg19[%c0_88, %c0_89, %c0_90] : memref<8x16x64xf32, #tpu.memory_space<vmem>>, vector<8x16x64xf32>
    %329 = vector.shape_cast %328 : vector<8x16x64xf32> to vector<128x64xf32>
    %330 = arith.truncf %329 : vector<128x64xf32> to vector<128x64xbf16>
    %c0_91 = arith.constant 0 : index
    %c0_92 = arith.constant 0 : index
    %331 = vector.load %arg9[%c0_91, %c0_92] : memref<64x16xbf16, #tpu.memory_space<vmem>>, vector<64x16xbf16>
    %cst_93 = arith.constant dense<0.000000e+00> : vector<128x16xf32>
    %332 = tpu.matmul %330, %331, %cst_93 {dimension_numbers = #tpu.dot_dimension_numbers<[1], [0], [0], [1], [0, 0, 1, 1], [], []>} : vector<128x64xbf16>, vector<64x16xbf16>, vector<128x16xf32> -> vector<128x16xf32>
    %c0_94 = arith.constant 0 : index
    %c0_95 = arith.constant 0 : index
    %333 = vector.load %arg10[%c0_94, %c0_95] : memref<1x16xf32, #tpu.memory_space<vmem>>, vector<1x16xf32>
    %334 = vector.broadcast %333 : vector<1x16xf32> to vector<128x16xf32>
    %335 = arith.addf %332, %334 : vector<128x16xf32>
    %336 = vector.shape_cast %335 : vector<128x16xf32> to vector<8x16x16xf32>
    %337 = vector.shape_cast %1 : vector<8x16x32xf32> to vector<128x32xf32>
    %338 = arith.truncf %337 : vector<128x32xf32> to vector<128x32xbf16>
    %c0_96 = arith.constant 0 : index
    %c0_97 = arith.constant 0 : index
    %339 = vector.load %arg11[%c0_96, %c0_97] : memref<32x16xbf16, #tpu.memory_space<vmem>>, vector<32x16xbf16>
    %cst_98 = arith.constant dense<0.000000e+00> : vector<128x16xf32>
    %340 = tpu.matmul %338, %339, %cst_98 {dimension_numbers = #tpu.dot_dimension_numbers<[1], [0], [0], [1], [0, 0, 1, 1], [], []>} : vector<128x32xbf16>, vector<32x16xbf16>, vector<128x16xf32> -> vector<128x16xf32>
    %c0_99 = arith.constant 0 : index
    %c0_100 = arith.constant 0 : index
    %341 = vector.load %arg12[%c0_99, %c0_100] : memref<1x16xf32, #tpu.memory_space<vmem>>, vector<1x16xf32>
    %342 = vector.broadcast %341 : vector<1x16xf32> to vector<128x16xf32>
    %343 = arith.mulf %340, %342 : vector<128x16xf32>
    %c0_101 = arith.constant 0 : index
    %c0_102 = arith.constant 0 : index
    %344 = vector.load %arg13[%c0_101, %c0_102] : memref<1x16xf32, #tpu.memory_space<vmem>>, vector<1x16xf32>
    %345 = vector.broadcast %344 : vector<1x16xf32> to vector<128x16xf32>
    %346 = arith.addf %343, %345 : vector<128x16xf32>
    %cst_103 = arith.constant 0.000000e+00 : f32
    %347 = vector.broadcast %cst_103 : f32 to vector<128x16xf32>
    %348 = arith.cmpf oge, %346, %347 : vector<128x16xf32>
    %cst_104 = arith.constant 2.500000e-01 : f32
    %349 = vector.broadcast %cst_104 : f32 to vector<128x16xf32>
    %350 = arith.mulf %349, %346 : vector<128x16xf32>
    %351 = arith.select %348, %346, %350 : vector<128x16xi1>, vector<128x16xf32>
    %352 = vector.shape_cast %351 : vector<128x16xf32> to vector<8x16x16xf32>
    %353 = arith.truncf %352 : vector<8x16x16xf32> to vector<8x16x16xbf16>
    "tpu.trace_start"() <{level = 10 : i32, message = "tkc,tjc->tkj"}> : () -> ()
    %cst_105 = arith.constant dense<0.000000e+00> : vector<8x16x16xf32>
    %354 = tpu.matmul %353, %353, %cst_105 {dimension_numbers = #tpu.dot_dimension_numbers<[2], [2], [1], [1], [0, 0, 0, 1, 1, 1], [0], [0]>} : vector<8x16x16xbf16>, vector<8x16x16xbf16>, vector<8x16x16xf32> -> vector<8x16x16xf32>
    "tpu.trace_stop"() : () -> ()
    %cst_106 = arith.constant 6.250000e-02 : f32
    %355 = vector.broadcast %cst_106 : f32 to vector<8x16x16xf32>
    %356 = arith.mulf %354, %355 : vector<8x16x16xf32>
    %c0_107 = arith.constant 0 : index
    %c0_108 = arith.constant 0 : index
    %357 = vector.load %arg2[%c0_107, %c0_108] : memref<16x16xf32, #tpu.memory_space<vmem>>, vector<16x16xf32>
    %358 = vector.shape_cast %357 : vector<16x16xf32> to vector<1x16x16xf32>
    %359 = vector.broadcast %358 : vector<1x16x16xf32> to vector<8x16x16xf32>
    %360 = arith.addf %356, %359 : vector<8x16x16xf32>
    %cst_109 = arith.constant dense<0xFF800000> : vector<8x16xf32>
    %361 = vector.multi_reduction <maximumf>, %360, %cst_109 [2] : vector<8x16x16xf32> to vector<8x16xf32>
    %362 = vector.shape_cast %361 : vector<8x16xf32> to vector<8x16x1xf32>
    %363 = vector.broadcast %362 : vector<8x16x1xf32> to vector<8x16x16xf32>
    %364 = arith.subf %360, %363 : vector<8x16x16xf32>
    %365 = math.exp %364 : vector<8x16x16xf32>
    %cst_110 = arith.constant dense<0.000000e+00> : vector<8x16xf32>
    %366 = vector.multi_reduction <add>, %365, %cst_110 [2] : vector<8x16x16xf32> to vector<8x16xf32>
    %367 = vector.shape_cast %366 : vector<8x16xf32> to vector<8x16x1xf32>
    %368 = tpu.reciprocal %367 {approx = true} : vector<8x16x1xf32> -> vector<8x16x1xf32>
    %369 = vector.broadcast %368 : vector<8x16x1xf32> to vector<8x16x16xf32>
    %370 = arith.mulf %365, %369 : vector<8x16x16xf32>
    %371 = arith.truncf %370 : vector<8x16x16xf32> to vector<8x16x16xbf16>
    %372 = arith.truncf %336 : vector<8x16x16xf32> to vector<8x16x16xbf16>
    "tpu.trace_start"() <{level = 10 : i32, message = "tkj,tjc->tkc"}> : () -> ()
    %cst_111 = arith.constant dense<0.000000e+00> : vector<8x16x16xf32>
    %373 = tpu.matmul %371, %372, %cst_111 {dimension_numbers = #tpu.dot_dimension_numbers<[2], [1], [1], [2], [0, 0, 0, 1, 1, 2], [0], [0]>} : vector<8x16x16xbf16>, vector<8x16x16xbf16>, vector<8x16x16xf32> -> vector<8x16x16xf32>
    "tpu.trace_stop"() : () -> ()
    %374 = vector.shape_cast %373 : vector<8x16x16xf32> to vector<128x16xf32>
    %375 = arith.truncf %374 : vector<128x16xf32> to vector<128x16xbf16>
    %c0_112 = arith.constant 0 : index
    %c0_113 = arith.constant 0 : index
    %376 = vector.load %arg14[%c0_112, %c0_113] : memref<16x32xbf16, #tpu.memory_space<vmem>>, vector<16x32xbf16>
    %cst_114 = arith.constant dense<0.000000e+00> : vector<128x32xf32>
    %377 = tpu.matmul %375, %376, %cst_114 {dimension_numbers = #tpu.dot_dimension_numbers<[1], [0], [0], [1], [0, 0, 1, 1], [], []>} : vector<128x16xbf16>, vector<16x32xbf16>, vector<128x32xf32> -> vector<128x32xf32>
    %c0_115 = arith.constant 0 : index
    %c0_116 = arith.constant 0 : index
    %378 = vector.load %arg15[%c0_115, %c0_116] : memref<1x32xf32, #tpu.memory_space<vmem>>, vector<1x32xf32>
    %379 = vector.broadcast %378 : vector<1x32xf32> to vector<128x32xf32>
    %380 = arith.mulf %377, %379 : vector<128x32xf32>
    %c0_117 = arith.constant 0 : index
    %c0_118 = arith.constant 0 : index
    %381 = vector.load %arg16[%c0_117, %c0_118] : memref<1x32xf32, #tpu.memory_space<vmem>>, vector<1x32xf32>
    %382 = vector.broadcast %381 : vector<1x32xf32> to vector<128x32xf32>
    %383 = arith.addf %380, %382 : vector<128x32xf32>
    %cst_119 = arith.constant 0.000000e+00 : f32
    %384 = vector.broadcast %cst_119 : f32 to vector<128x32xf32>
    %385 = arith.cmpf oge, %383, %384 : vector<128x32xf32>
    %cst_120 = arith.constant 2.500000e-01 : f32
    %386 = vector.broadcast %cst_120 : f32 to vector<128x32xf32>
    %387 = arith.mulf %386, %383 : vector<128x32xf32>
    %388 = arith.select %385, %383, %387 : vector<128x32xi1>, vector<128x32xf32>
    %389 = vector.shape_cast %388 : vector<128x32xf32> to vector<8x16x32xf32>
    %390 = arith.addf %1, %389 : vector<8x16x32xf32>
    %c0_121 = arith.constant 0 : index
    %c0_122 = arith.constant 0 : index
    %c0_123 = arith.constant 0 : index
    %c0_124 = arith.constant 0 : index
    %391 = vector.load %arg17[%c0_121, %c0_122, %c0_123, %c0_124] : memref<1x8x16x32xf32, #tpu.memory_space<vmem>>, vector<1x8x16x32xf32>
    %392 = vector.shape_cast %391 : vector<1x8x16x32xf32> to vector<8x16x32xf32>
    %393 = vector.shape_cast %390 : vector<8x16x32xf32> to vector<1x8x16x32xf32>
    tpu.vector_store %arg17[%c0_121, %c0_122, %c0_123, %c0_124], %393 {strides = array<i32>} : memref<1x8x16x32xf32, #tpu.memory_space<vmem>>, vector<1x8x16x32xf32>,
    return
  }
  func.func @transform_0(%arg0: i32) -> (i32, i32, i32, i32) {
    %c0_i32 = arith.constant 0 : i32
    %c0_i32_0 = arith.constant 0 : i32
    %c0_i32_1 = arith.constant 0 : i32
    %c0_i32_2 = arith.constant 0 : i32
    return %arg0, %c0_i32, %c0_i32_0, %c0_i32_1 : i32, i32, i32, i32
  }
  func.func @transform_1(%arg0: i32) -> (i32, i32) {
    %c0_i32 = arith.constant 0 : i32
    %c0_i32_0 = arith.constant 0 : i32
    %c0_i32_1 = arith.constant 0 : i32
    return %c0_i32, %c0_i32_0 : i32, i32
  }
  func.func @transform_2(%arg0: i32) -> (i32, i32) {
    %c0_i32 = arith.constant 0 : i32
    %c0_i32_0 = arith.constant 0 : i32
    %c0_i32_1 = arith.constant 0 : i32
    return %c0_i32, %c0_i32_0 : i32, i32
  }
  func.func @transform_3(%arg0: i32) -> (i32, i32) {
    %c0_i32 = arith.constant 0 : i32
    %c0_i32_0 = arith.constant 0 : i32
    %c0_i32_1 = arith.constant 0 : i32
    return %c0_i32, %c0_i32_0 : i32, i32
  }
  func.func @transform_4(%arg0: i32) -> (i32, i32) {
    %c0_i32 = arith.constant 0 : i32
    %c0_i32_0 = arith.constant 0 : i32
    %c0_i32_1 = arith.constant 0 : i32
    return %c0_i32, %c0_i32_0 : i32, i32
  }
  func.func @transform_5(%arg0: i32) -> (i32, i32) {
    %c0_i32 = arith.constant 0 : i32
    %c0_i32_0 = arith.constant 0 : i32
    %c0_i32_1 = arith.constant 0 : i32
    return %c0_i32, %c0_i32_0 : i32, i32
  }
  func.func @transform_6(%arg0: i32) -> (i32, i32) {
    %c0_i32 = arith.constant 0 : i32
    %c0_i32_0 = arith.constant 0 : i32
    %c0_i32_1 = arith.constant 0 : i32
    return %c0_i32, %c0_i32_0 : i32, i32
  }
  func.func @transform_7(%arg0: i32) -> (i32, i32) {
    %c0_i32 = arith.constant 0 : i32
    %c0_i32_0 = arith.constant 0 : i32
    %c0_i32_1 = arith.constant 0 : i32
    return %c0_i32, %c0_i32_0 : i32, i32
  }
  func.func @transform_8(%arg0: i32) -> (i32, i32) {
    %c0_i32 = arith.constant 0 : i32
    %c0_i32_0 = arith.constant 0 : i32
    %c0_i32_1 = arith.constant 0 : i32
    return %c0_i32, %c0_i32_0 : i32, i32
  }
  func.func @transform_9(%arg0: i32) -> (i32, i32) {
    %c0_i32 = arith.constant 0 : i32
    %c0_i32_0 = arith.constant 0 : i32
    %c0_i32_1 = arith.constant 0 : i32
    return %c0_i32, %c0_i32_0 : i32, i32
  }
  func.func @transform_10(%arg0: i32) -> (i32, i32) {
    %c0_i32 = arith.constant 0 : i32
    %c0_i32_0 = arith.constant 0 : i32
    %c0_i32_1 = arith.constant 0 : i32
    return %c0_i32, %c0_i32_0 : i32, i32
  }
  func.func @transform_11(%arg0: i32) -> (i32, i32) {
    %c0_i32 = arith.constant 0 : i32
    %c0_i32_0 = arith.constant 0 : i32
    %c0_i32_1 = arith.constant 0 : i32
    return %c0_i32, %c0_i32_0 : i32, i32
  }
  func.func @transform_12(%arg0: i32) -> (i32, i32) {
    %c0_i32 = arith.constant 0 : i32
    %c0_i32_0 = arith.constant 0 : i32
    %c0_i32_1 = arith.constant 0 : i32
    return %c0_i32, %c0_i32_0 : i32, i32
  }
  func.func @transform_13(%arg0: i32) -> (i32, i32) {
    %c0_i32 = arith.constant 0 : i32
    %c0_i32_0 = arith.constant 0 : i32
    %c0_i32_1 = arith.constant 0 : i32
    return %c0_i32, %c0_i32_0 : i32, i32
  }
  func.func @transform_14(%arg0: i32) -> (i32, i32) {
    %c0_i32 = arith.constant 0 : i32
    %c0_i32_0 = arith.constant 0 : i32
    %c0_i32_1 = arith.constant 0 : i32
    return %c0_i32, %c0_i32_0 : i32, i32
  }
  func.func @transform_15(%arg0: i32) -> (i32, i32) {
    %c0_i32 = arith.constant 0 : i32
    %c0_i32_0 = arith.constant 0 : i32
    %c0_i32_1 = arith.constant 0 : i32
    return %c0_i32, %c0_i32_0 : i32, i32
  }
  func.func @transform_16(%arg0: i32) -> (i32, i32, i32, i32) {
    %c0_i32 = arith.constant 0 : i32
    %c0_i32_0 = arith.constant 0 : i32
    %c0_i32_1 = arith.constant 0 : i32
    %c0_i32_2 = arith.constant 0 : i32
    return %arg0, %c0_i32, %c0_i32_0, %c0_i32_1 : i32, i32, i32, i32
  }
}

</mosaic_0001>

<llo_original>
// kernel: tpu_custom_call.1
$region0: #{tpu_custom_call.1}
  #allocation0 [shape = 'u32[]', space=smem, size = 0x4, offset = 0x4, fixed_abs, tag = 'smem constant byte address 0x4 - core index']
  #allocation1 [shape = 'u32[144,128]{1,0:T(1,128)}', space=vmem, size = 0x12000, scoped, tag = 'internal scratch']
  #allocation2 [shape = 'f32[8,16,192]{2,1,0:T(8,128)}', space=vmem, size = 0x20000, scoped, tag = 'scratch operand']
  #allocation3 [shape = 'f32[8,16,64]{2,1,0:T(8,128)}', space=vmem, size = 0x10000, scoped, tag = 'scratch operand']
  %s0 = inlined_call_operand.hbm [shape: f32[2,8,16,32], index: 0, kind: input, shape index: {}]
  %s1 = inlined_call_operand.vmem [shape: f32[16,16], index: 1, kind: input, shape index: {}]
  %s2 = inlined_call_operand.vmem [shape: f32[1,32], index: 2, kind: input, shape index: {}]
  %s3 = inlined_call_operand.vmem [shape: f32[1,32], index: 3, kind: input, shape index: {}]
  %s4 = inlined_call_operand.vmem [shape: bf16[32,192], index: 4, kind: input, shape index: {}]
  %s5 = inlined_call_operand.vmem [shape: f32[1,192], index: 5, kind: input, shape index: {}]
  %s6 = inlined_call_operand.hbm [shape: f32[64,192], index: 6, kind: input, shape index: {}]
  %s7 = inlined_call_operand.vmem [shape: f32[1,192], index: 7, kind: input, shape index: {}]
  %s8 = inlined_call_operand.vmem [shape: bf16[64,16], index: 8, kind: input, shape index: {}]
  %s9 = inlined_call_operand.vmem [shape: f32[1,16], index: 9, kind: input, shape index: {}]
  %s10 = inlined_call_operand.vmem [shape: bf16[32,16], index: 10, kind: input, shape index: {}]
  %s11 = inlined_call_operand.vmem [shape: f32[1,16], index: 11, kind: input, shape index: {}]
  %s12 = inlined_call_operand.vmem [shape: f32[1,16], index: 12, kind: input, shape index: {}]
  %s13 = inlined_call_operand.vmem [shape: bf16[16,32], index: 13, kind: input, shape index: {}]
  %s14 = inlined_call_operand.vmem [shape: f32[1,32], index: 14, kind: input, shape index: {}]
  %s15 = inlined_call_operand.vmem [shape: f32[1,32], index: 15, kind: input, shape index: {}]
  %s16 = inlined_call_operand.hbm [shape: f32[2,8,16,32], index: 16, kind: output, shape index: {}]
  %s17 = sld [smem:[#allocation0]]
  $region105: #{tpu_custom_call.1} parent=0
    _
  %s19 = ssub.s32 1, %s17
  %s20 = scalar_select 0, %s19, %s17
  $region1: #{tpu_custom_call.1} parent=0
    #allocation4 [shape = 'u8[131072]{0}', space=vmem, size = 0x20000, scoped, tag = 'input window, operand 0']
    #allocation5 [shape = 's32[2]{0}', space=sflag, size = 0x8, scoped, tag = 'scoped memory for tpu_custom_call.1']
    #allocation6 [shape = 's32[2]{0}', space=sflag, size = 0x8, scoped, tag = 'scoped memory for tpu_custom_call.1']
    #allocation7 [shape = 'u8[65536]{0}', space=vmem, size = 0x10000, scoped, tag = 'input window, operand 6, single buffered']
    #allocation8 [shape = 's32[1]{0}', space=sflag, size = 0x4, scoped, tag = 'scoped memory for tpu_custom_call.1']
    #allocation9 [shape = 'u8[131072]{0}', space=vmem, size = 0x20000, scoped, tag = 'output window, operand 0']
    %21 = vsyncpa [#allocation5], 0
    %s22 = scalar_lea.sflag [#allocation5], 1
    %23 = vsyncpa %s22, 0
    %24 = vsyncpa [#allocation8], 0
    %25 = vsyncpa [#allocation6], 0
    %s26 = scalar_lea.sflag [#allocation6], 1
    %27 = vsyncpa %s26, 0
    loop: start=0, step=1, limit=4
    $region2: #{tpu_custom_call.1} parent=1 // loop_pre_header
      _
    $region3: #{tpu_custom_call.1} parent=1 // loop_header
      %s29 = sphi 0, %s33
      %p30 = scmp.ge.s32.totalorder %s29, 4
      %s39 = sphi 0, %s41
      %s42 = sphi 0, %s39
      %s43 = sphi 0, %s42
      %s59 = sphi 0, %s43
      %s63 = sphi 0, %s63
      %s65 = sphi 0, %s63
      %s66 = sphi 0, %s65
      %s80 = sphi 0, %s66
      %s84 = sphi 0, %s84
      %s86 = sphi 0, %s84
      %s87 = sphi 0, %s86
      %s101 = sphi 0, %s87
      %s105 = sphi 0, %s105
      %s107 = sphi 0, %s105
      %s108 = sphi 0, %s107
      %s122 = sphi 0, %s108
      %s126 = sphi 0, %s126
      %s128 = sphi 0, %s126
      %s129 = sphi 0, %s128
      %s143 = sphi 0, %s129
      %s147 = sphi 0, %s147
      %s149 = sphi 0, %s147
      %s150 = sphi 0, %s149
      %s164 = sphi 0, %s150
      %s168 = sphi 0, %s168
      %s170 = sphi 0, %s168
      %s171 = sphi 0, %s170
      %s185 = sphi 0, %s171
      %s189 = sphi 0, %s189
      %s191 = sphi 0, %s189
      %s192 = sphi 0, %s191
      %s206 = sphi 0, %s192
      %s210 = sphi 0, %s210
      %s212 = sphi 0, %s210
      %s213 = sphi 0, %s212
      %s227 = sphi 0, %s213
      %s231 = sphi 0, %s231
      %s233 = sphi 0, %s231
      %s234 = sphi 0, %s233
      %s248 = sphi 0, %s234
      %s252 = sphi 0, %s252
      %s254 = sphi 0, %s252
      %s255 = sphi 0, %s254
      %s269 = sphi 0, %s255
      %s273 = sphi 0, %s273
      %s275 = sphi 0, %s273
      %s276 = sphi 0, %s275
      %s290 = sphi 0, %s276
      %s294 = sphi 0, %s294
      %s296 = sphi 0, %s294
      %s297 = sphi 0, %s296
      %s311 = sphi 0, %s297
      %s315 = sphi 0, %s315
      %s317 = sphi 0, %s315
      %s318 = sphi 0, %s317
      %s332 = sphi 0, %s318
      %s336 = sphi 0, %s336
      %s338 = sphi 0, %s336
      %s339 = sphi 0, %s338
      %s353 = sphi 0, %s339
      %s357 = sphi 0, %s357
      %s359 = sphi 0, %s357
      %s360 = sphi 0, %s359
      %s374 = sphi 0, %s360
      %s380 = sphi 0, %s382
      %s383 = sphi 0, %s380
      %s384 = sphi 0, %s383
      %s400 = sphi 0, %s384
    $region4: #{tpu_custom_call.1} parent=1 // loop_header_branch
      %32 = sbr.rel (%p30) target = $region8
    $region5: #{tpu_custom_call.1} parent=1 // loop_body
      %s34 = ssub.s32 %s29, 1
      %s35 = ssub.s32 %s29, 2
      %s36 = sadd.s32 %s29, 1
      %s37 = ssub.s32 %s29, %s36
      %p38 = scmp.eq.s32.totalorder %s37, 0
      %s40 = sadd.s32 %s39, 1
      %s41 = scalar_select %p38, %s39, %s40
      %p44 = pneg %p38
      %p45 = scmp.eq.s32.totalorder %s29, 1
      %p46 = por %p44, %p45
      %p47 = scmp.ne.s32.totalorder %s39, %s42
      %p48 = scmp.eq.s32.totalorder %s29, 0
      %p49 = por %p47, %p48
      %p50 = scmp.ne.s32.totalorder %s39, %s42
      %p51 = scmp.eq.s32.totalorder %s34, 1
      %p52 = por %p50, %p51
      %p53 = scmp.ne.s32.totalorder %s42, %s43
      %p54 = scmp.eq.s32.totalorder %s34, 0
      %p55 = por %p53, %p54
      %p56 = scmp.ne.s32.totalorder %s42, %s43
      %p57 = scmp.eq.s32.totalorder %s35, 1
      %p58 = por %p56, %p57
      %p60 = scmp.ne.s32.totalorder %s43, %s59
      %p61 = scmp.eq.s32.totalorder %s35, 0
      %p62 = por %p60, %p61
      %s64 = sadd.s32 %s63, 1
      %p67 = scmp.eq.s32.totalorder %s29, 1
      %p68 = scmp.ne.s32.totalorder %s63, %s65
      %p69 = scmp.eq.s32.totalorder %s29, 0
      %p70 = por %p68, %p69
      %p71 = scmp.ne.s32.totalorder %s63, %s65
      %p72 = scmp.eq.s32.totalorder %s34, 1
      %p73 = por %p71, %p72
      %p74 = scmp.ne.s32.totalorder %s65, %s66
      %p75 = scmp.eq.s32.totalorder %s34, 0
      %p76 = por %p74, %p75
      %p77 = scmp.ne.s32.totalorder %s65, %s66
      %p78 = scmp.eq.s32.totalorder %s35, 1
      %p79 = por %p77, %p78
      %p81 = scmp.ne.s32.totalorder %s66, %s80
      %p82 = scmp.eq.s32.totalorder %s35, 0
      %p83 = por %p81, %p82
      %s85 = sadd.s32 %s84, 1
      %p88 = scmp.eq.s32.totalorder %s29, 1
      %p89 = scmp.ne.s32.totalorder %s84, %s86
      %p90 = scmp.eq.s32.totalorder %s29, 0
      %p91 = por %p89, %p90
      %p92 = scmp.ne.s32.totalorder %s84, %s86
      %p93 = scmp.eq.s32.totalorder %s34, 1
      %p94 = por %p92, %p93
      %p95 = scmp.ne.s32.totalorder %s86, %s87
      %p96 = scmp.eq.s32.totalorder %s34, 0
      %p97 = por %p95, %p96
      %p98 = scmp.ne.s32.totalorder %s86, %s87
      %p99 = scmp.eq.s32.totalorder %s35, 1
      %p100 = por %p98, %p99
      %p102 = scmp.ne.s32.totalorder %s87, %s101
      %p103 = scmp.eq.s32.totalorder %s35, 0
      %p104 = por %p102, %p103
      %s106 = sadd.s32 %s105, 1
      %p109 = scmp.eq.s32.totalorder %s29, 1
      %p110 = scmp.ne.s32.totalorder %s105, %s107
      %p111 = scmp.eq.s32.totalorder %s29, 0
      %p112 = por %p110, %p111
      %p113 = scmp.ne.s32.totalorder %s105, %s107
      %p114 = scmp.eq.s32.totalorder %s34, 1
      %p115 = por %p113, %p114
      %p116 = scmp.ne.s32.totalorder %s107, %s108
      %p117 = scmp.eq.s32.totalorder %s34, 0
      %p118 = por %p116, %p117
      %p119 = scmp.ne.s32.totalorder %s107, %s108
      %p120 = scmp.eq.s32.totalorder %s35, 1
      %p121 = por %p119, %p120
      %p123 = scmp.ne.s32.totalorder %s108, %s122
      %p124 = scmp.eq.s32.totalorder %s35, 0
      %p125 = por %p123, %p124
      %s127 = sadd.s32 %s126, 1
      %p130 = scmp.eq.s32.totalorder %s29, 1
      %p131 = scmp.ne.s32.totalorder %s126, %s128
      %p132 = scmp.eq.s32.totalorder %s29, 0
      %p133 = por %p131, %p132
      %p134 = scmp.ne.s32.totalorder %s126, %s128
      %p135 = scmp.eq.s32.totalorder %s34, 1
      %p136 = por %p134, %p135
      %p137 = scmp.ne.s32.totalorder %s128, %s129
      %p138 = scmp.eq.s32.totalorder %s34, 0
      %p139 = por %p137, %p138
      %p140 = scmp.ne.s32.totalorder %s128, %s129
      %p141 = scmp.eq.s32.totalorder %s35, 1
      %p142 = por %p140, %p141
      %p144 = scmp.ne.s32.totalorder %s129, %s143
      %p145 = scmp.eq.s32.totalorder %s35, 0
      %p146 = por %p144, %p145
      %s148 = sadd.s32 %s147, 1
      %p151 = scmp.eq.s32.totalorder %s29, 1
      %p152 = scmp.ne.s32.totalorder %s147, %s149
      %p153 = scmp.eq.s32.totalorder %s29, 0
      %p154 = por %p152, %p153
      %p155 = scmp.ne.s32.totalorder %s147, %s149
      %p156 = scmp.eq.s32.totalorder %s34, 1
      %p157 = por %p155, %p156
      %p158 = scmp.ne.s32.totalorder %s149, %s150
      %p159 = scmp.eq.s32.totalorder %s34, 0
      %p160 = por %p158, %p159
      %p161 = scmp.ne.s32.totalorder %s149, %s150
      %p162 = scmp.eq.s32.totalorder %s35, 1
      %p163 = por %p161, %p162
      %p165 = scmp.ne.s32.totalorder %s150, %s164
      %p166 = scmp.eq.s32.totalorder %s35, 0
      %p167 = por %p165, %p166
      %s169 = sadd.s32 %s168, 1
      %p172 = scmp.eq.s32.totalorder %s29, 1
      %p173 = scmp.ne.s32.totalorder %s168, %s170
      %p174 = scmp.eq.s32.totalorder %s29, 0
      %p175 = por %p173, %p174
      %p176 = scmp.ne.s32.totalorder %s168, %s170
      %p177 = scmp.eq.s32.totalorder %s34, 1
      %p178 = por %p176, %p177
      %p179 = scmp.ne.s32.totalorder %s170, %s171
      %p180 = scmp.eq.s32.totalorder %s34, 0
      %p181 = por %p179, %p180
      %p182 = scmp.ne.s32.totalorder %s170, %s171
      %p183 = scmp.eq.s32.totalorder %s35, 1
      %p184 = por %p182, %p183
      %p186 = scmp.ne.s32.totalorder %s171, %s185
      %p187 = scmp.eq.s32.totalorder %s35, 0
      %p188 = por %p186, %p187
      %s190 = sadd.s32 %s189, 1
      %p193 = scmp.eq.s32.totalorder %s29, 1
      %p194 = scmp.ne.s32.totalorder %s189, %s191
      %p195 = scmp.eq.s32.totalorder %s29, 0
      %p196 = por %p194, %p195
      %p197 = scmp.ne.s32.totalorder %s189, %s191
      %p198 = scmp.eq.s32.totalorder %s34, 1
      %p199 = por %p197, %p198
      %p200 = scmp.ne.s32.totalorder %s191, %s192
      %p201 = scmp.eq.s32.totalorder %s34, 0
      %p202 = por %p200, %p201
      %p203 = scmp.ne.s32.totalorder %s191, %s192
      %p204 = scmp.eq.s32.totalorder %s35, 1
      %p205 = por %p203, %p204
      %p207 = scmp.ne.s32.totalorder %s192, %s206
      %p208 = scmp.eq.s32.totalorder %s35, 0
      %p209 = por %p207, %p208
      %s211 = sadd.s32 %s210, 1
      %p214 = scmp.eq.s32.totalorder %s29, 1
      %p215 = scmp.ne.s32.totalorder %s210, %s212
      %p216 = scmp.eq.s32.totalorder %s29, 0
      %p217 = por %p215, %p216
      %p218 = scmp.ne.s32.totalorder %s210, %s212
      %p219 = scmp.eq.s32.totalorder %s34, 1
      %p220 = por %p218, %p219
      %p221 = scmp.ne.s32.totalorder %s212, %s213
      %p222 = scmp.eq.s32.totalorder %s34, 0
      %p223 = por %p221, %p222
      %p224 = scmp.ne.s32.totalorder %s212, %s213
      %p225 = scmp.eq.s32.totalorder %s35, 1
      %p226 = por %p224, %p225
      %p228 = scmp.ne.s32.totalorder %s213, %s227
      %p229 = scmp.eq.s32.totalorder %s35, 0
      %p230 = por %p228, %p229
      %s232 = sadd.s32 %s231, 1
      %p235 = scmp.eq.s32.totalorder %s29, 1
      %p236 = scmp.ne.s32.totalorder %s231, %s233
      %p237 = scmp.eq.s32.totalorder %s29, 0
      %p238 = por %p236, %p237
      %p239 = scmp.ne.s32.totalorder %s231, %s233
      %p240 = scmp.eq.s32.totalorder %s34, 1
      %p241 = por %p239, %p240
      %p242 = scmp.ne.s32.totalorder %s233, %s234
      %p243 = scmp.eq.s32.totalorder %s34, 0
      %p244 = por %p242, %p243
      %p245 = scmp.ne.s32.totalorder %s233, %s234
      %p246 = scmp.eq.s32.totalorder %s35, 1
      %p247 = por %p245, %p246
      %p249 = scmp.ne.s32.totalorder %s234, %s248
      %p250 = scmp.eq.s32.totalorder %s35, 0
      %p251 = por %p249, %p250
      %s253 = sadd.s32 %s252, 1
      %p256 = scmp.eq.s32.totalorder %s29, 1
      %p257 = scmp.ne.s32.totalorder %s252, %s254
      %p258 = scmp.eq.s32.totalorder %s29, 0
      %p259 = por %p257, %p258
      %p260 = scmp.ne.s32.totalorder %s252, %s254
      %p261 = scmp.eq.s32.totalorder %s34, 1
      %p262 = por %p260, %p261
      %p263 = scmp.ne.s32.totalorder %s254, %s255
      %p264 = scmp.eq.s32.totalorder %s34, 0
      %p265 = por %p263, %p264
      %p266 = scmp.ne.s32.totalorder %s254, %s255
      %p267 = scmp.eq.s32.totalorder %s35, 1
      %p268 = por %p266, %p267
      %p270 = scmp.ne.s32.totalorder %s255, %s269
      %p271 = scmp.eq.s32.totalorder %s35, 0
      %p272 = por %p270, %p271
      %s274 = sadd.s32 %s273, 1
      %p277 = scmp.eq.s32.totalorder %s29, 1
      %p278 = scmp.ne.s32.totalorder %s273, %s275
      %p279 = scmp.eq.s32.totalorder %s29, 0
      %p280 = por %p278, %p279
      %p281 = scmp.ne.s32.totalorder %s273, %s275
      %p282 = scmp.eq.s32.totalorder %s34, 1
      %p283 = por %p281, %p282
      %p284 = scmp.ne.s32.totalorder %s275, %s276
      %p285 = scmp.eq.s32.totalorder %s34, 0
      %p286 = por %p284, %p285
      %p287 = scmp.ne.s32.totalorder %s275, %s276
      %p288 = scmp.eq.s32.totalorder %s35, 1
      %p289 = por %p287, %p288
      %p291 = scmp.ne.s32.totalorder %s276, %s290
      %p292 = scmp.eq.s32.totalorder %s35, 0
      %p293 = por %p291, %p292
      %s295 = sadd.s32 %s294, 1
      %p298 = scmp.eq.s32.totalorder %s29, 1
      %p299 = scmp.ne.s32.totalorder %s294, %s296
      %p300 = scmp.eq.s32.totalorder %s29, 0
      %p301 = por %p299, %p300
      %p302 = scmp.ne.s32.totalorder %s294, %s296
      %p303 = scmp.eq.s32.totalorder %s34, 1
      %p304 = por %p302, %p303
      %p305 = scmp.ne.s32.totalorder %s296, %s297
      %p306 = scmp.eq.s32.totalorder %s34, 0
      %p307 = por %p305, %p306
      %p308 = scmp.ne.s32.totalorder %s296, %s297
      %p309 = scmp.eq.s32.totalorder %s35, 1
      %p310 = por %p308, %p309
      %p312 = scmp.ne.s32.totalorder %s297, %s311
      %p313 = scmp.eq.s32.totalorder %s35, 0
      %p314 = por %p312, %p313
      %s316 = sadd.s32 %s315, 1
      %p319 = scmp.eq.s32.totalorder %s29, 1
      %p320 = scmp.ne.s32.totalorder %s315, %s317
      %p321 = scmp.eq.s32.totalorder %s29, 0
      %p322 = por %p320, %p321
      %p323 = scmp.ne.s32.totalorder %s315, %s317
      %p324 = scmp.eq.s32.totalorder %s34, 1
      %p325 = por %p323, %p324
      %p326 = scmp.ne.s32.totalorder %s317, %s318
      %p327 = scmp.eq.s32.totalorder %s34, 0
      %p328 = por %p326, %p327
      %p329 = scmp.ne.s32.totalorder %s317, %s318
      %p330 = scmp.eq.s32.totalorder %s35, 1
      %p331 = por %p329, %p330
      %p333 = scmp.ne.s32.totalorder %s318, %s332
      %p334 = scmp.eq.s32.totalorder %s35, 0
      %p335 = por %p333, %p334
      %s337 = sadd.s32 %s336, 1
      %p340 = scmp.eq.s32.totalorder %s29, 1
      %p341 = scmp.ne.s32.totalorder %s336, %s338
      %p342 = scmp.eq.s32.totalorder %s29, 0
      %p343 = por %p341, %p342
      %p344 = scmp.ne.s32.totalorder %s336, %s338
      %p345 = scmp.eq.s32.totalorder %s34, 1
      %p346 = por %p344, %p345
      %p347 = scmp.ne.s32.totalorder %s338, %s339
      %p348 = scmp.eq.s32.totalorder %s34, 0
      %p349 = por %p347, %p348
      %p350 = scmp.ne.s32.totalorder %s338, %s339
      %p351 = scmp.eq.s32.totalorder %s35, 1
      %p352 = por %p350, %p351
      %p354 = scmp.ne.s32.totalorder %s339, %s353
      %p355 = scmp.eq.s32.totalorder %s35, 0
      %p356 = por %p354, %p355
      %s358 = sadd.s32 %s357, 1
      %p361 = scmp.eq.s32.totalorder %s29, 1
      %p362 = scmp.ne.s32.totalorder %s357, %s359
      %p363 = scmp.eq.s32.totalorder %s29, 0
      %p364 = por %p362, %p363
      %p365 = scmp.ne.s32.totalorder %s357, %s359
      %p366 = scmp.eq.s32.totalorder %s34, 1
      %p367 = por %p365, %p366
      %p368 = scmp.ne.s32.totalorder %s359, %s360
      %p369 = scmp.eq.s32.totalorder %s34, 0
      %p370 = por %p368, %p369
      %p371 = scmp.ne.s32.totalorder %s359, %s360
      %p372 = scmp.eq.s32.totalorder %s35, 1
      %p373 = por %p371, %p372
      %p375 = scmp.ne.s32.totalorder %s360, %s374
      %p376 = scmp.eq.s32.totalorder %s35, 0
      %p377 = por %p375, %p376
      %s378 = ssub.s32 %s29, %s36
      %p379 = scmp.eq.s32.totalorder %s378, 0
      %s381 = sadd.s32 %s380, 1
      %s382 = scalar_select %p379, %s380, %s381
      %p385 = pneg %p379
      %p386 = scmp.eq.s32.totalorder %s29, 1
      %p387 = por %p385, %p386
      %p388 = scmp.ne.s32.totalorder %s380, %s383
      %p389 = scmp.eq.s32.totalorder %s29, 0
      %p390 = por %p388, %p389
      %p391 = scmp.ne.s32.totalorder %s380, %s383
      %p392 = scmp.eq.s32.totalorder %s34, 1
      %p393 = por %p391, %p392
      %p394 = scmp.ne.s32.totalorder %s383, %s384
      %p395 = scmp.eq.s32.totalorder %s34, 0
      %p396 = por %p394, %p395
      %p397 = scmp.ne.s32.totalorder %s383, %s384
      %p398 = scmp.eq.s32.totalorder %s35, 1
      %p399 = por %p397, %p398
      %p401 = scmp.ne.s32.totalorder %s384, %s400
      %p402 = scmp.eq.s32.totalorder %s35, 0
      %p403 = por %p401, %p402
      %p404 = scmp.le.s32.totalorder 1, %s29
      %p405 = scmp.lt.s32.totalorder %s29, 3
      %p406 = pnand %p404, %p405
      %p407 = pneg %p406
      // Predicated region
      $region9: #{tpu_custom_call.1} parent=5 // pred_check
        _
      $region10: #{tpu_custom_call.1} parent=5 // pred_check_branch
        %409 = sbr.rel (%p406) target = $region12
      $region11: #{tpu_custom_call.1} parent=5 // pred_region
        %s410 = ssub.s32 %s29, 1
        // Predicated region
        $region13: #{tpu_custom_call.1} parent=11 // pred_check
          %p411 = pneg %p76
        $region14: #{tpu_custom_call.1} parent=11 // pred_check_branch
          %413 = sbr.rel (%p411) target = $region16
        $region15: #{tpu_custom_call.1} parent=11 // pred_region
          _
        $region16: #{tpu_custom_call.1} parent=11 // pred_fallthru
          _
        // Predicated region
        $region17: #{tpu_custom_call.1} parent=11 // pred_check
          %p414 = pneg %p97
        $region18: #{tpu_custom_call.1} parent=11 // pred_check_branch
          %416 = sbr.rel (%p414) target = $region20
        $region19: #{tpu_custom_call.1} parent=11 // pred_region
          _
        $region20: #{tpu_custom_call.1} parent=11 // pred_fallthru
          _
        // Predicated region
        $region21: #{tpu_custom_call.1} parent=11 // pred_check
          %p417 = pneg %p118
        $region22: #{tpu_custom_call.1} parent=11 // pred_check_branch
          %419 = sbr.rel (%p417) target = $region24
        $region23: #{tpu_custom_call.1} parent=11 // pred_region
          _
        $region24: #{tpu_custom_call.1} parent=11 // pred_fallthru
          _
        // Predicated region
        $region25: #{tpu_custom_call.1} parent=11 // pred_check
          %p420 = pneg %p139
        $region26: #{tpu_custom_call.1} parent=11 // pred_check_branch
          %422 = sbr.rel (%p420) target = $region28
        $region27: #{tpu_custom_call.1} parent=11 // pred_region
          _
        $region28: #{tpu_custom_call.1} parent=11 // pred_fallthru
          _
        // Predicated region
        $region29: #{tpu_custom_call.1} parent=11 // pred_check
          %p423 = pneg %p160
        $region30: #{tpu_custom_call.1} parent=11 // pred_check_branch
          %425 = sbr.rel (%p423) target = $region32
        $region31: #{tpu_custom_call.1} parent=11 // pred_region
          _
        $region32: #{tpu_custom_call.1} parent=11 // pred_fallthru
          _
        // Predicated region
        $region33: #{tpu_custom_call.1} parent=11 // pred_check
          %p426 = pneg %p181
        $region34: #{tpu_custom_call.1} parent=11 // pred_check_branch
          %428 = sbr.rel (%p426) target = $region36
        $region35: #{tpu_custom_call.1} parent=11 // pred_region
          %s430 = ssub.s32 2048, 2048
          %431 = vsyncadd [#allocation8], %s430
          %s432 = sshll.u32 [#allocation7], 4
          %s433 = int_to_ptr.vmem [resolvable:$true] %s432
          %438 = dma.hbm_to_vmem [thread:$0]  %s6, 2048, %s433, [#allocation8], 256, 256, 16
        $region36: #{tpu_custom_call.1} parent=11 // pred_fallthru
          _
        // Predicated region
        $region37: #{tpu_custom_call.1} parent=11 // pred_check
          %p439 = pneg %p202
        $region38: #{tpu_custom_call.1} parent=11 // pred_check_branch
          %441 = sbr.rel (%p439) target = $region40
        $region39: #{tpu_custom_call.1} parent=11 // pred_region
          _
        $region40: #{tpu_custom_call.1} parent=11 // pred_fallthru
          _
        // Predicated region
        $region41: #{tpu_custom_call.1} parent=11 // pred_check
          %p442 = pneg %p223
        $region42: #{tpu_custom_call.1} parent=11 // pred_check_branch
          %444 = sbr.rel (%p442) target = $region44
        $region43: #{tpu_custom_call.1} parent=11 // pred_region
          _
        $region44: #{tpu_custom_call.1} parent=11 // pred_fallthru
          _
        // Predicated region
        $region45: #{tpu_custom_call.1} parent=11 // pred_check
          %p445 = pneg %p244
        $region46: #{tpu_custom_call.1} parent=11 // pred_check_branch
          %447 = sbr.rel (%p445) target = $region48
        $region47: #{tpu_custom_call.1} parent=11 // pred_region
          _
        $region48: #{tpu_custom_call.1} parent=11 // pred_fallthru
          _
        // Predicated region
        $region49: #{tpu_custom_call.1} parent=11 // pred_check
          %p448 = pneg %p265
        $region50: #{tpu_custom_call.1} parent=11 // pred_check_branch
          %450 = sbr.rel (%p448) target = $region52
        $region51: #{tpu_custom_call.1} parent=11 // pred_region
          _
        $region52: #{tpu_custom_call.1} parent=11 // pred_fallthru
          _
        // Predicated region
        $region53: #{tpu_custom_call.1} parent=11 // pred_check
          %p451 = pneg %p286
        $region54: #{tpu_custom_call.1} parent=11 // pred_check_branch
          %453 = sbr.rel (%p451) target = $region56
        $region55: #{tpu_custom_call.1} parent=11 // pred_region
          _
        $region56: #{tpu_custom_call.1} parent=11 // pred_fallthru
          _
        // Predicated region
        $region57: #{tpu_custom_call.1} parent=11 // pred_check
          %p454 = pneg %p307
        $region58: #{tpu_custom_call.1} parent=11 // pred_check_branch
          %456 = sbr.rel (%p454) target = $region60
        $region59: #{tpu_custom_call.1} parent=11 // pred_region
          _
        $region60: #{tpu_custom_call.1} parent=11 // pred_fallthru
          _
        // Predicated region
        $region61: #{tpu_custom_call.1} parent=11 // pred_check
          %p457 = pneg %p328
        $region62: #{tpu_custom_call.1} parent=11 // pred_check_branch
          %459 = sbr.rel (%p457) target = $region64
        $region63: #{tpu_custom_call.1} parent=11 // pred_region
          _
        $region64: #{tpu_custom_call.1} parent=11 // pred_fallthru
          _
        // Predicated region
        $region65: #{tpu_custom_call.1} parent=11 // pred_check
          %p460 = pneg %p349
        $region66: #{tpu_custom_call.1} parent=11 // pred_check_branch
          %462 = sbr.rel (%p460) target = $region68
        $region67: #{tpu_custom_call.1} parent=11 // pred_region
          _
        $region68: #{tpu_custom_call.1} parent=11 // pred_fallthru
          _
        // Predicated region
        $region69: #{tpu_custom_call.1} parent=11 // pred_check
          %p463 = pneg %p370
        $region70: #{tpu_custom_call.1} parent=11 // pred_check_branch
          %465 = sbr.rel (%p463) target = $region72
        $region71: #{tpu_custom_call.1} parent=11 // pred_region
          _
        $region72: #{tpu_custom_call.1} parent=11 // pred_fallthru
          _
      $region12: #{tpu_custom_call.1} parent=5 // pred_fallthru
        _
      %p466 = scmp.lt.s32.totalorder %s29, 2
      // Predicated region
      $region73: #{tpu_custom_call.1} parent=5 // pred_check
        %p467 = pneg %p466
      $region74: #{tpu_custom_call.1} parent=5 // pred_check_branch
        %469 = sbr.rel (%p467) target = $region76
      $region75: #{tpu_custom_call.1} parent=5 // pred_region
        // Predicated region
        $region77: #{tpu_custom_call.1} parent=75 // pred_check
          %p470 = pneg %p49
        $region78: #{tpu_custom_call.1} parent=75 // pred_check_branch
          %472 = sbr.rel (%p470) target = $region80
        $region79: #{tpu_custom_call.1} parent=75 // pred_region
          %s473 = sand.u32 %s39, 1
          %s474 = scalar_lea.sflag [#allocation5], %s473
          %s475 = sand.u32 %s39, 1
          %s476 = smul.addr %s475, 128
          %s477 = scalar_lea.vmem [#allocation4], %s476
          %s479 = ssub.s32 2048, 2048
          %480 = vsyncadd %s474, %s479
          %s481 = smul.addr %s29, 16
          %s482 = smul.addr %s481, 128
          %s483 = scalar_lea.hbm %s0, %s482
          %s484 = sshll.u32 %s477, 4
          %s485 = int_to_ptr.vmem [resolvable:$true] %s484
          %490 = dma.hbm_to_vmem [thread:$0]  %s483, 2048, %s485, %s474, 128, 128, 8
        $region80: #{tpu_custom_call.1} parent=75 // pred_fallthru
          _
      $region76: #{tpu_custom_call.1} parent=5 // pred_fallthru
        _
      %p491 = scmp.le.s32.totalorder 1, %s29
      %p492 = scmp.lt.s32.totalorder %s29, 3
      %p493 = pnand %p491, %p492
      %p494 = pneg %p493
      // Predicated region
      $region81: #{tpu_custom_call.1} parent=5 // pred_check
        _
      $region82: #{tpu_custom_call.1} parent=5 // pred_check_branch
        %496 = sbr.rel (%p493) target = $region84
      $region83: #{tpu_custom_call.1} parent=5 // pred_region
        %s497 = ssub.s32 %s29, 1
        %s498 = sand.u32 %s42, 1
        %s499 = scalar_lea.sflag [#allocation5], %s498
        %s500 = sand.u32 %s42, 1
        %s501 = smul.addr %s500, 128
        %s502 = scalar_lea.vmem [#allocation4], %s501
        // Predicated region
        $region85: #{tpu_custom_call.1} parent=83 // pred_check
          %p503 = pneg %p55
        $region86: #{tpu_custom_call.1} parent=83 // pred_check_branch
          %505 = sbr.rel (%p503) target = $region88
        $region87: #{tpu_custom_call.1} parent=83 // pred_region
          %506 = dma.done %s499, 2048
        $region88: #{tpu_custom_call.1} parent=83 // pred_fallthru
          _
        // Predicated region
        $region89: #{tpu_custom_call.1} parent=83 // pred_check
          %p507 = pneg %p181
        $region90: #{tpu_custom_call.1} parent=83 // pred_check_branch
          %509 = sbr.rel (%p507) target = $region92
        $region91: #{tpu_custom_call.1} parent=83 // pred_region
          %510 = dma.done [#allocation8], 2048
        $region92: #{tpu_custom_call.1} parent=83 // pred_fallthru
          _
        %s511 = sand.u32 %s42, 1
        %s512 = scalar_lea.sflag [#allocation5], %s511
        %s513 = sand.u32 %s42, 1
        %s514 = smul.addr %s513, 128
        %s515 = scalar_lea.vmem [#allocation4], %s514
        %p516 = pneg %p55
        %p517 = pneg %p52
        %p518 = pneg %p76
        %p519 = pneg %p73
        %p520 = pneg %p97
        %p521 = pneg %p94
        %p522 = pneg %p118
        %p523 = pneg %p115
        %p524 = pneg %p139
        %p525 = pneg %p136
        %p526 = pneg %p160
        %p527 = pneg %p157
        %p528 = pneg %p181
        %p529 = pneg %p178
        %p530 = pneg %p202
        %p531 = pneg %p199
        %p532 = pneg %p223
        %p533 = pneg %p220
        %p534 = pneg %p244
        %p535 = pneg %p241
        %p536 = pneg %p265
        %p537 = pneg %p262
        %p538 = pneg %p286
        %p539 = pneg %p283
        %p540 = pneg %p307
        %p541 = pneg %p304
        %p542 = pneg %p328
        %p543 = pneg %p325
        %p544 = pneg %p349
        %p545 = pneg %p346
        %p546 = pneg %p370
        %p547 = pneg %p367
        %p548 = pneg %p396
        %p549 = pneg %p393
        %s550 = sand.u32 %s383, 1
        %s551 = scalar_lea.sflag [#allocation6], %s550
        %s552 = sand.u32 %s383, 1
        %s553 = smul.addr %s552, 128
        %s554 = scalar_lea.vmem [#allocation9], %s553
        %v556 = vld [vmem:[%s502] sm:$0xff]
        %v557 = vld [vmem:[%s502 + $0x8] sm:$0xff]
        %v558 = vld [vmem:[%s502 + $0x10] sm:$0xff]
        %v559 = vld [vmem:[%s502 + $0x18] sm:$0xff]
        %v560 = vld [vmem:[%s502 + $0x20] sm:$0xff]
        %v561 = vld [vmem:[%s502 + $0x28] sm:$0xff]
        %v562 = vld [vmem:[%s502 + $0x30] sm:$0xff]
        %v563 = vld [vmem:[%s502 + $0x38] sm:$0xff]
        %v564 = vld [vmem:[%s502 + $0x40] sm:$0xff]
        %v565 = vld [vmem:[%s502 + $0x48] sm:$0xff]
        %v566 = vld [vmem:[%s502 + $0x50] sm:$0xff]
        %v567 = vld [vmem:[%s502 + $0x58] sm:$0xff]
        %v568 = vld [vmem:[%s502 + $0x60] sm:$0xff]
        %v569 = vld [vmem:[%s502 + $0x68] sm:$0xff]
        %v570 = vld [vmem:[%s502 + $0x70] sm:$0xff]
        %v571 = vld [vmem:[%s502 + $0x78] sm:$0xff]
        %vm572 = vcmask 261120
        %v573 = vsel %vm572, %v556, 0.0
        %574 = vadd.xlane.f32.xlu0 %v573
        %v575 = vpop.xlane.xlu0 %574
        %v576 = vsel %vm572, %v557, 0.0
        %577 = vadd.xlane.f32.xlu0 %v576
        %v578 = vpop.xlane.xlu0 %577
        %v579 = vsel %vm572, %v558, 0.0
        %580 = vadd.xlane.f32.xlu0 %v579
        %v581 = vpop.xlane.xlu0 %580
        %v582 = vsel %vm572, %v559, 0.0
        %583 = vadd.xlane.f32.xlu0 %v582
        %v584 = vpop.xlane.xlu0 %583
        %v585 = vsel %vm572, %v560, 0.0
        %586 = vadd.xlane.f32.xlu0 %v585
        %v587 = vpop.xlane.xlu0 %586
        %v588 = vsel %vm572, %v561, 0.0
        %589 = vadd.xlane.f32.xlu0 %v588
        %v590 = vpop.xlane.xlu0 %589
        %v591 = vsel %vm572, %v562, 0.0
        %592 = vadd.xlane.f32.xlu0 %v591
        %v593 = vpop.xlane.xlu0 %592
        %v594 = vsel %vm572, %v563, 0.0
        %595 = vadd.xlane.f32.xlu0 %v594
        %v596 = vpop.xlane.xlu0 %595
        %v597 = vsel %vm572, %v564, 0.0
        %598 = vadd.xlane.f32.xlu0 %v597
        %v599 = vpop.xlane.xlu0 %598
        %v600 = vsel %vm572, %v565, 0.0
        %601 = vadd.xlane.f32.xlu0 %v600
        %v602 = vpop.xlane.xlu0 %601
        %v603 = vsel %vm572, %v566, 0.0
        %604 = vadd.xlane.f32.xlu0 %v603
        %v605 = vpop.xlane.xlu0 %604
        %v606 = vsel %vm572, %v567, 0.0
        %607 = vadd.xlane.f32.xlu0 %v606
        %v608 = vpop.xlane.xlu0 %607
        %v609 = vsel %vm572, %v568, 0.0
        %610 = vadd.xlane.f32.xlu0 %v609
        %v611 = vpop.xlane.xlu0 %610
        %v612 = vsel %vm572, %v569, 0.0
        %613 = vadd.xlane.f32.xlu0 %v612
        %v614 = vpop.xlane.xlu0 %613
        %v615 = vsel %vm572, %v570, 0.0
        %616 = vadd.xlane.f32.xlu0 %v615
        %v617 = vpop.xlane.xlu0 %616
        %v618 = vsel %vm572, %v571, 0.0
        %619 = vadd.xlane.f32.xlu0 %v618
        %v620 = vpop.xlane.xlu0 %619
        %v621 = vrcp.pop 32.0
        %v622 = vmul.f32 %v575, %v621
        %v623 = vmul.f32 %v578, %v621
        %v624 = vmul.f32 %v581, %v621
        %v625 = vmul.f32 %v584, %v621
        %v626 = vmul.f32 %v587, %v621
        %v627 = vmul.f32 %v590, %v621
        %v628 = vmul.f32 %v593, %v621
        %v629 = vmul.f32 %v596, %v621
        %v630 = vmul.f32 %v599, %v621
        %v631 = vmul.f32 %v602, %v621
        %v632 = vmul.f32 %v605, %v621
        %v633 = vmul.f32 %v608, %v621
        %v634 = vmul.f32 %v611, %v621
        %v635 = vmul.f32 %v614, %v621
        %v636 = vmul.f32 %v617, %v621
        %v637 = vmul.f32 %v620, %v621
        %v638 = vsub.f32 %v556, %v622
        %v639 = vsub.f32 %v557, %v623
        %v640 = vsub.f32 %v558, %v624
        %v641 = vsub.f32 %v559, %v625
        %v642 = vsub.f32 %v560, %v626
        %v643 = vsub.f32 %v561, %v627
        %v644 = vsub.f32 %v562, %v628
        %v645 = vsub.f32 %v563, %v629
        %v646 = vsub.f32 %v564, %v630
        %v647 = vsub.f32 %v565, %v631
        %v648 = vsub.f32 %v566, %v632
        %v649 = vsub.f32 %v567, %v633
        %v650 = vsub.f32 %v568, %v634
        %v651 = vsub.f32 %v569, %v635
        %v652 = vsub.f32 %v570, %v636
        %v653 = vsub.f32 %v571, %v637
        %v654 = vmul.f32 %v638, %v638
        %v655 = vmul.f32 %v639, %v639
        %v656 = vmul.f32 %v640, %v640
        %v657 = vmul.f32 %v641, %v641
        %v658 = vmul.f32 %v642, %v642
        %v659 = vmul.f32 %v643, %v643
        %v660 = vmul.f32 %v644, %v644
        %v661 = vmul.f32 %v645, %v645
        %v662 = vmul.f32 %v646, %v646
        %v663 = vmul.f32 %v647, %v647
        %v664 = vmul.f32 %v648, %v648
        %v665 = vmul.f32 %v649, %v649
        %v666 = vmul.f32 %v650, %v650
        %v667 = vmul.f32 %v651, %v651
        %v668 = vmul.f32 %v652, %v652
        %v669 = vmul.f32 %v653, %v653
        %v670 = vsel %vm572, %v654, 0.0
        %671 = vadd.xlane.f32.xlu0 %v670
        %v672 = vpop.xlane.xlu0 %671
        %v673 = vsel %vm572, %v655, 0.0
        %674 = vadd.xlane.f32.xlu0 %v673
        %v675 = vpop.xlane.xlu0 %674
        %v676 = vsel %vm572, %v656, 0.0
        %677 = vadd.xlane.f32.xlu0 %v676
        %v678 = vpop.xlane.xlu0 %677
        %v679 = vsel %vm572, %v657, 0.0
        %680 = vadd.xlane.f32.xlu0 %v679
        %v681 = vpop.xlane.xlu0 %680
        %v682 = vsel %vm572, %v658, 0.0
        %683 = vadd.xlane.f32.xlu0 %v682
        %v684 = vpop.xlane.xlu0 %683
        %v685 = vsel %vm572, %v659, 0.0
        %686 = vadd.xlane.f32.xlu0 %v685
        %v687 = vpop.xlane.xlu0 %686
        %v688 = vsel %vm572, %v660, 0.0
        %689 = vadd.xlane.f32.xlu0 %v688
        %v690 = vpop.xlane.xlu0 %689
        %v691 = vsel %vm572, %v661, 0.0
        %692 = vadd.xlane.f32.xlu0 %v691
        %v693 = vpop.xlane.xlu0 %692
        %v694 = vsel %vm572, %v662, 0.0
        %695 = vadd.xlane.f32.xlu0 %v694
        %v696 = vpop.xlane.xlu0 %695
        %v697 = vsel %vm572, %v663, 0.0
        %698 = vadd.xlane.f32.xlu0 %v697
        %v699 = vpop.xlane.xlu0 %698
        %v700 = vsel %vm572, %v664, 0.0
        %701 = vadd.xlane.f32.xlu0 %v700
        %v702 = vpop.xlane.xlu0 %701
        %v703 = vsel %vm572, %v665, 0.0
        %704 = vadd.xlane.f32.xlu0 %v703
        %v705 = vpop.xlane.xlu0 %704
        %v706 = vsel %vm572, %v666, 0.0
        %707 = vadd.xlane.f32.xlu0 %v706
        %v708 = vpop.xlane.xlu0 %707
        %v709 = vsel %vm572, %v667, 0.0
        %710 = vadd.xlane.f32.xlu0 %v709
        %v711 = vpop.xlane.xlu0 %710
        %v712 = vsel %vm572, %v668, 0.0
        %713 = vadd.xlane.f32.xlu0 %v712
        %v714 = vpop.xlane.xlu0 %713
        %v715 = vsel %vm572, %v669, 0.0
        %716 = vadd.xlane.f32.xlu0 %v715
        %v717 = vpop.xlane.xlu0 %716
        %v718 = vmul.f32 %v672, %v621
        %v719 = vmul.f32 %v675, %v621
        %v720 = vmul.f32 %v678, %v621
        %v721 = vmul.f32 %v681, %v621
        %v722 = vmul.f32 %v684, %v621
        %v723 = vmul.f32 %v687, %v621
        %v724 = vmul.f32 %v690, %v621
        %v725 = vmul.f32 %v693, %v621
        %v726 = vmul.f32 %v696, %v621
        %v727 = vmul.f32 %v699, %v621
        %v728 = vmul.f32 %v702, %v621
        %v729 = vmul.f32 %v705, %v621
        %v730 = vmul.f32 %v708, %v621
        %v731 = vmul.f32 %v711, %v621
        %v732 = vmul.f32 %v714, %v621
        %v733 = vmul.f32 %v717, %v621
        %v734 = vadd.f32 %v718, 1e-05
        %v735 = vadd.f32 %v719, 1e-05
        %v736 = vadd.f32 %v720, 1e-05
        %v737 = vadd.f32 %v721, 1e-05
        %v738 = vadd.f32 %v722, 1e-05
        %v739 = vadd.f32 %v723, 1e-05
        %v740 = vadd.f32 %v724, 1e-05
        %v741 = vadd.f32 %v725, 1e-05
        %v742 = vadd.f32 %v726, 1e-05
        %v743 = vadd.f32 %v727, 1e-05
        %v744 = vadd.f32 %v728, 1e-05
        %v745 = vadd.f32 %v729, 1e-05
        %v746 = vadd.f32 %v730, 1e-05
        %v747 = vadd.f32 %v731, 1e-05
        %v748 = vadd.f32 %v732, 1e-05
        %v749 = vadd.f32 %v733, 1e-05
        %v750 = vrsqrt.pop %v734
        %v751 = vrsqrt.pop %v735
        %v752 = vrsqrt.pop %v736
        %v753 = vrsqrt.pop %v737
        %v754 = vrsqrt.pop %v738
        %v755 = vrsqrt.pop %v739
        %v756 = vrsqrt.pop %v740
        %v757 = vrsqrt.pop %v741
        %v758 = vrsqrt.pop %v742
        %v759 = vrsqrt.pop %v743
        %v760 = vrsqrt.pop %v744
        %v761 = vrsqrt.pop %v745
        %v762 = vrsqrt.pop %v746
        %v763 = vrsqrt.pop %v747
        %v764 = vrsqrt.pop %v748
        %v765 = vrsqrt.pop %v749
        %v766 = vmul.f32 %v638, %v750
        %v767 = vmul.f32 %v639, %v751
        %v768 = vmul.f32 %v640, %v752
        %v769 = vmul.f32 %v641, %v753
        %v770 = vmul.f32 %v642, %v754
        %v771 = vmul.f32 %v643, %v755
        %v772 = vmul.f32 %v644, %v756
        %v773 = vmul.f32 %v645, %v757
        %v774 = vmul.f32 %v646, %v758
        %v775 = vmul.f32 %v647, %v759
        %v776 = vmul.f32 %v648, %v760
        %v777 = vmul.f32 %v649, %v761
        %v778 = vmul.f32 %v650, %v762
        %v779 = vmul.f32 %v651, %v763
        %v780 = vmul.f32 %v652, %v764
        %v781 = vmul.f32 %v653, %v765
        %v782 = vld [vmem:[%s2] sm:$0x1]
        %v784 = vlaneseq
        %v785 = vshrl.u32 %v784, 7
        %v786 = vsub.s32 0, %v785
        %v787 = vrot.slane %v782, %v786
        %v789 = vmul.f32 %v766, %v787
        %v790 = vmul.f32 %v767, %v787
        %v791 = vmul.f32 %v768, %v787
        %v792 = vmul.f32 %v769, %v787
        %v793 = vmul.f32 %v770, %v787
        %v794 = vmul.f32 %v771, %v787
        %v795 = vmul.f32 %v772, %v787
        %v796 = vmul.f32 %v773, %v787
        %v797 = vmul.f32 %v774, %v787
        %v798 = vmul.f32 %v775, %v787
        %v799 = vmul.f32 %v776, %v787
        %v800 = vmul.f32 %v777, %v787
        %v801 = vmul.f32 %v778, %v787
        %v802 = vmul.f32 %v779, %v787
        %v803 = vmul.f32 %v780, %v787
        %v804 = vmul.f32 %v781, %v787
        %v805 = vld [vmem:[%s3] sm:$0x1]
        %v807 = vlaneseq
        %v808 = vshrl.u32 %v807, 7
        %v809 = vsub.s32 0, %v808
        %v810 = vrot.slane %v805, %v809
        %v812 = vadd.f32 %v789, %v810
        %v813 = vadd.f32 %v790, %v810
        %v814 = vadd.f32 %v791, %v810
        %v815 = vadd.f32 %v792, %v810
        %v816 = vadd.f32 %v793, %v810
        %v817 = vadd.f32 %v794, %v810
        %v818 = vadd.f32 %v795, %v810
        %v819 = vadd.f32 %v796, %v810
        %v820 = vadd.f32 %v797, %v810
        %v821 = vadd.f32 %v798, %v810
        %v822 = vadd.f32 %v799, %v810
        %v823 = vadd.f32 %v800, %v810
        %v824 = vadd.f32 %v801, %v810
        %v825 = vadd.f32 %v802, %v810
        %v826 = vadd.f32 %v803, %v810
        %v827 = vadd.f32 %v804, %v810
        %v828 = vpack.c.bf16 %v813, %v812
        %v829 = vpack.c.bf16 %v815, %v814
        %v830 = vpack.c.bf16 %v817, %v816
        %v831 = vpack.c.bf16 %v819, %v818
        %v832 = vpack.c.bf16 %v821, %v820
        %v833 = vpack.c.bf16 %v823, %v822
        %v834 = vpack.c.bf16 %v825, %v824
        %v835 = vpack.c.bf16 %v827, %v826
        %v836 = vld [vmem:[%s4] sm:$0xff]
        %v837 = vld [vmem:[%s4 + $0x8] sm:$0xff]
        %v838 = vld [vmem:[%s4 + $0x10] sm:$0xff]
        %v839 = vld [vmem:[%s4 + $0x18] sm:$0xff]
        %v840 = vld [vmem:[%s5] sm:$0x3]
        %v842 = vlaneseq
        %v843 = vshrl.u32 %v842, 7
        %v844 = vsub.s32 0, %v843
        %v845 = vrot.slane %v840, %v844
        %v846 = vlaneseq
        %v847 = vshrl.u32 %v846, 7
        %v848 = vsub.s32 1, %v847
        %v849 = vrot.slane %v840, %v848
        %v856 = vunpack.c.l.b16 %v836
        %v857 = vunpack.c.h.b16 %v836
        %v858 = vunpack.c.l.b16 %v837
        %v859 = vunpack.c.h.b16 %v837
        %v860 = vunpack.c.l.b16 %v838
        %v861 = vunpack.c.h.b16 %v838
        %v862 = vunpack.c.l.b16 %v839
        %v863 = vunpack.c.h.b16 %v839
        %v864 = vpack.c.b16 %v858, %v856
        %v865 = vpack.c.b16 %v859, %v857
        %v866 = vpack.c.b16 %v862, %v860
        %v867 = vpack.c.b16 %v863, %v861
        %v873 = vsel %vm572, %v828, 0
        %v876 = vsel %vm572, %v829, 0
        %v879 = vsel %vm572, %v830, 0
        %v882 = vsel %vm572, %v831, 0
        %v885 = vsel %vm572, %v832, 0
        %v888 = vsel %vm572, %v833, 0
        %v891 = vsel %vm572, %v834, 0
        %v894 = vsel %vm572, %v835, 0
        %896 = vmatprep.subr.bf16.mxu0 %v865
        %897 = vmatpush1.bf16.msra.mxu0 %v864
        %898 = vmatprep.subr.bf16.mxu0 %v867
        %899 = vmatpush1.bf16.msra.mxu0 %v866
        %900 = vmatprep.subr.bf16.mxu0 0
        %901 = vmatpush1.bf16.msra.mxu0 0
        %902 = vmatprep.subr.bf16.mxu0 0
        %903 = vmatpush1.bf16.msra.mxu0 0
        %904 = vmatprep.subr.bf16.mxu0 0
        %905 = vmatpush1.bf16.msra.mxu0 0
        %906 = vmatprep.subr.bf16.mxu0 0
        %907 = vmatpush1.bf16.msra.mxu0 0
        %908 = vmatprep.subr.bf16.mxu0 0
        %909 = vmatpush1.bf16.msra.mxu0 0
        %910 = vmatprep.subr.bf16.mxu0 0
        %911 = vmatpush1.bf16.msra.mxu0 0
        %912 = vmatprep.subr.bf16.mxu0 0
        %913 = vmatpush1.bf16.msra.mxu0 0
        %914 = vmatprep.subr.bf16.mxu0 0
        %915 = vmatpush1.bf16.msra.mxu0 0
        %916 = vmatprep.subr.bf16.mxu0 0
        %917 = vmatpush1.bf16.msra.mxu0 0
        %918 = vmatprep.subr.bf16.mxu0 0
        %919 = vmatpush1.bf16.msra.mxu0 0
        %920 = vmatprep.subr.bf16.mxu0 0
        %921 = vmatpush1.bf16.msra.mxu0 0
        %922 = vmatprep.subr.bf16.mxu0 0
        %923 = vmatpush1.bf16.msra.mxu0 0
        %924 = vmatprep.subr.bf16.mxu0 0
        %925 = vmatpush1.bf16.msra.mxu0 0
        %926 = vmatprep.subr.bf16.mxu0 0
        %927 = vmatpush1.bf16.msra.mxu0 0
        %928 = vmatprep.mubr.bf16.mxu0 0
        %929 = vmatmul.mubr.bf16.gmra.mrb[0].mxu0 %v873
        %v930 = vpop.f32.mrb[0].mxu0
        %v931 = vadd.f32 %v845, %v930
        %v932 = vpop.f32.mrb[0].mxu0
        %v933 = vadd.f32 %v849, %v932
        %v934 = vpop.f32.mrb[0].mxu0
        %v935 = vadd.f32 %v845, %v934
        %v936 = vpop.f32.mrb[0].mxu0
        %v937 = vadd.f32 %v849, %v936
        %938 = vmatprep.mubr.bf16.mxu0 0
        %939 = vmatmul.mubr.bf16.gmra.mrb[0].mxu0 %v876
        %v940 = vpop.f32.mrb[0].mxu0
        %v941 = vadd.f32 %v845, %v940
        %v942 = vpop.f32.mrb[0].mxu0
        %v943 = vadd.f32 %v849, %v942
        %v944 = vpop.f32.mrb[0].mxu0
        %v945 = vadd.f32 %v845, %v944
        %v946 = vpop.f32.mrb[0].mxu0
        %v947 = vadd.f32 %v849, %v946
        %948 = vmatprep.mubr.bf16.mxu0 0
        %949 = vmatmul.mubr.bf16.gmra.mrb[0].mxu0 %v879
        %v950 = vpop.f32.mrb[0].mxu0
        %v951 = vadd.f32 %v845, %v950
        %v952 = vpop.f32.mrb[0].mxu0
        %v953 = vadd.f32 %v849, %v952
        %v954 = vpop.f32.mrb[0].mxu0
        %v955 = vadd.f32 %v845, %v954
        %v956 = vpop.f32.mrb[0].mxu0
        %v957 = vadd.f32 %v849, %v956
        %958 = vmatprep.mubr.bf16.mxu0 0
        %959 = vmatmul.mubr.bf16.gmra.mrb[0].mxu0 %v882
        %v960 = vpop.f32.mrb[0].mxu0
        %v961 = vadd.f32 %v845, %v960
        %v962 = vpop.f32.mrb[0].mxu0
        %v963 = vadd.f32 %v849, %v962
        %v964 = vpop.f32.mrb[0].mxu0
        %v965 = vadd.f32 %v845, %v964
        %v966 = vpop.f32.mrb[0].mxu0
        %v967 = vadd.f32 %v849, %v966
        %968 = vmatprep.mubr.bf16.mxu0 0
        %969 = vmatmul.mubr.bf16.gmra.mrb[0].mxu0 %v885
        %v970 = vpop.f32.mrb[0].mxu0
        %v971 = vadd.f32 %v845, %v970
        %v972 = vpop.f32.mrb[0].mxu0
        %v973 = vadd.f32 %v849, %v972
        %v974 = vpop.f32.mrb[0].mxu0
        %v975 = vadd.f32 %v845, %v974
        %v976 = vpop.f32.mrb[0].mxu0
        %v977 = vadd.f32 %v849, %v976
        %978 = vmatprep.mubr.bf16.mxu0 0
        %979 = vmatmul.mubr.bf16.gmra.mrb[0].mxu0 %v888
        %v980 = vpop.f32.mrb[0].mxu0
        %v981 = vadd.f32 %v845, %v980
        %v982 = vpop.f32.mrb[0].mxu0
        %v983 = vadd.f32 %v849, %v982
        %v984 = vpop.f32.mrb[0].mxu0
        %v985 = vadd.f32 %v845, %v984
        %v986 = vpop.f32.mrb[0].mxu0
        %v987 = vadd.f32 %v849, %v986
        %988 = vmatprep.mubr.bf16.mxu0 0
        %989 = vmatmul.mubr.bf16.gmra.mrb[0].mxu0 %v891
        %v990 = vpop.f32.mrb[0].mxu0
        %v991 = vadd.f32 %v845, %v990
        %v992 = vpop.f32.mrb[0].mxu0
        %v993 = vadd.f32 %v849, %v992
        %v994 = vpop.f32.mrb[0].mxu0
        %v995 = vadd.f32 %v845, %v994
        %v996 = vpop.f32.mrb[0].mxu0
        %v997 = vadd.f32 %v849, %v996
        %998 = vmatprep.mubr.bf16.mxu0 0
        %999 = vmatmul.mubr.bf16.gmra.mrb[0].mxu0 %v894
        %v1000 = vpop.f32.mrb[0].mxu0
        %v1001 = vadd.f32 %v845, %v1000
        %v1002 = vpop.f32.mrb[0].mxu0
        %v1003 = vadd.f32 %v849, %v1002
        %v1004 = vpop.f32.mrb[0].mxu0
        %v1005 = vadd.f32 %v845, %v1004
        %v1006 = vpop.f32.mrb[0].mxu0
        %v1007 = vadd.f32 %v849, %v1006
        %1008 = vdwg.mxu0
        %1009 = vst [vmem:[#allocation2] sm:$0xff] %v931
        %vm1010 = vcmask 523264
        %1011 = vst.msk [vmem:[#allocation2 + $0x8] sm:$0xff] %vm1010, %v933
        %1012 = vst [vmem:[#allocation2 + $0x10] sm:$0xff] %v935
        %1013 = vst.msk [vmem:[#allocation2 + $0x18] sm:$0xff] %vm1010, %v937
        %1014 = vst [vmem:[#allocation2 + $0x20] sm:$0xff] %v941
        %1015 = vst.msk [vmem:[#allocation2 + $0x28] sm:$0xff] %vm1010, %v943
        %1016 = vst [vmem:[#allocation2 + $0x30] sm:$0xff] %v945
        %1017 = vst.msk [vmem:[#allocation2 + $0x38] sm:$0xff] %vm1010, %v947
        %1018 = vst [vmem:[#allocation2 + $0x40] sm:$0xff] %v951
        %1019 = vst.msk [vmem:[#allocation2 + $0x48] sm:$0xff] %vm1010, %v953
        %1020 = vst [vmem:[#allocation2 + $0x50] sm:$0xff] %v955
        %1021 = vst.msk [vmem:[#allocation2 + $0x58] sm:$0xff] %vm1010, %v957
        %1022 = vst [vmem:[#allocation2 + $0x60] sm:$0xff] %v961
        %1023 = vst.msk [vmem:[#allocation2 + $0x68] sm:$0xff] %vm1010, %v963
        %1024 = vst [vmem:[#allocation2 + $0x70] sm:$0xff] %v965
        %1025 = vst.msk [vmem:[#allocation2 + $0x78] sm:$0xff] %vm1010, %v967
        %1026 = vst [vmem:[#allocation2 + $0x80] sm:$0xff] %v971
        %1027 = vst.msk [vmem:[#allocation2 + $0x88] sm:$0xff] %vm1010, %v973
        %1028 = vst [vmem:[#allocation2 + $0x90] sm:$0xff] %v975
        %1029 = vst.msk [vmem:[#allocation2 + $0x98] sm:$0xff] %vm1010, %v977
        %1030 = vst [vmem:[#allocation2 + $0xa0] sm:$0xff] %v981
        %1031 = vst.msk [vmem:[#allocation2 + $0xa8] sm:$0xff] %vm1010, %v983
        %1032 = vst [vmem:[#allocation2 + $0xb0] sm:$0xff] %v985
        %1033 = vst.msk [vmem:[#allocation2 + $0xb8] sm:$0xff] %vm1010, %v987
        %1034 = vst [vmem:[#allocation2 + $0xc0] sm:$0xff] %v991
        %1035 = vst.msk [vmem:[#allocation2 + $0xc8] sm:$0xff] %vm1010, %v993
        %1036 = vst [vmem:[#allocation2 + $0xd0] sm:$0xff] %v995
        %1037 = vst.msk [vmem:[#allocation2 + $0xd8] sm:$0xff] %vm1010, %v997
        %1038 = vst [vmem:[#allocation2 + $0xe0] sm:$0xff] %v1001
        %1039 = vst.msk [vmem:[#allocation2 + $0xe8] sm:$0xff] %vm1010, %v1003
        %1040 = vst [vmem:[#allocation2 + $0xf0] sm:$0xff] %v1005
        %1041 = vst.msk [vmem:[#allocation2 + $0xf8] sm:$0xff] %vm1010, %v1007
        %v1042 = vld [vmem:[#allocation7] sm:$0xff]
        %v1043 = vld [vmem:[#allocation7 + $0x8] sm:$0xff]
        %v1044 = vld [vmem:[#allocation7 + $0x10] sm:$0xff]
        %v1045 = vld [vmem:[#allocation7 + $0x18] sm:$0xff]
        %v1046 = vld [vmem:[#allocation7 + $0x20] sm:$0xff]
        %v1047 = vld [vmem:[#allocation7 + $0x28] sm:$0xff]
        %v1048 = vld [vmem:[#allocation7 + $0x30] sm:$0xff]
        %v1049 = vld [vmem:[#allocation7 + $0x38] sm:$0xff]
        %v1050 = vld [vmem:[#allocation7 + $0x40] sm:$0xff]
        %v1051 = vld [vmem:[#allocation7 + $0x48] sm:$0xff]
        %v1052 = vld [vmem:[#allocation7 + $0x50] sm:$0xff]
        %v1053 = vld [vmem:[#allocation7 + $0x58] sm:$0xff]
        %v1054 = vld [vmem:[#allocation7 + $0x60] sm:$0xff]
        %v1055 = vld [vmem:[#allocation7 + $0x68] sm:$0xff]
        %v1056 = vld [vmem:[#allocation7 + $0x70] sm:$0xff]
        %v1057 = vld [vmem:[#allocation7 + $0x78] sm:$0xff]
        %v1058 = vld [vmem:[%s7] sm:$0x3]
        %v1059 = vld [vmem:[#allocation2] sm:$0xff]
        %v1060 = vld [vmem:[#allocation2 + $0x8] sm:$0xff]
        %v1061 = vld [vmem:[#allocation2 + $0x10] sm:$0xff]
        %v1062 = vld [vmem:[#allocation2 + $0x18] sm:$0xff]
        %v1064 = vlaneseq
        %v1065 = vshrl.u32 %v1064, 7
        %v1066 = vsub.s32 0, %v1065
        %v1067 = vrot.slane %v1058, %v1066
        %v1068 = vlaneseq
        %v1069 = vshrl.u32 %v1068, 7
        %v1070 = vsub.s32 1, %v1069
        %v1071 = vrot.slane %v1058, %v1070
        %v1075 = vsel %vm1010, 0.0, 0
        %1077 = vmatprep.subr.mxu0 %v1043
        %1078 = vmatpush1.msra.mxu0 %v1042
        %1079 = vmatprep.subr.mxu0 %v1045
        %1080 = vmatpush1.msra.mxu0 %v1044
        %1081 = vmatprep.subr.mxu0 %v1047
        %1082 = vmatpush1.msra.mxu0 %v1046
        %1083 = vmatprep.subr.mxu0 %v1049
        %1084 = vmatpush1.msra.mxu0 %v1048
        %1085 = vmatprep.subr.mxu0 %v1051
        %1086 = vmatpush1.msra.mxu0 %v1050
        %1087 = vmatprep.subr.mxu0 %v1053
        %1088 = vmatpush1.msra.mxu0 %v1052
        %1089 = vmatprep.subr.mxu0 %v1055
        %1090 = vmatpush1.msra.mxu0 %v1054
        %1091 = vmatprep.subr.mxu0 %v1057
        %1092 = vmatpush1.msra.mxu0 %v1056
        %1093 = vmatprep.subr.mxu0 0.0
        %1094 = vmatpush1.msra.mxu0 0.0
        %1095 = vmatprep.subr.mxu0 0.0
        %1096 = vmatpush1.msra.mxu0 0.0
        %1097 = vmatprep.subr.mxu0 0.0
        %1098 = vmatpush1.msra.mxu0 0.0
        %1099 = vmatprep.subr.mxu0 0.0
        %1100 = vmatpush1.msra.mxu0 0.0
        %1101 = vmatprep.subr.mxu0 0.0
        %1102 = vmatpush1.msra.mxu0 0.0
        %1103 = vmatprep.subr.mxu0 0.0
        %1104 = vmatpush1.msra.mxu0 0.0
        %1105 = vmatprep.subr.mxu0 0.0
        %1106 = vmatpush1.msra.mxu0 0.0
        %1107 = vmatprep.subr.mxu0 0.0
        %1108 = vmatpush1.msra.mxu0 0.0
        %1109 = vmatprep.subr.mxu0 0.0
        %1110 = vmatpush1.msra.mxu0 0.0
        %1111 = vmatprep.subr.mxu0 0.0
        %1112 = vmatpush1.msra.mxu0 0.0
        %1113 = vmatprep.subr.mxu0 0.0
        %1114 = vmatpush1.msra.mxu0 0.0
        %1115 = vmatprep.subr.mxu0 0.0
        %1116 = vmatpush1.msra.mxu0 0.0
        %1117 = vmatprep.subr.mxu0 0.0
        %1118 = vmatpush1.msra.mxu0 0.0
        %1119 = vmatprep.subr.mxu0 0.0
        %1120 = vmatpush1.msra.mxu0 0.0
        %1121 = vmatprep.subr.mxu0 0.0
        %1122 = vmatpush1.msra.mxu0 0.0
        %1123 = vmatprep.subr.mxu0 0.0
        %1124 = vmatpush1.msra.mxu0 0.0
        %1125 = vmatprep.subr.mxu0 0.0
        %1126 = vmatpush1.msra.mxu0 0.0
        %1127 = vmatprep.subr.mxu0 0.0
        %1128 = vmatpush1.msra.mxu0 0.0
        %1129 = vmatprep.subr.mxu0 0.0
        %1130 = vmatpush1.msra.mxu0 0.0
        %1131 = vmatprep.subr.mxu0 0.0
        %1132 = vmatpush1.msra.mxu0 0.0
        %1133 = vmatprep.subr.mxu0 0.0
        %1134 = vmatpush1.msra.mxu0 0.0
        %1135 = vmatprep.subr.mxu0 0.0
        %1136 = vmatpush1.msra.mxu0 0.0
        %1137 = vmatprep.subr.mxu0 0.0
        %1138 = vmatpush1.msra.mxu0 0.0
        %1139 = vmatprep.subr.mxu0 0.0
        %1140 = vmatpush1.msra.mxu0 0.0
        %1141 = vmatprep.mubr.f32.mxu0 0.0
        %1142 = vmatmul.mubr.f32.gmra.mrb[0].mxu0 %v1075
        %v1143 = vpop.f32.mrb[0].mxu0
        %v1144 = vadd.f32 %v1067, %v1143
        %v1145 = vpop.f32.mrb[0].mxu0
        %v1146 = vadd.f32 %v1071, %v1145
        %1147 = vmatprep.mubr.f32.mxu0 0.0
        %1148 = vmatmul.mubr.f32.gmra.mrb[0].mxu0 %v1075
        %v1149 = vpop.f32.mrb[0].mxu0
        %v1150 = vadd.f32 %v1067, %v1149
        %v1151 = vpop.f32.mrb[0].mxu0
        %v1152 = vadd.f32 %v1071, %v1151
        %1153 = vdwg.mxu0
        %v1154 = vadd.f32 %v1059, %v1144
        %v1155 = vadd.f32 %v1061, %v1150
        %v1156 = vxor.u32 %v1154, 2147483648
        %v1157 = vxor.u32 %v1155, 2147483648
        %v1158 = vmul.f32 %v1156, 1.442695
        %v1159 = vpow.pop %v1158
        %v1160 = vmul.f32 %v1157, 1.442695
        %v1161 = vpow.pop %v1160
        %v1162 = vadd.f32 %v1159, 1.0
        %v1163 = vadd.f32 %v1161, 1.0
        %v1164 = vrcp.pop %v1162
        %v1165 = vmul.f32 1.0, %v1164
        %v1166 = vrcp.pop %v1163
        %v1167 = vmul.f32 1.0, %v1166
        %v1168 = vmul.f32 %v1165, %v1146
        %v1169 = vmul.f32 %v1167, %v1152
        %v1170 = vadd.f32 %v1060, %v1168
        %v1171 = vadd.f32 %v1062, %v1169
        %v1172 = vtanh.pop %v1170
        %v1173 = vtanh.pop %v1171
        %v1174 = vsub.f32 1.0, %v1165
        %v1175 = vsub.f32 1.0, %v1167
        %1178 = vrot.lane.b32.xlu0 %v1172, 64
        %v1179 = vpop.permute.xlu0 %1178
        %1180 = vrot.lane.b32.xlu0 %v1173, 64
        %v1181 = vpop.permute.xlu0 %1180
        %v1184 = vmul.f32 %v1174, %v1179
        %v1185 = vmul.f32 %v1175, %v1181
        %v1186 = vmul.f32 %v1165, 0.0
        %v1187 = vmul.f32 %v1167, 0.0
        %v1188 = vadd.f32 %v1184, %v1186
        %v1189 = vadd.f32 %v1185, %v1187
        %1192 = vrot.lane.b32.xlu0 %v1188, 64
        %v1193 = vpop.permute.xlu0 %1192
        %1194 = vrot.lane.b32.xlu0 %v1189, 64
        %v1195 = vpop.permute.xlu0 %1194
        %1198 = vst.msk [vmem:[#allocation3] sm:$0xff] %vm1010, %v1193
        %1199 = vst.msk [vmem:[#allocation3 + $0x8] sm:$0xff] %vm1010, %v1195
        %s1200 = scalar_lea.vmem [#allocation2], 32
        %v1201 = vld [vmem:[%s1200] sm:$0xff]
        %v1202 = vld [vmem:[%s1200 + $0x8] sm:$0xff]
        %v1203 = vld [vmem:[%s1200 + $0x10] sm:$0xff]
        %v1204 = vld [vmem:[%s1200 + $0x18] sm:$0xff]
        %v1205 = vsel %vm1010, %v1193, 0
        %v1207 = vsel %vm1010, %v1195, 0
        %1209 = vmatprep.subr.mxu0 %v1043
        %1210 = vmatpush1.msra.mxu0 %v1042
        %1211 = vmatprep.subr.mxu0 %v1045
        %1212 = vmatpush1.msra.mxu0 %v1044
        %1213 = vmatprep.subr.mxu0 %v1047
        %1214 = vmatpush1.msra.mxu0 %v1046
        %1215 = vmatprep.subr.mxu0 %v1049
        %1216 = vmatpush1.msra.mxu0 %v1048
        %1217 = vmatprep.subr.mxu0 %v1051
        %1218 = vmatpush1.msra.mxu0 %v1050
        %1219 = vmatprep.subr.mxu0 %v1053
        %1220 = vmatpush1.msra.mxu0 %v1052
        %1221 = vmatprep.subr.mxu0 %v1055
        %1222 = vmatpush1.msra.mxu0 %v1054
        %1223 = vmatprep.subr.mxu0 %v1057
        %1224 = vmatpush1.msra.mxu0 %v1056
        %1225 = vmatprep.subr.mxu0 0.0
        %1226 = vmatpush1.msra.mxu0 0.0
        %1227 = vmatprep.subr.mxu0 0.0
        %1228 = vmatpush1.msra.mxu0 0.0
        %1229 = vmatprep.subr.mxu0 0.0
        %1230 = vmatpush1.msra.mxu0 0.0
        %1231 = vmatprep.subr.mxu0 0.0
        %1232 = vmatpush1.msra.mxu0 0.0
        %1233 = vmatprep.subr.mxu0 0.0
        %1234 = vmatpush1.msra.mxu0 0.0
        %1235 = vmatprep.subr.mxu0 0.0
        %1236 = vmatpush1.msra.mxu0 0.0
        %1237 = vmatprep.subr.mxu0 0.0
        %1238 = vmatpush1.msra.mxu0 0.0
        %1239 = vmatprep.subr.mxu0 0.0
        %1240 = vmatpush1.msra.mxu0 0.0
        %1241 = vmatprep.subr.mxu0 0.0
        %1242 = vmatpush1.msra.mxu0 0.0
        %1243 = vmatprep.subr.mxu0 0.0
        %1244 = vmatpush1.msra.mxu0 0.0
        %1245 = vmatprep.subr.mxu0 0.0
        %1246 = vmatpush1.msra.mxu0 0.0
        %1247 = vmatprep.subr.mxu0 0.0
        %1248 = vmatpush1.msra.mxu0 0.0
        %1249 = vmatprep.subr.mxu0 0.0
        %1250 = vmatpush1.msra.mxu0 0.0
        %1251 = vmatprep.subr.mxu0 0.0
        %1252 = vmatpush1.msra.mxu0 0.0
        %1253 = vmatprep.subr.mxu0 0.0
        %1254 = vmatpush1.msra.mxu0 0.0
        %1255 = vmatprep.subr.mxu0 0.0
        %1256 = vmatpush1.msra.mxu0 0.0
        %1257 = vmatprep.subr.mxu0 0.0
        %1258 = vmatpush1.msra.mxu0 0.0
        %1259 = vmatprep.subr.mxu0 0.0
        %1260 = vmatpush1.msra.mxu0 0.0
        %1261 = vmatprep.subr.mxu0 0.0
        %1262 = vmatpush1.msra.mxu0 0.0
        %1263 = vmatprep.subr.mxu0 0.0
        %1264 = vmatpush1.msra.mxu0 0.0
        %1265 = vmatprep.subr.mxu0 0.0
        %1266 = vmatpush1.msra.mxu0 0.0
        %1267 = vmatprep.subr.mxu0 0.0
        %1268 = vmatpush1.msra.mxu0 0.0
        %1269 = vmatprep.subr.mxu0 0.0
        %1270 = vmatpush1.msra.mxu0 0.0
        %1271 = vmatprep.subr.mxu0 0.0
        %1272 = vmatpush1.msra.mxu0 0.0
        %1273 = vmatprep.mubr.f32.mxu0 0.0
        %1274 = vmatmul.mubr.f32.gmra.mrb[0].mxu0 %v1205
        %v1275 = vpop.f32.mrb[0].mxu0
        %v1276 = vadd.f32 %v1067, %v1275
        %v1277 = vpop.f32.mrb[0].mxu0
        %v1278 = vadd.f32 %v1071, %v1277
        %1279 = vmatprep.mubr.f32.mxu0 0.0
        %1280 = vmatmul.mubr.f32.gmra.mrb[0].mxu0 %v1207
        %v1281 = vpop.f32.mrb[0].mxu0
        %v1282 = vadd.f32 %v1067, %v1281
        %v1283 = vpop.f32.mrb[0].mxu0
        %v1284 = vadd.f32 %v1071, %v1283
        %1285 = vdwg.mxu0
        %v1286 = vadd.f32 %v1201, %v1276
        %v1287 = vadd.f32 %v1203, %v1282
        %v1288 = vxor.u32 %v1286, 2147483648
        %v1289 = vxor.u32 %v1287, 2147483648
        %v1290 = vmul.f32 %v1288, 1.442695
        %v1291 = vpow.pop %v1290
        %v1292 = vmul.f32 %v1289, 1.442695
        %v1293 = vpow.pop %v1292
        %v1294 = vadd.f32 %v1291, 1.0
        %v1295 = vadd.f32 %v1293, 1.0
        %v1296 = vrcp.pop %v1294
        %v1297 = vmul.f32 1.0, %v1296
        %v1298 = vrcp.pop %v1295
        %v1299 = vmul.f32 1.0, %v1298
        %v1300 = vmul.f32 %v1297, %v1278
        %v1301 = vmul.f32 %v1299, %v1284
        %v1302 = vadd.f32 %v1202, %v1300
        %v1303 = vadd.f32 %v1204, %v1301
        %v1304 = vtanh.pop %v1302
        %v1305 = vtanh.pop %v1303
        %v1306 = vsub.f32 1.0, %v1297
        %v1307 = vsub.f32 1.0, %v1299
        %1310 = vrot.lane.b32.xlu0 %v1304, 64
        %v1311 = vpop.permute.xlu0 %1310
        %1312 = vrot.lane.b32.xlu0 %v1305, 64
        %v1313 = vpop.permute.xlu0 %1312
        %v1316 = vmul.f32 %v1306, %v1311
        %v1317 = vmul.f32 %v1307, %v1313
        %v1318 = vmul.f32 %v1297, %v1188
        %v1319 = vmul.f32 %v1299, %v1189
        %v1320 = vadd.f32 %v1316, %v1318
        %v1321 = vadd.f32 %v1317, %v1319
        %1324 = vrot.lane.b32.xlu0 %v1320, 64
        %v1325 = vpop.permute.xlu0 %1324
        %1326 = vrot.lane.b32.xlu0 %v1321, 64
        %v1327 = vpop.permute.xlu0 %1326
        %s1330 = scalar_lea.vmem [#allocation3], 16
        %1331 = vst.msk [vmem:[%s1330] sm:$0xff] %vm1010, %v1325
        %1332 = vst.msk [vmem:[%s1330 + $0x8] sm:$0xff] %vm1010, %v1327
        %s1333 = scalar_lea.vmem [#allocation2], 64
        %v1334 = vld [vmem:[%s1333] sm:$0xff]
        %v1335 = vld [vmem:[%s1333 + $0x8] sm:$0xff]
        %v1336 = vld [vmem:[%s1333 + $0x10] sm:$0xff]
        %v1337 = vld [vmem:[%s1333 + $0x18] sm:$0xff]
        %v1338 = vsel %vm1010, %v1325, 0
        %v1340 = vsel %vm1010, %v1327, 0
        %1342 = vmatprep.subr.mxu0 %v1043
        %1343 = vmatpush1.msra.mxu0 %v1042
        %1344 = vmatprep.subr.mxu0 %v1045
        %1345 = vmatpush1.msra.mxu0 %v1044
        %1346 = vmatprep.subr.mxu0 %v1047
        %1347 = vmatpush1.msra.mxu0 %v1046
        %1348 = vmatprep.subr.mxu0 %v1049
        %1349 = vmatpush1.msra.mxu0 %v1048
        %1350 = vmatprep.subr.mxu0 %v1051
        %1351 = vmatpush1.msra.mxu0 %v1050
        %1352 = vmatprep.subr.mxu0 %v1053
        %1353 = vmatpush1.msra.mxu0 %v1052
        %1354 = vmatprep.subr.mxu0 %v1055
        %1355 = vmatpush1.msra.mxu0 %v1054
        %1356 = vmatprep.subr.mxu0 %v1057
        %1357 = vmatpush1.msra.mxu0 %v1056
        %1358 = vmatprep.subr.mxu0 0.0
        %1359 = vmatpush1.msra.mxu0 0.0
        %1360 = vmatprep.subr.mxu0 0.0
        %1361 = vmatpush1.msra.mxu0 0.0
        %1362 = vmatprep.subr.mxu0 0.0
        %1363 = vmatpush1.msra.mxu0 0.0
        %1364 = vmatprep.subr.mxu0 0.0
        %1365 = vmatpush1.msra.mxu0 0.0
        %1366 = vmatprep.subr.mxu0 0.0
        %1367 = vmatpush1.msra.mxu0 0.0
        %1368 = vmatprep.subr.mxu0 0.0
        %1369 = vmatpush1.msra.mxu0 0.0
        %1370 = vmatprep.subr.mxu0 0.0
        %1371 = vmatpush1.msra.mxu0 0.0
        %1372 = vmatprep.subr.mxu0 0.0
        %1373 = vmatpush1.msra.mxu0 0.0
        %1374 = vmatprep.subr.mxu0 0.0
        %1375 = vmatpush1.msra.mxu0 0.0
        %1376 = vmatprep.subr.mxu0 0.0
        %1377 = vmatpush1.msra.mxu0 0.0
        %1378 = vmatprep.subr.mxu0 0.0
        %1379 = vmatpush1.msra.mxu0 0.0
        %1380 = vmatprep.subr.mxu0 0.0
        %1381 = vmatpush1.msra.mxu0 0.0
        %1382 = vmatprep.subr.mxu0 0.0
        %1383 = vmatpush1.msra.mxu0 0.0
        %1384 = vmatprep.subr.mxu0 0.0
        %1385 = vmatpush1.msra.mxu0 0.0
        %1386 = vmatprep.subr.mxu0 0.0
        %1387 = vmatpush1.msra.mxu0 0.0
        %1388 = vmatprep.subr.mxu0 0.0
        %1389 = vmatpush1.msra.mxu0 0.0
        %1390 = vmatprep.subr.mxu0 0.0
        %1391 = vmatpush1.msra.mxu0 0.0
        %1392 = vmatprep.subr.mxu0 0.0
        %1393 = vmatpush1.msra.mxu0 0.0
        %1394 = vmatprep.subr.mxu0 0.0
        %1395 = vmatpush1.msra.mxu0 0.0
        %1396 = vmatprep.subr.mxu0 0.0
        %1397 = vmatpush1.msra.mxu0 0.0
        %1398 = vmatprep.subr.mxu0 0.0
        %1399 = vmatpush1.msra.mxu0 0.0
        %1400 = vmatprep.subr.mxu0 0.0
        %1401 = vmatpush1.msra.mxu0 0.0
        %1402 = vmatprep.subr.mxu0 0.0
        %1403 = vmatpush1.msra.mxu0 0.0
        %1404 = vmatprep.subr.mxu0 0.0
        %1405 = vmatpush1.msra.mxu0 0.0
        %1406 = vmatprep.mubr.f32.mxu0 0.0
        %1407 = vmatmul.mubr.f32.gmra.mrb[0].mxu0 %v1338
        %v1408 = vpop.f32.mrb[0].mxu0
        %v1409 = vadd.f32 %v1067, %v1408
        %v1410 = vpop.f32.mrb[0].mxu0
        %v1411 = vadd.f32 %v1071, %v1410
        %1412 = vmatprep.mubr.f32.mxu0 0.0
        %1413 = vmatmul.mubr.f32.gmra.mrb[0].mxu0 %v1340
        %v1414 = vpop.f32.mrb[0].mxu0
        %v1415 = vadd.f32 %v1067, %v1414
        %v1416 = vpop.f32.mrb[0].mxu0
        %v1417 = vadd.f32 %v1071, %v1416
        %1418 = vdwg.mxu0
        %v1419 = vadd.f32 %v1334, %v1409
        %v1420 = vadd.f32 %v1336, %v1415
        %v1421 = vxor.u32 %v1419, 2147483648
        %v1422 = vxor.u32 %v1420, 2147483648
        %v1423 = vmul.f32 %v1421, 1.442695
        %v1424 = vpow.pop %v1423
        %v1425 = vmul.f32 %v1422, 1.442695
        %v1426 = vpow.pop %v1425
        %v1427 = vadd.f32 %v1424, 1.0
        %v1428 = vadd.f32 %v1426, 1.0
        %v1429 = vrcp.pop %v1427
        %v1430 = vmul.f32 1.0, %v1429
        %v1431 = vrcp.pop %v1428
        %v1432 = vmul.f32 1.0, %v1431
        %v1433 = vmul.f32 %v1430, %v1411
        %v1434 = vmul.f32 %v1432, %v1417
        %v1435 = vadd.f32 %v1335, %v1433
        %v1436 = vadd.f32 %v1337, %v1434
        %v1437 = vtanh.pop %v1435
        %v1438 = vtanh.pop %v1436
        %v1439 = vsub.f32 1.0, %v1430
        %v1440 = vsub.f32 1.0, %v1432
        %1443 = vrot.lane.b32.xlu0 %v1437, 64
        %v1444 = vpop.permute.xlu0 %1443
        %1445 = vrot.lane.b32.xlu0 %v1438, 64
        %v1446 = vpop.permute.xlu0 %1445
        %v1449 = vmul.f32 %v1439, %v1444
        %v1450 = vmul.f32 %v1440, %v1446
        %v1451 = vmul.f32 %v1430, %v1320
        %v1452 = vmul.f32 %v1432, %v1321
        %v1453 = vadd.f32 %v1449, %v1451
        %v1454 = vadd.f32 %v1450, %v1452
        %1457 = vrot.lane.b32.xlu0 %v1453, 64
        %v1458 = vpop.permute.xlu0 %1457
        %1459 = vrot.lane.b32.xlu0 %v1454, 64
        %v1460 = vpop.permute.xlu0 %1459
        %s1463 = scalar_lea.vmem [#allocation3], 32
        %1464 = vst.msk [vmem:[%s1463] sm:$0xff] %vm1010, %v1458
        %1465 = vst.msk [vmem:[%s1463 + $0x8] sm:$0xff] %vm1010, %v1460
        %s1466 = scalar_lea.vmem [#allocation2], 96
        %v1467 = vld [vmem:[%s1466] sm:$0xff]
        %v1468 = vld [vmem:[%s1466 + $0x8] sm:$0xff]
        %v1469 = vld [vmem:[%s1466 + $0x10] sm:$0xff]
        %v1470 = vld [vmem:[%s1466 + $0x18] sm:$0xff]
        %v1471 = vsel %vm1010, %v1458, 0
        %v1473 = vsel %vm1010, %v1460, 0
        %1475 = vmatprep.subr.mxu0 %v1043
        %1476 = vmatpush1.msra.mxu0 %v1042
        %1477 = vmatprep.subr.mxu0 %v1045
        %1478 = vmatpush1.msra.mxu0 %v1044
        %1479 = vmatprep.subr.mxu0 %v1047
        %1480 = vmatpush1.msra.mxu0 %v1046
        %1481 = vmatprep.subr.mxu0 %v1049
        %1482 = vmatpush1.msra.mxu0 %v1048
        %1483 = vmatprep.subr.mxu0 %v1051
        %1484 = vmatpush1.msra.mxu0 %v1050
        %1485 = vmatprep.subr.mxu0 %v1053
        %1486 = vmatpush1.msra.mxu0 %v1052
        %1487 = vmatprep.subr.mxu0 %v1055
        %1488 = vmatpush1.msra.mxu0 %v1054
        %1489 = vmatprep.subr.mxu0 %v1057
        %1490 = vmatpush1.msra.mxu0 %v1056
        %1491 = vmatprep.subr.mxu0 0.0
        %1492 = vmatpush1.msra.mxu0 0.0
        %1493 = vmatprep.subr.mxu0 0.0
        %1494 = vmatpush1.msra.mxu0 0.0
        %1495 = vmatprep.subr.mxu0 0.0
        %1496 = vmatpush1.msra.mxu0 0.0
        %1497 = vmatprep.subr.mxu0 0.0
        %1498 = vmatpush1.msra.mxu0 0.0
        %1499 = vmatprep.subr.mxu0 0.0
        %1500 = vmatpush1.msra.mxu0 0.0
        %1501 = vmatprep.subr.mxu0 0.0
        %1502 = vmatpush1.msra.mxu0 0.0
        %1503 = vmatprep.subr.mxu0 0.0
        %1504 = vmatpush1.msra.mxu0 0.0
        %1505 = vmatprep.subr.mxu0 0.0
        %1506 = vmatpush1.msra.mxu0 0.0
        %1507 = vmatprep.subr.mxu0 0.0
        %1508 = vmatpush1.msra.mxu0 0.0
        %1509 = vmatprep.subr.mxu0 0.0
        %1510 = vmatpush1.msra.mxu0 0.0
        %1511 = vmatprep.subr.mxu0 0.0
        %1512 = vmatpush1.msra.mxu0 0.0
        %1513 = vmatprep.subr.mxu0 0.0
        %1514 = vmatpush1.msra.mxu0 0.0
        %1515 = vmatprep.subr.mxu0 0.0
        %1516 = vmatpush1.msra.mxu0 0.0
        %1517 = vmatprep.subr.mxu0 0.0
        %1518 = vmatpush1.msra.mxu0 0.0
        %1519 = vmatprep.subr.mxu0 0.0
        %1520 = vmatpush1.msra.mxu0 0.0
        %1521 = vmatprep.subr.mxu0 0.0
        %1522 = vmatpush1.msra.mxu0 0.0
        %1523 = vmatprep.subr.mxu0 0.0
        %1524 = vmatpush1.msra.mxu0 0.0
        %1525 = vmatprep.subr.mxu0 0.0
        %1526 = vmatpush1.msra.mxu0 0.0
        %1527 = vmatprep.subr.mxu0 0.0
        %1528 = vmatpush1.msra.mxu0 0.0
        %1529 = vmatprep.subr.mxu0 0.0
        %1530 = vmatpush1.msra.mxu0 0.0
        %1531 = vmatprep.subr.mxu0 0.0
        %1532 = vmatpush1.msra.mxu0 0.0
        %1533 = vmatprep.subr.mxu0 0.0
        %1534 = vmatpush1.msra.mxu0 0.0
        %1535 = vmatprep.subr.mxu0 0.0
        %1536 = vmatpush1.msra.mxu0 0.0
        %1537 = vmatprep.subr.mxu0 0.0
        %1538 = vmatpush1.msra.mxu0 0.0
        %1539 = vmatprep.mubr.f32.mxu0 0.0
        %1540 = vmatmul.mubr.f32.gmra.mrb[0].mxu0 %v1471
        %v1541 = vpop.f32.mrb[0].mxu0
        %v1542 = vadd.f32 %v1067, %v1541
        %v1543 = vpop.f32.mrb[0].mxu0
        %v1544 = vadd.f32 %v1071, %v1543
        %1545 = vmatprep.mubr.f32.mxu0 0.0
        %1546 = vmatmul.mubr.f32.gmra.mrb[0].mxu0 %v1473
        %v1547 = vpop.f32.mrb[0].mxu0
        %v1548 = vadd.f32 %v1067, %v1547
        %v1549 = vpop.f32.mrb[0].mxu0
        %v1550 = vadd.f32 %v1071, %v1549
        %1551 = vdwg.mxu0
        %v1552 = vadd.f32 %v1467, %v1542
        %v1553 = vadd.f32 %v1469, %v1548
        %v1554 = vxor.u32 %v1552, 2147483648
        %v1555 = vxor.u32 %v1553, 2147483648
        %v1556 = vmul.f32 %v1554, 1.442695
        %v1557 = vpow.pop %v1556
        %v1558 = vmul.f32 %v1555, 1.442695
        %v1559 = vpow.pop %v1558
        %v1560 = vadd.f32 %v1557, 1.0
        %v1561 = vadd.f32 %v1559, 1.0
        %v1562 = vrcp.pop %v1560
        %v1563 = vmul.f32 1.0, %v1562
        %v1564 = vrcp.pop %v1561
        %v1565 = vmul.f32 1.0, %v1564
        %v1566 = vmul.f32 %v1563, %v1544
        %v1567 = vmul.f32 %v1565, %v1550
        %v1568 = vadd.f32 %v1468, %v1566
        %v1569 = vadd.f32 %v1470, %v1567
        %v1570 = vtanh.pop %v1568
        %v1571 = vtanh.pop %v1569
        %v1572 = vsub.f32 1.0, %v1563
        %v1573 = vsub.f32 1.0, %v1565
        %1576 = vrot.lane.b32.xlu0 %v1570, 64
        %v1577 = vpop.permute.xlu0 %1576
        %1578 = vrot.lane.b32.xlu0 %v1571, 64
        %v1579 = vpop.permute.xlu0 %1578
        %v1582 = vmul.f32 %v1572, %v1577
        %v1583 = vmul.f32 %v1573, %v1579
        %v1584 = vmul.f32 %v1563, %v1453
        %v1585 = vmul.f32 %v1565, %v1454
        %v1586 = vadd.f32 %v1582, %v1584
        %v1587 = vadd.f32 %v1583, %v1585
        %1590 = vrot.lane.b32.xlu0 %v1586, 64
        %v1591 = vpop.permute.xlu0 %1590
        %1592 = vrot.lane.b32.xlu0 %v1587, 64
        %v1593 = vpop.permute.xlu0 %1592
        %s1596 = scalar_lea.vmem [#allocation3], 48
        %1597 = vst.msk [vmem:[%s1596] sm:$0xff] %vm1010, %v1591
        %1598 = vst.msk [vmem:[%s1596 + $0x8] sm:$0xff] %vm1010, %v1593
        %s1599 = scalar_lea.vmem [#allocation2], 128
        %v1600 = vld [vmem:[%s1599] sm:$0xff]
        %v1601 = vld [vmem:[%s1599 + $0x8] sm:$0xff]
        %v1602 = vld [vmem:[%s1599 + $0x10] sm:$0xff]
        %v1603 = vld [vmem:[%s1599 + $0x18] sm:$0xff]
        %v1604 = vsel %vm1010, %v1591, 0
        %v1606 = vsel %vm1010, %v1593, 0
        %1608 = vmatprep.subr.mxu0 %v1043
        %1609 = vmatpush1.msra.mxu0 %v1042
        %1610 = vmatprep.subr.mxu0 %v1045
        %1611 = vmatpush1.msra.mxu0 %v1044
        %1612 = vmatprep.subr.mxu0 %v1047
        %1613 = vmatpush1.msra.mxu0 %v1046
        %1614 = vmatprep.subr.mxu0 %v1049
        %1615 = vmatpush1.msra.mxu0 %v1048
        %1616 = vmatprep.subr.mxu0 %v1051
        %1617 = vmatpush1.msra.mxu0 %v1050
        %1618 = vmatprep.subr.mxu0 %v1053
        %1619 = vmatpush1.msra.mxu0 %v1052
        %1620 = vmatprep.subr.mxu0 %v1055
        %1621 = vmatpush1.msra.mxu0 %v1054
        %1622 = vmatprep.subr.mxu0 %v1057
        %1623 = vmatpush1.msra.mxu0 %v1056
        %1624 = vmatprep.subr.mxu0 0.0
        %1625 = vmatpush1.msra.mxu0 0.0
        %1626 = vmatprep.subr.mxu0 0.0
        %1627 = vmatpush1.msra.mxu0 0.0
        %1628 = vmatprep.subr.mxu0 0.0
        %1629 = vmatpush1.msra.mxu0 0.0
        %1630 = vmatprep.subr.mxu0 0.0
        %1631 = vmatpush1.msra.mxu0 0.0
        %1632 = vmatprep.subr.mxu0 0.0
        %1633 = vmatpush1.msra.mxu0 0.0
        %1634 = vmatprep.subr.mxu0 0.0
        %1635 = vmatpush1.msra.mxu0 0.0
        %1636 = vmatprep.subr.mxu0 0.0
        %1637 = vmatpush1.msra.mxu0 0.0
        %1638 = vmatprep.subr.mxu0 0.0
        %1639 = vmatpush1.msra.mxu0 0.0
        %1640 = vmatprep.subr.mxu0 0.0
        %1641 = vmatpush1.msra.mxu0 0.0
        %1642 = vmatprep.subr.mxu0 0.0
        %1643 = vmatpush1.msra.mxu0 0.0
        %1644 = vmatprep.subr.mxu0 0.0
        %1645 = vmatpush1.msra.mxu0 0.0
        %1646 = vmatprep.subr.mxu0 0.0
        %1647 = vmatpush1.msra.mxu0 0.0
        %1648 = vmatprep.subr.mxu0 0.0
        %1649 = vmatpush1.msra.mxu0 0.0
        %1650 = vmatprep.subr.mxu0 0.0
        %1651 = vmatpush1.msra.mxu0 0.0
        %1652 = vmatprep.subr.mxu0 0.0
        %1653 = vmatpush1.msra.mxu0 0.0
        %1654 = vmatprep.subr.mxu0 0.0
        %1655 = vmatpush1.msra.mxu0 0.0
        %1656 = vmatprep.subr.mxu0 0.0
        %1657 = vmatpush1.msra.mxu0 0.0
        %1658 = vmatprep.subr.mxu0 0.0
        %1659 = vmatpush1.msra.mxu0 0.0
        %1660 = vmatprep.subr.mxu0 0.0
        %1661 = vmatpush1.msra.mxu0 0.0
        %1662 = vmatprep.subr.mxu0 0.0
        %1663 = vmatpush1.msra.mxu0 0.0
        %1664 = vmatprep.subr.mxu0 0.0
        %1665 = vmatpush1.msra.mxu0 0.0
        %1666 = vmatprep.subr.mxu0 0.0
        %1667 = vmatpush1.msra.mxu0 0.0
        %1668 = vmatprep.subr.mxu0 0.0
        %1669 = vmatpush1.msra.mxu0 0.0
        %1670 = vmatprep.subr.mxu0 0.0
        %1671 = vmatpush1.msra.mxu0 0.0
        %1672 = vmatprep.mubr.f32.mxu0 0.0
        %1673 = vmatmul.mubr.f32.gmra.mrb[0].mxu0 %v1604
        %v1674 = vpop.f32.mrb[0].mxu0
        %v1675 = vadd.f32 %v1067, %v1674
        %v1676 = vpop.f32.mrb[0].mxu0
        %v1677 = vadd.f32 %v1071, %v1676
        %1678 = vmatprep.mubr.f32.mxu0 0.0
        %1679 = vmatmul.mubr.f32.gmra.mrb[0].mxu0 %v1606
        %v1680 = vpop.f32.mrb[0].mxu0
        %v1681 = vadd.f32 %v1067, %v1680
        %v1682 = vpop.f32.mrb[0].mxu0
        %v1683 = vadd.f32 %v1071, %v1682
        %1684 = vdwg.mxu0
        %v1685 = vadd.f32 %v1600, %v1675
        %v1686 = vadd.f32 %v1602, %v1681
        %v1687 = vxor.u32 %v1685, 2147483648
        %v1688 = vxor.u32 %v1686, 2147483648
        %v1689 = vmul.f32 %v1687, 1.442695
        %v1690 = vpow.pop %v1689
        %v1691 = vmul.f32 %v1688, 1.442695
        %v1692 = vpow.pop %v1691
        %v1693 = vadd.f32 %v1690, 1.0
        %v1694 = vadd.f32 %v1692, 1.0
        %v1695 = vrcp.pop %v1693
        %v1696 = vmul.f32 1.0, %v1695
        %v1697 = vrcp.pop %v1694
        %v1698 = vmul.f32 1.0, %v1697
        %v1699 = vmul.f32 %v1696, %v1677
        %v1700 = vmul.f32 %v1698, %v1683
        %v1701 = vadd.f32 %v1601, %v1699
        %v1702 = vadd.f32 %v1603, %v1700
        %v1703 = vtanh.pop %v1701
        %v1704 = vtanh.pop %v1702
        %v1705 = vsub.f32 1.0, %v1696
        %v1706 = vsub.f32 1.0, %v1698
        %1709 = vrot.lane.b32.xlu0 %v1703, 64
        %v1710 = vpop.permute.xlu0 %1709
        %1711 = vrot.lane.b32.xlu0 %v1704, 64
        %v1712 = vpop.permute.xlu0 %1711
        %v1715 = vmul.f32 %v1705, %v1710
        %v1716 = vmul.f32 %v1706, %v1712
        %v1717 = vmul.f32 %v1696, %v1586
        %v1718 = vmul.f32 %v1698, %v1587
        %v1719 = vadd.f32 %v1715, %v1717
        %v1720 = vadd.f32 %v1716, %v1718
        %1723 = vrot.lane.b32.xlu0 %v1719, 64
        %v1724 = vpop.permute.xlu0 %1723
        %1725 = vrot.lane.b32.xlu0 %v1720, 64
        %v1726 = vpop.permute.xlu0 %1725
        %s1729 = scalar_lea.vmem [#allocation3], 64
        %1730 = vst.msk [vmem:[%s1729] sm:$0xff] %vm1010, %v1724
        %1731 = vst.msk [vmem:[%s1729 + $0x8] sm:$0xff] %vm1010, %v1726
        %s1732 = scalar_lea.vmem [#allocation2], 160
        %v1733 = vld [vmem:[%s1732] sm:$0xff]
        %v1734 = vld [vmem:[%s1732 + $0x8] sm:$0xff]
        %v1735 = vld [vmem:[%s1732 + $0x10] sm:$0xff]
        %v1736 = vld [vmem:[%s1732 + $0x18] sm:$0xff]
        %v1737 = vsel %vm1010, %v1724, 0
        %v1739 = vsel %vm1010, %v1726, 0
        %1741 = vmatprep.subr.mxu0 %v1043
        %1742 = vmatpush1.msra.mxu0 %v1042
        %1743 = vmatprep.subr.mxu0 %v1045
        %1744 = vmatpush1.msra.mxu0 %v1044
        %1745 = vmatprep.subr.mxu0 %v1047
        %1746 = vmatpush1.msra.mxu0 %v1046
        %1747 = vmatprep.subr.mxu0 %v1049
        %1748 = vmatpush1.msra.mxu0 %v1048
        %1749 = vmatprep.subr.mxu0 %v1051
        %1750 = vmatpush1.msra.mxu0 %v1050
        %1751 = vmatprep.subr.mxu0 %v1053
        %1752 = vmatpush1.msra.mxu0 %v1052
        %1753 = vmatprep.subr.mxu0 %v1055
        %1754 = vmatpush1.msra.mxu0 %v1054
        %1755 = vmatprep.subr.mxu0 %v1057
        %1756 = vmatpush1.msra.mxu0 %v1056
        %1757 = vmatprep.subr.mxu0 0.0
        %1758 = vmatpush1.msra.mxu0 0.0
        %1759 = vmatprep.subr.mxu0 0.0
        %1760 = vmatpush1.msra.mxu0 0.0
        %1761 = vmatprep.subr.mxu0 0.0
        %1762 = vmatpush1.msra.mxu0 0.0
        %1763 = vmatprep.subr.mxu0 0.0
        %1764 = vmatpush1.msra.mxu0 0.0
        %1765 = vmatprep.subr.mxu0 0.0
        %1766 = vmatpush1.msra.mxu0 0.0
        %1767 = vmatprep.subr.mxu0 0.0
        %1768 = vmatpush1.msra.mxu0 0.0
        %1769 = vmatprep.subr.mxu0 0.0
        %1770 = vmatpush1.msra.mxu0 0.0
        %1771 = vmatprep.subr.mxu0 0.0
        %1772 = vmatpush1.msra.mxu0 0.0
        %1773 = vmatprep.subr.mxu0 0.0
        %1774 = vmatpush1.msra.mxu0 0.0
        %1775 = vmatprep.subr.mxu0 0.0
        %1776 = vmatpush1.msra.mxu0 0.0
        %1777 = vmatprep.subr.mxu0 0.0
        %1778 = vmatpush1.msra.mxu0 0.0
        %1779 = vmatprep.subr.mxu0 0.0
        %1780 = vmatpush1.msra.mxu0 0.0
        %1781 = vmatprep.subr.mxu0 0.0
        %1782 = vmatpush1.msra.mxu0 0.0
        %1783 = vmatprep.subr.mxu0 0.0
        %1784 = vmatpush1.msra.mxu0 0.0
        %1785 = vmatprep.subr.mxu0 0.0
        %1786 = vmatpush1.msra.mxu0 0.0
        %1787 = vmatprep.subr.mxu0 0.0
        %1788 = vmatpush1.msra.mxu0 0.0
        %1789 = vmatprep.subr.mxu0 0.0
        %1790 = vmatpush1.msra.mxu0 0.0
        %1791 = vmatprep.subr.mxu0 0.0
        %1792 = vmatpush1.msra.mxu0 0.0
        %1793 = vmatprep.subr.mxu0 0.0
        %1794 = vmatpush1.msra.mxu0 0.0
        %1795 = vmatprep.subr.mxu0 0.0
        %1796 = vmatpush1.msra.mxu0 0.0
        %1797 = vmatprep.subr.mxu0 0.0
        %1798 = vmatpush1.msra.mxu0 0.0
        %1799 = vmatprep.subr.mxu0 0.0
        %1800 = vmatpush1.msra.mxu0 0.0
        %1801 = vmatprep.subr.mxu0 0.0
        %1802 = vmatpush1.msra.mxu0 0.0
        %1803 = vmatprep.subr.mxu0 0.0
        %1804 = vmatpush1.msra.mxu0 0.0
        %1805 = vmatprep.mubr.f32.mxu0 0.0
        %1806 = vmatmul.mubr.f32.gmra.mrb[0].mxu0 %v1737
        %v1807 = vpop.f32.mrb[0].mxu0
        %v1808 = vadd.f32 %v1067, %v1807
        %v1809 = vpop.f32.mrb[0].mxu0
        %v1810 = vadd.f32 %v1071, %v1809
        %1811 = vmatprep.mubr.f32.mxu0 0.0
        %1812 = vmatmul.mubr.f32.gmra.mrb[0].mxu0 %v1739
        %v1813 = vpop.f32.mrb[0].mxu0
        %v1814 = vadd.f32 %v1067, %v1813
        %v1815 = vpop.f32.mrb[0].mxu0
        %v1816 = vadd.f32 %v1071, %v1815
        %1817 = vdwg.mxu0
        %v1818 = vadd.f32 %v1733, %v1808
        %v1819 = vadd.f32 %v1735, %v1814
        %v1820 = vxor.u32 %v1818, 2147483648
        %v1821 = vxor.u32 %v1819, 2147483648
        %v1822 = vmul.f32 %v1820, 1.442695
        %v1823 = vpow.pop %v1822
        %v1824 = vmul.f32 %v1821, 1.442695
        %v1825 = vpow.pop %v1824
        %v1826 = vadd.f32 %v1823, 1.0
        %v1827 = vadd.f32 %v1825, 1.0
        %v1828 = vrcp.pop %v1826
        %v1829 = vmul.f32 1.0, %v1828
        %v1830 = vrcp.pop %v1827
        %v1831 = vmul.f32 1.0, %v1830
        %v1832 = vmul.f32 %v1829, %v1810
        %v1833 = vmul.f32 %v1831, %v1816
        %v1834 = vadd.f32 %v1734, %v1832
        %v1835 = vadd.f32 %v1736, %v1833
        %v1836 = vtanh.pop %v1834
        %v1837 = vtanh.pop %v1835
        %v1838 = vsub.f32 1.0, %v1829
        %v1839 = vsub.f32 1.0, %v1831
        %1842 = vrot.lane.b32.xlu0 %v1836, 64
        %v1843 = vpop.permute.xlu0 %1842
        %1844 = vrot.lane.b32.xlu0 %v1837, 64
        %v1845 = vpop.permute.xlu0 %1844
        %v1848 = vmul.f32 %v1838, %v1843
        %v1849 = vmul.f32 %v1839, %v1845
        %v1850 = vmul.f32 %v1829, %v1719
        %v1851 = vmul.f32 %v1831, %v1720
        %v1852 = vadd.f32 %v1848, %v1850
        %v1853 = vadd.f32 %v1849, %v1851
        %1856 = vrot.lane.b32.xlu0 %v1852, 64
        %v1857 = vpop.permute.xlu0 %1856
        %1858 = vrot.lane.b32.xlu0 %v1853, 64
        %v1859 = vpop.permute.xlu0 %1858
        %s1862 = scalar_lea.vmem [#allocation3], 80
        %1863 = vst.msk [vmem:[%s1862] sm:$0xff] %vm1010, %v1857
        %1864 = vst.msk [vmem:[%s1862 + $0x8] sm:$0xff] %vm1010, %v1859
        %s1865 = scalar_lea.vmem [#allocation2], 192
        %v1866 = vld [vmem:[%s1865] sm:$0xff]
        %v1867 = vld [vmem:[%s1865 + $0x8] sm:$0xff]
        %v1868 = vld [vmem:[%s1865 + $0x10] sm:$0xff]
        %v1869 = vld [vmem:[%s1865 + $0x18] sm:$0xff]
        %v1870 = vsel %vm1010, %v1857, 0
        %v1872 = vsel %vm1010, %v1859, 0
        %1874 = vmatprep.subr.mxu0 %v1043
        %1875 = vmatpush1.msra.mxu0 %v1042
        %1876 = vmatprep.subr.mxu0 %v1045
        %1877 = vmatpush1.msra.mxu0 %v1044
        %1878 = vmatprep.subr.mxu0 %v1047
        %1879 = vmatpush1.msra.mxu0 %v1046
        %1880 = vmatprep.subr.mxu0 %v1049
        %1881 = vmatpush1.msra.mxu0 %v1048
        %1882 = vmatprep.subr.mxu0 %v1051
        %1883 = vmatpush1.msra.mxu0 %v1050
        %1884 = vmatprep.subr.mxu0 %v1053
        %1885 = vmatpush1.msra.mxu0 %v1052
        %1886 = vmatprep.subr.mxu0 %v1055
        %1887 = vmatpush1.msra.mxu0 %v1054
        %1888 = vmatprep.subr.mxu0 %v1057
        %1889 = vmatpush1.msra.mxu0 %v1056
        %1890 = vmatprep.subr.mxu0 0.0
        %1891 = vmatpush1.msra.mxu0 0.0
        %1892 = vmatprep.subr.mxu0 0.0
        %1893 = vmatpush1.msra.mxu0 0.0
        %1894 = vmatprep.subr.mxu0 0.0
        %1895 = vmatpush1.msra.mxu0 0.0
        %1896 = vmatprep.subr.mxu0 0.0
        %1897 = vmatpush1.msra.mxu0 0.0
        %1898 = vmatprep.subr.mxu0 0.0
        %1899 = vmatpush1.msra.mxu0 0.0
        %1900 = vmatprep.subr.mxu0 0.0
        %1901 = vmatpush1.msra.mxu0 0.0
        %1902 = vmatprep.subr.mxu0 0.0
        %1903 = vmatpush1.msra.mxu0 0.0
        %1904 = vmatprep.subr.mxu0 0.0
        %1905 = vmatpush1.msra.mxu0 0.0
        %1906 = vmatprep.subr.mxu0 0.0
        %1907 = vmatpush1.msra.mxu0 0.0
        %1908 = vmatprep.subr.mxu0 0.0
        %1909 = vmatpush1.msra.mxu0 0.0
        %1910 = vmatprep.subr.mxu0 0.0
        %1911 = vmatpush1.msra.mxu0 0.0
        %1912 = vmatprep.subr.mxu0 0.0
        %1913 = vmatpush1.msra.mxu0 0.0
        %1914 = vmatprep.subr.mxu0 0.0
        %1915 = vmatpush1.msra.mxu0 0.0
        %1916 = vmatprep.subr.mxu0 0.0
        %1917 = vmatpush1.msra.mxu0 0.0
        %1918 = vmatprep.subr.mxu0 0.0
        %1919 = vmatpush1.msra.mxu0 0.0
        %1920 = vmatprep.subr.mxu0 0.0
        %1921 = vmatpush1.msra.mxu0 0.0
        %1922 = vmatprep.subr.mxu0 0.0
        %1923 = vmatpush1.msra.mxu0 0.0
        %1924 = vmatprep.subr.mxu0 0.0
        %1925 = vmatpush1.msra.mxu0 0.0
        %1926 = vmatprep.subr.mxu0 0.0
        %1927 = vmatpush1.msra.mxu0 0.0
        %1928 = vmatprep.subr.mxu0 0.0
        %1929 = vmatpush1.msra.mxu0 0.0
        %1930 = vmatprep.subr.mxu0 0.0
        %1931 = vmatpush1.msra.mxu0 0.0
        %1932 = vmatprep.subr.mxu0 0.0
        %1933 = vmatpush1.msra.mxu0 0.0
        %1934 = vmatprep.subr.mxu0 0.0
        %1935 = vmatpush1.msra.mxu0 0.0
        %1936 = vmatprep.subr.mxu0 0.0
        %1937 = vmatpush1.msra.mxu0 0.0
        %1938 = vmatprep.mubr.f32.mxu0 0.0
        %1939 = vmatmul.mubr.f32.gmra.mrb[0].mxu0 %v1870
        %v1940 = vpop.f32.mrb[0].mxu0
        %v1941 = vadd.f32 %v1067, %v1940
        %v1942 = vpop.f32.mrb[0].mxu0
        %v1943 = vadd.f32 %v1071, %v1942
        %1944 = vmatprep.mubr.f32.mxu0 0.0
        %1945 = vmatmul.mubr.f32.gmra.mrb[0].mxu0 %v1872
        %v1946 = vpop.f32.mrb[0].mxu0
        %v1947 = vadd.f32 %v1067, %v1946
        %v1948 = vpop.f32.mrb[0].mxu0
        %v1949 = vadd.f32 %v1071, %v1948
        %1950 = vdwg.mxu0
        %v1951 = vadd.f32 %v1866, %v1941
        %v1952 = vadd.f32 %v1868, %v1947
        %v1953 = vxor.u32 %v1951, 2147483648
        %v1954 = vxor.u32 %v1952, 2147483648
        %v1955 = vmul.f32 %v1953, 1.442695
        %v1956 = vpow.pop %v1955
        %v1957 = vmul.f32 %v1954, 1.442695
        %v1958 = vpow.pop %v1957
        %v1959 = vadd.f32 %v1956, 1.0
        %v1960 = vadd.f32 %v1958, 1.0
        %v1961 = vrcp.pop %v1959
        %v1962 = vmul.f32 1.0, %v1961
        %v1963 = vrcp.pop %v1960
        %v1964 = vmul.f32 1.0, %v1963
        %v1965 = vmul.f32 %v1962, %v1943
        %v1966 = vmul.f32 %v1964, %v1949
        %v1967 = vadd.f32 %v1867, %v1965
        %v1968 = vadd.f32 %v1869, %v1966
        %v1969 = vtanh.pop %v1967
        %v1970 = vtanh.pop %v1968
        %v1971 = vsub.f32 1.0, %v1962
        %v1972 = vsub.f32 1.0, %v1964
        %1975 = vrot.lane.b32.xlu0 %v1969, 64
        %v1976 = vpop.permute.xlu0 %1975
        %1977 = vrot.lane.b32.xlu0 %v1970, 64
        %v1978 = vpop.permute.xlu0 %1977
        %v1981 = vmul.f32 %v1971, %v1976
        %v1982 = vmul.f32 %v1972, %v1978
        %v1983 = vmul.f32 %v1962, %v1852
        %v1984 = vmul.f32 %v1964, %v1853
        %v1985 = vadd.f32 %v1981, %v1983
        %v1986 = vadd.f32 %v1982, %v1984
        %1989 = vrot.lane.b32.xlu0 %v1985, 64
        %v1990 = vpop.permute.xlu0 %1989
        %1991 = vrot.lane.b32.xlu0 %v1986, 64
        %v1992 = vpop.permute.xlu0 %1991
        %s1995 = scalar_lea.vmem [#allocation3], 96
        %1996 = vst.msk [vmem:[%s1995] sm:$0xff] %vm1010, %v1990
        %1997 = vst.msk [vmem:[%s1995 + $0x8] sm:$0xff] %vm1010, %v1992
        %s1998 = scalar_lea.vmem [#allocation2], 224
        %v1999 = vld [vmem:[%s1998] sm:$0xff]
        %v2000 = vld [vmem:[%s1998 + $0x8] sm:$0xff]
        %v2001 = vld [vmem:[%s1998 + $0x10] sm:$0xff]
        %v2002 = vld [vmem:[%s1998 + $0x18] sm:$0xff]
        %v2003 = vsel %vm1010, %v1990, 0
        %v2005 = vsel %vm1010, %v1992, 0
        %2007 = vmatprep.subr.mxu0 %v1043
        %2008 = vmatpush1.msra.mxu0 %v1042
        %2009 = vmatprep.subr.mxu0 %v1045
        %2010 = vmatpush1.msra.mxu0 %v1044
        %2011 = vmatprep.subr.mxu0 %v1047
        %2012 = vmatpush1.msra.mxu0 %v1046
        %2013 = vmatprep.subr.mxu0 %v1049
        %2014 = vmatpush1.msra.mxu0 %v1048
        %2015 = vmatprep.subr.mxu0 %v1051
        %2016 = vmatpush1.msra.mxu0 %v1050
        %2017 = vmatprep.subr.mxu0 %v1053
        %2018 = vmatpush1.msra.mxu0 %v1052
        %2019 = vmatprep.subr.mxu0 %v1055
        %2020 = vmatpush1.msra.mxu0 %v1054
        %2021 = vmatprep.subr.mxu0 %v1057
        %2022 = vmatpush1.msra.mxu0 %v1056
        %2023 = vmatprep.subr.mxu0 0.0
        %2024 = vmatpush1.msra.mxu0 0.0
        %2025 = vmatprep.subr.mxu0 0.0
        %2026 = vmatpush1.msra.mxu0 0.0
        %2027 = vmatprep.subr.mxu0 0.0
        %2028 = vmatpush1.msra.mxu0 0.0
        %2029 = vmatprep.subr.mxu0 0.0
        %2030 = vmatpush1.msra.mxu0 0.0
        %2031 = vmatprep.subr.mxu0 0.0
        %2032 = vmatpush1.msra.mxu0 0.0
        %2033 = vmatprep.subr.mxu0 0.0
        %2034 = vmatpush1.msra.mxu0 0.0
        %2035 = vmatprep.subr.mxu0 0.0
        %2036 = vmatpush1.msra.mxu0 0.0
        %2037 = vmatprep.subr.mxu0 0.0
        %2038 = vmatpush1.msra.mxu0 0.0
        %2039 = vmatprep.subr.mxu0 0.0
        %2040 = vmatpush1.msra.mxu0 0.0
        %2041 = vmatprep.subr.mxu0 0.0
        %2042 = vmatpush1.msra.mxu0 0.0
        %2043 = vmatprep.subr.mxu0 0.0
        %2044 = vmatpush1.msra.mxu0 0.0
        %2045 = vmatprep.subr.mxu0 0.0
        %2046 = vmatpush1.msra.mxu0 0.0
        %2047 = vmatprep.subr.mxu0 0.0
        %2048 = vmatpush1.msra.mxu0 0.0
        %2049 = vmatprep.subr.mxu0 0.0
        %2050 = vmatpush1.msra.mxu0 0.0
        %2051 = vmatprep.subr.mxu0 0.0
        %2052 = vmatpush1.msra.mxu0 0.0
        %2053 = vmatprep.subr.mxu0 0.0
        %2054 = vmatpush1.msra.mxu0 0.0
        %2055 = vmatprep.subr.mxu0 0.0
        %2056 = vmatpush1.msra.mxu0 0.0
        %2057 = vmatprep.subr.mxu0 0.0
        %2058 = vmatpush1.msra.mxu0 0.0
        %2059 = vmatprep.subr.mxu0 0.0
        %2060 = vmatpush1.msra.mxu0 0.0
        %2061 = vmatprep.subr.mxu0 0.0
        %2062 = vmatpush1.msra.mxu0 0.0
        %2063 = vmatprep.subr.mxu0 0.0
        %2064 = vmatpush1.msra.mxu0 0.0
        %2065 = vmatprep.subr.mxu0 0.0
        %2066 = vmatpush1.msra.mxu0 0.0
        %2067 = vmatprep.subr.mxu0 0.0
        %2068 = vmatpush1.msra.mxu0 0.0
        %2069 = vmatprep.subr.mxu0 0.0
        %2070 = vmatpush1.msra.mxu0 0.0
        %2071 = vmatprep.mubr.f32.mxu0 0.0
        %2072 = vmatmul.mubr.f32.gmra.mrb[0].mxu0 %v2003
        %v2073 = vpop.f32.mrb[0].mxu0
        %v2074 = vadd.f32 %v1067, %v2073
        %v2075 = vpop.f32.mrb[0].mxu0
        %v2076 = vadd.f32 %v1071, %v2075
        %2077 = vmatprep.mubr.f32.mxu0 0.0
        %2078 = vmatmul.mubr.f32.gmra.mrb[0].mxu0 %v2005
        %v2079 = vpop.f32.mrb[0].mxu0
        %v2080 = vadd.f32 %v1067, %v2079
        %v2081 = vpop.f32.mrb[0].mxu0
        %v2082 = vadd.f32 %v1071, %v2081
        %2083 = vdwg.mxu0
        %v2084 = vadd.f32 %v1999, %v2074
        %v2085 = vadd.f32 %v2001, %v2080
        %v2086 = vxor.u32 %v2084, 2147483648
        %v2087 = vxor.u32 %v2085, 2147483648
        %v2088 = vmul.f32 %v2086, 1.442695
        %v2089 = vpow.pop %v2088
        %v2090 = vmul.f32 %v2087, 1.442695
        %v2091 = vpow.pop %v2090
        %v2092 = vadd.f32 %v2089, 1.0
        %v2093 = vadd.f32 %v2091, 1.0
        %v2094 = vrcp.pop %v2092
        %v2095 = vmul.f32 1.0, %v2094
        %v2096 = vrcp.pop %v2093
        %v2097 = vmul.f32 1.0, %v2096
        %v2098 = vmul.f32 %v2095, %v2076
        %v2099 = vmul.f32 %v2097, %v2082
        %v2100 = vadd.f32 %v2000, %v2098
        %v2101 = vadd.f32 %v2002, %v2099
        %v2102 = vtanh.pop %v2100
        %v2103 = vtanh.pop %v2101
        %v2104 = vsub.f32 1.0, %v2095
        %v2105 = vsub.f32 1.0, %v2097
        %2108 = vrot.lane.b32.xlu0 %v2102, 64
        %v2109 = vpop.permute.xlu0 %2108
        %2110 = vrot.lane.b32.xlu0 %v2103, 64
        %v2111 = vpop.permute.xlu0 %2110
        %v2114 = vmul.f32 %v2104, %v2109
        %v2115 = vmul.f32 %v2105, %v2111
        %v2116 = vmul.f32 %v2095, %v1985
        %v2117 = vmul.f32 %v2097, %v1986
        %v2118 = vadd.f32 %v2114, %v2116
        %v2119 = vadd.f32 %v2115, %v2117
        %2122 = vrot.lane.b32.xlu0 %v2118, 64
        %v2123 = vpop.permute.xlu0 %2122
        %2124 = vrot.lane.b32.xlu0 %v2119, 64
        %v2125 = vpop.permute.xlu0 %2124
        %s2128 = scalar_lea.vmem [#allocation3], 112
        %2129 = vst.msk [vmem:[%s2128] sm:$0xff] %vm1010, %v2123
        %2130 = vst.msk [vmem:[%s2128 + $0x8] sm:$0xff] %vm1010, %v2125
        %v2131 = vld [vmem:[#allocation3] sm:$0xff]
        %v2132 = vld [vmem:[#allocation3 + $0x8] sm:$0xff]
        %v2133 = vld [vmem:[#allocation3 + $0x10] sm:$0xff]
        %v2134 = vld [vmem:[#allocation3 + $0x18] sm:$0xff]
        %v2135 = vld [vmem:[#allocation3 + $0x20] sm:$0xff]
        %v2136 = vld [vmem:[#allocation3 + $0x28] sm:$0xff]
        %v2137 = vld [vmem:[#allocation3 + $0x30] sm:$0xff]
        %v2138 = vld [vmem:[#allocation3 + $0x38] sm:$0xff]
        %v2139 = vld [vmem:[#allocation3 + $0x40] sm:$0xff]
        %v2140 = vld [vmem:[#allocation3 + $0x48] sm:$0xff]
        %v2141 = vld [vmem:[#allocation3 + $0x50] sm:$0xff]
        %v2142 = vld [vmem:[#allocation3 + $0x58] sm:$0xff]
        %v2143 = vld [vmem:[#allocation3 + $0x60] sm:$0xff]
        %v2144 = vld [vmem:[#allocation3 + $0x68] sm:$0xff]
        %v2145 = vld [vmem:[#allocation3 + $0x70] sm:$0xff]
        %v2146 = vld [vmem:[#allocation3 + $0x78] sm:$0xff]
        %v2147 = vpack.c.bf16 %v2132, %v2131
        %v2148 = vpack.c.bf16 %v2134, %v2133
        %v2149 = vpack.c.bf16 %v2136, %v2135
        %v2150 = vpack.c.bf16 %v2138, %v2137
        %v2151 = vpack.c.bf16 %v2140, %v2139
        %v2152 = vpack.c.bf16 %v2142, %v2141
        %v2153 = vpack.c.bf16 %v2144, %v2143
        %v2154 = vpack.c.bf16 %v2146, %v2145
        %v2155 = vld [vmem:[%s8] sm:$0xf]
        %v2156 = vld [vmem:[%s8 + $0x4] sm:$0xf]
        %v2157 = vld [vmem:[%s8 + $0x8] sm:$0xf]
        %v2158 = vld [vmem:[%s8 + $0xc] sm:$0xf]
        %v2159 = vld [vmem:[%s8 + $0x10] sm:$0xf]
        %v2160 = vld [vmem:[%s8 + $0x14] sm:$0xf]
        %v2161 = vld [vmem:[%s8 + $0x18] sm:$0xf]
        %v2162 = vld [vmem:[%s8 + $0x1c] sm:$0xf]
        %v2163 = vld [vmem:[%s9] sm:$0x1]
        %v2165 = vlaneseq
        %v2166 = vshrl.u32 %v2165, 7
        %v2167 = vsub.s32 0, %v2166
        %v2168 = vrot.slane %v2163, %v2167
        %v2178 = vunpack.c.l.b16 %v2155
        %v2179 = vunpack.c.l.b16 %v2156
        %v2180 = vunpack.c.l.b16 %v2157
        %v2181 = vunpack.c.l.b16 %v2158
        %v2182 = vunpack.c.l.b16 %v2159
        %v2183 = vunpack.c.l.b16 %v2160
        %v2184 = vunpack.c.l.b16 %v2161
        %v2185 = vunpack.c.l.b16 %v2162
        %v2186 = vpack.c.b16 %v2179, %v2178
        %v2187 = vpack.c.b16 %v2181, %v2180
        %v2188 = vpack.c.b16 %v2183, %v2182
        %v2189 = vpack.c.b16 %v2185, %v2184
        %v2195 = vsel %vm1010, %v2147, 0
        %v2198 = vsel %vm1010, %v2148, 0
        %v2201 = vsel %vm1010, %v2149, 0
        %v2204 = vsel %vm1010, %v2150, 0
        %v2207 = vsel %vm1010, %v2151, 0
        %v2210 = vsel %vm1010, %v2152, 0
        %v2213 = vsel %vm1010, %v2153, 0
        %v2216 = vsel %vm1010, %v2154, 0
        %2218 = vmatprep.subr.bf16.mxu0 0
        %2219 = vmatpush1.bf16.msra.mxu0 %v2186
        %2220 = vmatprep.subr.bf16.mxu0 0
        %2221 = vmatpush1.bf16.msra.mxu0 %v2187
        %2222 = vmatprep.subr.bf16.mxu0 0
        %2223 = vmatpush1.bf16.msra.mxu0 %v2188
        %2224 = vmatprep.subr.bf16.mxu0 0
        %2225 = vmatpush1.bf16.msra.mxu0 %v2189
        %2226 = vmatprep.subr.bf16.mxu0 0
        %2227 = vmatpush1.bf16.msra.mxu0 0
        %2228 = vmatprep.subr.bf16.mxu0 0
        %2229 = vmatpush1.bf16.msra.mxu0 0
        %2230 = vmatprep.subr.bf16.mxu0 0
        %2231 = vmatpush1.bf16.msra.mxu0 0
        %2232 = vmatprep.subr.bf16.mxu0 0
        %2233 = vmatpush1.bf16.msra.mxu0 0
        %2234 = vmatprep.subr.bf16.mxu0 0
        %2235 = vmatpush1.bf16.msra.mxu0 0
        %2236 = vmatprep.subr.bf16.mxu0 0
        %2237 = vmatpush1.bf16.msra.mxu0 0
        %2238 = vmatprep.subr.bf16.mxu0 0
        %2239 = vmatpush1.bf16.msra.mxu0 0
        %2240 = vmatprep.subr.bf16.mxu0 0
        %2241 = vmatpush1.bf16.msra.mxu0 0
        %2242 = vmatprep.subr.bf16.mxu0 0
        %2243 = vmatpush1.bf16.msra.mxu0 0
        %2244 = vmatprep.subr.bf16.mxu0 0
        %2245 = vmatpush1.bf16.msra.mxu0 0
        %2246 = vmatprep.subr.bf16.mxu0 0
        %2247 = vmatpush1.bf16.msra.mxu0 0
        %2248 = vmatprep.subr.bf16.mxu0 0
        %2249 = vmatpush1.bf16.msra.mxu0 0
        %2250 = vmatprep.mubr.bf16.mxu0 0
        %2251 = vmatmul.mubr.bf16.gmra.mrb[0].mxu0 %v2195
        %v2252 = vpop.f32.mrb[0].mxu0
        %v2253 = vadd.f32 %v2168, %v2252
        %v2254 = vpop.f32.mrb[0].mxu0
        %v2255 = vpop.f32.mrb[0].mxu0
        %v2256 = vadd.f32 %v2168, %v2255
        %v2257 = vpop.f32.mrb[0].mxu0
        %2258 = vmatprep.mubr.bf16.mxu0 0
        %2259 = vmatmul.mubr.bf16.gmra.mrb[0].mxu0 %v2198
        %v2260 = vpop.f32.mrb[0].mxu0
        %v2261 = vadd.f32 %v2168, %v2260
        %v2262 = vpop.f32.mrb[0].mxu0
        %v2263 = vpop.f32.mrb[0].mxu0
        %v2264 = vadd.f32 %v2168, %v2263
        %v2265 = vpop.f32.mrb[0].mxu0
        %2266 = vmatprep.mubr.bf16.mxu0 0
        %2267 = vmatmul.mubr.bf16.gmra.mrb[0].mxu0 %v2201
        %v2268 = vpop.f32.mrb[0].mxu0
        %v2269 = vadd.f32 %v2168, %v2268
        %v2270 = vpop.f32.mrb[0].mxu0
        %v2271 = vpop.f32.mrb[0].mxu0
        %v2272 = vadd.f32 %v2168, %v2271
        %v2273 = vpop.f32.mrb[0].mxu0
        %2274 = vmatprep.mubr.bf16.mxu0 0
        %2275 = vmatmul.mubr.bf16.gmra.mrb[0].mxu0 %v2204
        %v2276 = vpop.f32.mrb[0].mxu0
        %v2277 = vadd.f32 %v2168, %v2276
        %v2278 = vpop.f32.mrb[0].mxu0
        %v2279 = vpop.f32.mrb[0].mxu0
        %v2280 = vadd.f32 %v2168, %v2279
        %v2281 = vpop.f32.mrb[0].mxu0
        %2282 = vmatprep.mubr.bf16.mxu0 0
        %2283 = vmatmul.mubr.bf16.gmra.mrb[0].mxu0 %v2207
        %v2284 = vpop.f32.mrb[0].mxu0
        %v2285 = vadd.f32 %v2168, %v2284
        %v2286 = vpop.f32.mrb[0].mxu0
        %v2287 = vpop.f32.mrb[0].mxu0
        %v2288 = vadd.f32 %v2168, %v2287
        %v2289 = vpop.f32.mrb[0].mxu0
        %2290 = vmatprep.mubr.bf16.mxu0 0
        %2291 = vmatmul.mubr.bf16.gmra.mrb[0].mxu0 %v2210
        %v2292 = vpop.f32.mrb[0].mxu0
        %v2293 = vadd.f32 %v2168, %v2292
        %v2294 = vpop.f32.mrb[0].mxu0
        %v2295 = vpop.f32.mrb[0].mxu0
        %v2296 = vadd.f32 %v2168, %v2295
        %v2297 = vpop.f32.mrb[0].mxu0
        %2298 = vmatprep.mubr.bf16.mxu0 0
        %2299 = vmatmul.mubr.bf16.gmra.mrb[0].mxu0 %v2213
        %v2300 = vpop.f32.mrb[0].mxu0
        %v2301 = vadd.f32 %v2168, %v2300
        %v2302 = vpop.f32.mrb[0].mxu0
        %v2303 = vpop.f32.mrb[0].mxu0
        %v2304 = vadd.f32 %v2168, %v2303
        %v2305 = vpop.f32.mrb[0].mxu0
        %2306 = vmatprep.mubr.bf16.mxu0 0
        %2307 = vmatmul.mubr.bf16.gmra.mrb[0].mxu0 %v2216
        %v2308 = vpop.f32.mrb[0].mxu0
        %v2309 = vadd.f32 %v2168, %v2308
        %v2310 = vpop.f32.mrb[0].mxu0
        %v2311 = vpop.f32.mrb[0].mxu0
        %v2312 = vadd.f32 %v2168, %v2311
        %v2313 = vpop.f32.mrb[0].mxu0
        %2314 = vdwg.mxu0
        %v2315 = vpack.c.bf16 %v557, %v556
        %v2316 = vpack.c.bf16 %v559, %v558
        %v2317 = vpack.c.bf16 %v561, %v560
        %v2318 = vpack.c.bf16 %v563, %v562
        %v2319 = vpack.c.bf16 %v565, %v564
        %v2320 = vpack.c.bf16 %v567, %v566
        %v2321 = vpack.c.bf16 %v569, %v568
        %v2322 = vpack.c.bf16 %v571, %v570
        %v2323 = vld [vmem:[%s10] sm:$0xf]
        %v2324 = vld [vmem:[%s10 + $0x4] sm:$0xf]
        %v2325 = vld [vmem:[%s10 + $0x8] sm:$0xf]
        %v2326 = vld [vmem:[%s10 + $0xc] sm:$0xf]
        %v2331 = vunpack.c.l.b16 %v2323
        %v2332 = vunpack.c.l.b16 %v2324
        %v2333 = vunpack.c.l.b16 %v2325
        %v2334 = vunpack.c.l.b16 %v2326
        %v2335 = vpack.c.b16 %v2332, %v2331
        %v2336 = vpack.c.b16 %v2334, %v2333
        %v2340 = vsel %vm572, %v2315, 0
        %v2343 = vsel %vm572, %v2316, 0
        %v2346 = vsel %vm572, %v2317, 0
        %v2349 = vsel %vm572, %v2318, 0
        %v2352 = vsel %vm572, %v2319, 0
        %v2355 = vsel %vm572, %v2320, 0
        %v2358 = vsel %vm572, %v2321, 0
        %v2361 = vsel %vm572, %v2322, 0
        %2363 = vmatprep.subr.bf16.mxu0 0
        %2364 = vmatpush1.bf16.msra.mxu0 %v2335
        %2365 = vmatprep.subr.bf16.mxu0 0
        %2366 = vmatpush1.bf16.msra.mxu0 %v2336
        %2367 = vmatprep.subr.bf16.mxu0 0
        %2368 = vmatpush1.bf16.msra.mxu0 0
        %2369 = vmatprep.subr.bf16.mxu0 0
        %2370 = vmatpush1.bf16.msra.mxu0 0
        %2371 = vmatprep.subr.bf16.mxu0 0
        %2372 = vmatpush1.bf16.msra.mxu0 0
        %2373 = vmatprep.subr.bf16.mxu0 0
        %2374 = vmatpush1.bf16.msra.mxu0 0
        %2375 = vmatprep.subr.bf16.mxu0 0
        %2376 = vmatpush1.bf16.msra.mxu0 0
        %2377 = vmatprep.subr.bf16.mxu0 0
        %2378 = vmatpush1.bf16.msra.mxu0 0
        %2379 = vmatprep.subr.bf16.mxu0 0
        %2380 = vmatpush1.bf16.msra.mxu0 0
        %2381 = vmatprep.subr.bf16.mxu0 0
        %2382 = vmatpush1.bf16.msra.mxu0 0
        %2383 = vmatprep.subr.bf16.mxu0 0
        %2384 = vmatpush1.bf16.msra.mxu0 0
        %2385 = vmatprep.subr.bf16.mxu0 0
        %2386 = vmatpush1.bf16.msra.mxu0 0
        %2387 = vmatprep.subr.bf16.mxu0 0
        %2388 = vmatpush1.bf16.msra.mxu0 0
        %2389 = vmatprep.subr.bf16.mxu0 0
        %2390 = vmatpush1.bf16.msra.mxu0 0
        %2391 = vmatprep.subr.bf16.mxu0 0
        %2392 = vmatpush1.bf16.msra.mxu0 0
        %2393 = vmatprep.subr.bf16.mxu0 0
        %2394 = vmatpush1.bf16.msra.mxu0 0
        %2395 = vmatprep.mubr.bf16.mxu0 0
        %2396 = vmatmul.mubr.bf16.gmra.mrb[0].mxu0 %v2340
        %v2397 = vpop.f32.mrb[0].mxu0
        %v2398 = vadd.f32 0.0, %v2397
        %v2399 = vpop.f32.mrb[0].mxu0
        %v2400 = vpop.f32.mrb[0].mxu0
        %v2401 = vadd.f32 0.0, %v2400
        %v2402 = vpop.f32.mrb[0].mxu0
        %2403 = vmatprep.mubr.bf16.mxu0 0
        %2404 = vmatmul.mubr.bf16.gmra.mrb[0].mxu0 %v2343
        %v2405 = vpop.f32.mrb[0].mxu0
        %v2406 = vadd.f32 0.0, %v2405
        %v2407 = vpop.f32.mrb[0].mxu0
        %v2408 = vpop.f32.mrb[0].mxu0
        %v2409 = vadd.f32 0.0, %v2408
        %v2410 = vpop.f32.mrb[0].mxu0
        %2411 = vmatprep.mubr.bf16.mxu0 0
        %2412 = vmatmul.mubr.bf16.gmra.mrb[0].mxu0 %v2346
        %v2413 = vpop.f32.mrb[0].mxu0
        %v2414 = vadd.f32 0.0, %v2413
        %v2415 = vpop.f32.mrb[0].mxu0
        %v2416 = vpop.f32.mrb[0].mxu0
        %v2417 = vadd.f32 0.0, %v2416
        %v2418 = vpop.f32.mrb[0].mxu0
        %2419 = vmatprep.mubr.bf16.mxu0 0
        %2420 = vmatmul.mubr.bf16.gmra.mrb[0].mxu0 %v2349
        %v2421 = vpop.f32.mrb[0].mxu0
        %v2422 = vadd.f32 0.0, %v2421
        %v2423 = vpop.f32.mrb[0].mxu0
        %v2424 = vpop.f32.mrb[0].mxu0
        %v2425 = vadd.f32 0.0, %v2424
        %v2426 = vpop.f32.mrb[0].mxu0
        %2427 = vmatprep.mubr.bf16.mxu0 0
        %2428 = vmatmul.mubr.bf16.gmra.mrb[0].mxu0 %v2352
        %v2429 = vpop.f32.mrb[0].mxu0
        %v2430 = vadd.f32 0.0, %v2429
        %v2431 = vpop.f32.mrb[0].mxu0
        %v2432 = vpop.f32.mrb[0].mxu0
        %v2433 = vadd.f32 0.0, %v2432
        %v2434 = vpop.f32.mrb[0].mxu0
        %2435 = vmatprep.mubr.bf16.mxu0 0
        %2436 = vmatmul.mubr.bf16.gmra.mrb[0].mxu0 %v2355
        %v2437 = vpop.f32.mrb[0].mxu0
        %v2438 = vadd.f32 0.0, %v2437
        %v2439 = vpop.f32.mrb[0].mxu0
        %v2440 = vpop.f32.mrb[0].mxu0
        %v2441 = vadd.f32 0.0, %v2440
        %v2442 = vpop.f32.mrb[0].mxu0
        %2443 = vmatprep.mubr.bf16.mxu0 0
        %2444 = vmatmul.mubr.bf16.gmra.mrb[0].mxu0 %v2358
        %v2445 = vpop.f32.mrb[0].mxu0
        %v2446 = vadd.f32 0.0, %v2445
        %v2447 = vpop.f32.mrb[0].mxu0
        %v2448 = vpop.f32.mrb[0].mxu0
        %v2449 = vadd.f32 0.0, %v2448
        %v2450 = vpop.f32.mrb[0].mxu0
        %2451 = vmatprep.mubr.bf16.mxu0 0
        %2452 = vmatmul.mubr.bf16.gmra.mrb[0].mxu0 %v2361
        %v2453 = vpop.f32.mrb[0].mxu0
        %v2454 = vadd.f32 0.0, %v2453
        %v2455 = vpop.f32.mrb[0].mxu0
        %v2456 = vpop.f32.mrb[0].mxu0
        %v2457 = vadd.f32 0.0, %v2456
        %v2458 = vpop.f32.mrb[0].mxu0
        %2459 = vdwg.mxu0
        %v2460 = vld [vmem:[%s11] sm:$0x1]
        %v2462 = vlaneseq
        %v2463 = vshrl.u32 %v2462, 7
        %v2464 = vsub.s32 0, %v2463
        %v2465 = vrot.slane %v2460, %v2464
        %v2467 = vmul.f32 %v2398, %v2465
        %v2468 = vmul.f32 %v2401, %v2465
        %v2469 = vmul.f32 %v2406, %v2465
        %v2470 = vmul.f32 %v2409, %v2465
        %v2471 = vmul.f32 %v2414, %v2465
        %v2472 = vmul.f32 %v2417, %v2465
        %v2473 = vmul.f32 %v2422, %v2465
        %v2474 = vmul.f32 %v2425, %v2465
        %v2475 = vmul.f32 %v2430, %v2465
        %v2476 = vmul.f32 %v2433, %v2465
        %v2477 = vmul.f32 %v2438, %v2465
        %v2478 = vmul.f32 %v2441, %v2465
        %v2479 = vmul.f32 %v2446, %v2465
        %v2480 = vmul.f32 %v2449, %v2465
        %v2481 = vmul.f32 %v2454, %v2465
        %v2482 = vmul.f32 %v2457, %v2465
        %v2483 = vld [vmem:[%s12] sm:$0x1]
        %v2485 = vlaneseq
        %v2486 = vshrl.u32 %v2485, 7
        %v2487 = vsub.s32 0, %v2486
        %v2488 = vrot.slane %v2483, %v2487
        %v2490 = vadd.f32 %v2467, %v2488
        %v2491 = vadd.f32 %v2468, %v2488
        %v2492 = vadd.f32 %v2469, %v2488
        %v2493 = vadd.f32 %v2470, %v2488
        %v2494 = vadd.f32 %v2471, %v2488
        %v2495 = vadd.f32 %v2472, %v2488
        %v2496 = vadd.f32 %v2473, %v2488
        %v2497 = vadd.f32 %v2474, %v2488
        %v2498 = vadd.f32 %v2475, %v2488
        %v2499 = vadd.f32 %v2476, %v2488
        %v2500 = vadd.f32 %v2477, %v2488
        %v2501 = vadd.f32 %v2478, %v2488
        %v2502 = vadd.f32 %v2479, %v2488
        %v2503 = vadd.f32 %v2480, %v2488
        %v2504 = vadd.f32 %v2481, %v2488
        %v2505 = vadd.f32 %v2482, %v2488
        %vm2506 = vcmp.ge.f32.partialorder %v2490, 0.0
        %vm2507 = vcmp.ge.f32.partialorder %v2491, 0.0
        %vm2508 = vcmp.ge.f32.partialorder %v2492, 0.0
        %vm2509 = vcmp.ge.f32.partialorder %v2493, 0.0
        %vm2510 = vcmp.ge.f32.partialorder %v2494, 0.0
        %vm2511 = vcmp.ge.f32.partialorder %v2495, 0.0
        %vm2512 = vcmp.ge.f32.partialorder %v2496, 0.0
        %vm2513 = vcmp.ge.f32.partialorder %v2497, 0.0
        %vm2514 = vcmp.ge.f32.partialorder %v2498, 0.0
        %vm2515 = vcmp.ge.f32.partialorder %v2499, 0.0
        %vm2516 = vcmp.ge.f32.partialorder %v2500, 0.0
        %vm2517 = vcmp.ge.f32.partialorder %v2501, 0.0
        %vm2518 = vcmp.ge.f32.partialorder %v2502, 0.0
        %vm2519 = vcmp.ge.f32.partialorder %v2503, 0.0
        %vm2520 = vcmp.ge.f32.partialorder %v2504, 0.0
        %vm2521 = vcmp.ge.f32.partialorder %v2505, 0.0
        %v2522 = vmul.f32 %v2490, 0.25
        %v2523 = vmul.f32 %v2491, 0.25
        %v2524 = vmul.f32 %v2492, 0.25
        %v2525 = vmul.f32 %v2493, 0.25
        %v2526 = vmul.f32 %v2494, 0.25
        %v2527 = vmul.f32 %v2495, 0.25
        %v2528 = vmul.f32 %v2496, 0.25
        %v2529 = vmul.f32 %v2497, 0.25
        %v2530 = vmul.f32 %v2498, 0.25
        %v2531 = vmul.f32 %v2499, 0.25
        %v2532 = vmul.f32 %v2500, 0.25
        %v2533 = vmul.f32 %v2501, 0.25
        %v2534 = vmul.f32 %v2502, 0.25
        %v2535 = vmul.f32 %v2503, 0.25
        %v2536 = vmul.f32 %v2504, 0.25
        %v2537 = vmul.f32 %v2505, 0.25
        %v2538 = vsel %vm2506, %v2490, %v2522
        %v2539 = vsel %vm2507, %v2491, %v2523
        %v2540 = vsel %vm2508, %v2492, %v2524
        %v2541 = vsel %vm2509, %v2493, %v2525
        %v2542 = vsel %vm2510, %v2494, %v2526
        %v2543 = vsel %vm2511, %v2495, %v2527
        %v2544 = vsel %vm2512, %v2496, %v2528
        %v2545 = vsel %vm2513, %v2497, %v2529
        %v2546 = vsel %vm2514, %v2498, %v2530
        %v2547 = vsel %vm2515, %v2499, %v2531
        %v2548 = vsel %vm2516, %v2500, %v2532
        %v2549 = vsel %vm2517, %v2501, %v2533
        %v2550 = vsel %vm2518, %v2502, %v2534
        %v2551 = vsel %vm2519, %v2503, %v2535
        %v2552 = vsel %vm2520, %v2504, %v2536
        %v2553 = vsel %vm2521, %v2505, %v2537
        %v2554 = vpack.c.bf16 %v2539, %v2538
        %v2555 = vpack.c.bf16 %v2541, %v2540
        %v2556 = vpack.c.bf16 %v2543, %v2542
        %v2557 = vpack.c.bf16 %v2545, %v2544
        %v2558 = vpack.c.bf16 %v2547, %v2546
        %v2559 = vpack.c.bf16 %v2549, %v2548
        %v2560 = vpack.c.bf16 %v2551, %v2550
        %v2561 = vpack.c.bf16 %v2553, %v2552
        %vm2562 = vcmask 130048
        %v2564 = vsel %vm2562, %v2554, 0
        %2566 = vmatprep.subr.bf16.mxu0 0
        %2567 = vmatpush1.bf16.xpose.msra.mxu0 %v2564
        %2568 = vmatprep.subr.bf16.mxu0 0
        %2569 = vmatpush1.bf16.xpose.msra.mxu0 0
        %2570 = vmatprep.subr.bf16.mxu0 0
        %2571 = vmatpush1.bf16.xpose.msra.mxu0 0
        %2572 = vmatprep.subr.bf16.mxu0 0
        %2573 = vmatpush1.bf16.xpose.msra.mxu0 0
        %2574 = vmatprep.subr.bf16.mxu0 0
        %2575 = vmatpush1.bf16.xpose.msra.mxu0 0
        %2576 = vmatprep.subr.bf16.mxu0 0
        %2577 = vmatpush1.bf16.xpose.msra.mxu0 0
        %2578 = vmatprep.subr.bf16.mxu0 0
        %2579 = vmatpush1.bf16.xpose.msra.mxu0 0
        %2580 = vmatprep.subr.bf16.mxu0 0
        %2581 = vmatpush1.bf16.xpose.msra.mxu0 0
        %2582 = vmatprep.subr.bf16.mxu0 0
        %2583 = vmatpush1.bf16.xpose.msra.mxu0 0
        %2584 = vmatprep.subr.bf16.mxu0 0
        %2585 = vmatpush1.bf16.xpose.msra.mxu0 0
        %2586 = vmatprep.subr.bf16.mxu0 0
        %2587 = vmatpush1.bf16.xpose.msra.mxu0 0
        %2588 = vmatprep.subr.bf16.mxu0 0
        %2589 = vmatpush1.bf16.xpose.msra.mxu0 0
        %2590 = vmatprep.subr.bf16.mxu0 0
        %2591 = vmatpush1.bf16.xpose.msra.mxu0 0
        %2592 = vmatprep.subr.bf16.mxu0 0
        %2593 = vmatpush1.bf16.xpose.msra.mxu0 0
        %2594 = vmatprep.subr.bf16.mxu0 0
        %2595 = vmatpush1.bf16.xpose.msra.mxu0 0
        %2596 = vmatprep.subr.bf16.mxu0 0
        %2597 = vmatpush1.bf16.xpose.msra.mxu0 0
        %2598 = vmatprep.mubr.bf16.mxu0 0
        %2599 = vmatmul.mubr.bf16.gmra.mrb[0].mxu0 %v2564
        %v2600 = vpop.f32.mrb[0].mxu0
        %v2601 = vadd.f32 0.0, %v2600
        %v2602 = vpop.f32.mrb[0].mxu0
        %v2603 = vpop.f32.mrb[0].mxu0
        %v2604 = vadd.f32 0.0, %v2603
        %v2605 = vpop.f32.mrb[0].mxu0
        %2606 = vdwg.mxu0
        %v2608 = vsel %vm2562, %v2555, 0
        %2610 = vmatprep.subr.bf16.mxu0 0
        %2611 = vmatpush1.bf16.xpose.msra.mxu0 %v2608
        %2612 = vmatprep.subr.bf16.mxu0 0
        %2613 = vmatpush1.bf16.xpose.msra.mxu0 0
        %2614 = vmatprep.subr.bf16.mxu0 0
        %2615 = vmatpush1.bf16.xpose.msra.mxu0 0
        %2616 = vmatprep.subr.bf16.mxu0 0
        %2617 = vmatpush1.bf16.xpose.msra.mxu0 0
        %2618 = vmatprep.subr.bf16.mxu0 0
        %2619 = vmatpush1.bf16.xpose.msra.mxu0 0
        %2620 = vmatprep.subr.bf16.mxu0 0
        %2621 = vmatpush1.bf16.xpose.msra.mxu0 0
        %2622 = vmatprep.subr.bf16.mxu0 0
        %2623 = vmatpush1.bf16.xpose.msra.mxu0 0
        %2624 = vmatprep.subr.bf16.mxu0 0
        %2625 = vmatpush1.bf16.xpose.msra.mxu0 0
        %2626 = vmatprep.subr.bf16.mxu0 0
        %2627 = vmatpush1.bf16.xpose.msra.mxu0 0
        %2628 = vmatprep.subr.bf16.mxu0 0
        %2629 = vmatpush1.bf16.xpose.msra.mxu0 0
        %2630 = vmatprep.subr.bf16.mxu0 0
        %2631 = vmatpush1.bf16.xpose.msra.mxu0 0
        %2632 = vmatprep.subr.bf16.mxu0 0
        %2633 = vmatpush1.bf16.xpose.msra.mxu0 0
        %2634 = vmatprep.subr.bf16.mxu0 0
        %2635 = vmatpush1.bf16.xpose.msra.mxu0 0
        %2636 = vmatprep.subr.bf16.mxu0 0
        %2637 = vmatpush1.bf16.xpose.msra.mxu0 0
        %2638 = vmatprep.subr.bf16.mxu0 0
        %2639 = vmatpush1.bf16.xpose.msra.mxu0 0
        %2640 = vmatprep.subr.bf16.mxu0 0
        %2641 = vmatpush1.bf16.xpose.msra.mxu0 0
        %2642 = vmatprep.mubr.bf16.mxu0 0
        %2643 = vmatmul.mubr.bf16.gmra.mrb[0].mxu0 %v2608
        %v2644 = vpop.f32.mrb[0].mxu0
        %v2645 = vadd.f32 0.0, %v2644
        %v2646 = vpop.f32.mrb[0].mxu0
        %v2647 = vpop.f32.mrb[0].mxu0
        %v2648 = vadd.f32 0.0, %v2647
        %v2649 = vpop.f32.mrb[0].mxu0
        %2650 = vdwg.mxu0
        %v2652 = vsel %vm2562, %v2556, 0
        %2654 = vmatprep.subr.bf16.mxu0 0
        %2655 = vmatpush1.bf16.xpose.msra.mxu0 %v2652
        %2656 = vmatprep.subr.bf16.mxu0 0
        %2657 = vmatpush1.bf16.xpose.msra.mxu0 0
        %2658 = vmatprep.subr.bf16.mxu0 0
        %2659 = vmatpush1.bf16.xpose.msra.mxu0 0
        %2660 = vmatprep.subr.bf16.mxu0 0
        %2661 = vmatpush1.bf16.xpose.msra.mxu0 0
        %2662 = vmatprep.subr.bf16.mxu0 0
        %2663 = vmatpush1.bf16.xpose.msra.mxu0 0
        %2664 = vmatprep.subr.bf16.mxu0 0
        %2665 = vmatpush1.bf16.xpose.msra.mxu0 0
        %2666 = vmatprep.subr.bf16.mxu0 0
        %2667 = vmatpush1.bf16.xpose.msra.mxu0 0
        %2668 = vmatprep.subr.bf16.mxu0 0
        %2669 = vmatpush1.bf16.xpose.msra.mxu0 0
        %2670 = vmatprep.subr.bf16.mxu0 0
        %2671 = vmatpush1.bf16.xpose.msra.mxu0 0
        %2672 = vmatprep.subr.bf16.mxu0 0
        %2673 = vmatpush1.bf16.xpose.msra.mxu0 0
        %2674 = vmatprep.subr.bf16.mxu0 0
        %2675 = vmatpush1.bf16.xpose.msra.mxu0 0
        %2676 = vmatprep.subr.bf16.mxu0 0
        %2677 = vmatpush1.bf16.xpose.msra.mxu0 0
        %2678 = vmatprep.subr.bf16.mxu0 0
        %2679 = vmatpush1.bf16.xpose.msra.mxu0 0
        %2680 = vmatprep.subr.bf16.mxu0 0
        %2681 = vmatpush1.bf16.xpose.msra.mxu0 0
        %2682 = vmatprep.subr.bf16.mxu0 0
        %2683 = vmatpush1.bf16.xpose.msra.mxu0 0
        %2684 = vmatprep.subr.bf16.mxu0 0
        %2685 = vmatpush1.bf16.xpose.msra.mxu0 0
        %2686 = vmatprep.mubr.bf16.mxu0 0
        %2687 = vmatmul.mubr.bf16.gmra.mrb[0].mxu0 %v2652
        %v2688 = vpop.f32.mrb[0].mxu0
        %v2689 = vadd.f32 0.0, %v2688
        %v2690 = vpop.f32.mrb[0].mxu0
        %v2691 = vpop.f32.mrb[0].mxu0
        %v2692 = vadd.f32 0.0, %v2691
        %v2693 = vpop.f32.mrb[0].mxu0
        %2694 = vdwg.mxu0
        %v2696 = vsel %vm2562, %v2557, 0
        %2698 = vmatprep.subr.bf16.mxu0 0
        %2699 = vmatpush1.bf16.xpose.msra.mxu0 %v2696
        %2700 = vmatprep.subr.bf16.mxu0 0
        %2701 = vmatpush1.bf16.xpose.msra.mxu0 0
        %2702 = vmatprep.subr.bf16.mxu0 0
        %2703 = vmatpush1.bf16.xpose.msra.mxu0 0
        %2704 = vmatprep.subr.bf16.mxu0 0
        %2705 = vmatpush1.bf16.xpose.msra.mxu0 0
        %2706 = vmatprep.subr.bf16.mxu0 0
        %2707 = vmatpush1.bf16.xpose.msra.mxu0 0
        %2708 = vmatprep.subr.bf16.mxu0 0
        %2709 = vmatpush1.bf16.xpose.msra.mxu0 0
        %2710 = vmatprep.subr.bf16.mxu0 0
        %2711 = vmatpush1.bf16.xpose.msra.mxu0 0
        %2712 = vmatprep.subr.bf16.mxu0 0
        %2713 = vmatpush1.bf16.xpose.msra.mxu0 0
        %2714 = vmatprep.subr.bf16.mxu0 0
        %2715 = vmatpush1.bf16.xpose.msra.mxu0 0
        %2716 = vmatprep.subr.bf16.mxu0 0
        %2717 = vmatpush1.bf16.xpose.msra.mxu0 0
        %2718 = vmatprep.subr.bf16.mxu0 0
        %2719 = vmatpush1.bf16.xpose.msra.mxu0 0
        %2720 = vmatprep.subr.bf16.mxu0 0
        %2721 = vmatpush1.bf16.xpose.msra.mxu0 0
        %2722 = vmatprep.subr.bf16.mxu0 0
        %2723 = vmatpush1.bf16.xpose.msra.mxu0 0
        %2724 = vmatprep.subr.bf16.mxu0 0
        %2725 = vmatpush1.bf16.xpose.msra.mxu0 0
        %2726 = vmatprep.subr.bf16.mxu0 0
        %2727 = vmatpush1.bf16.xpose.msra.mxu0 0
        %2728 = vmatprep.subr.bf16.mxu0 0
        %2729 = vmatpush1.bf16.xpose.msra.mxu0 0
        %2730 = vmatprep.mubr.bf16.mxu0 0
        %2731 = vmatmul.mubr.bf16.gmra.mrb[0].mxu0 %v2696
        %v2732 = vpop.f32.mrb[0].mxu0
        %v2733 = vadd.f32 0.0, %v2732
        %v2734 = vpop.f32.mrb[0].mxu0
        %v2735 = vpop.f32.mrb[0].mxu0
        %v2736 = vadd.f32 0.0, %v2735
        %v2737 = vpop.f32.mrb[0].mxu0
        %2738 = vdwg.mxu0
        %v2740 = vsel %vm2562, %v2558, 0
        %2742 = vmatprep.subr.bf16.mxu0 0
        %2743 = vmatpush1.bf16.xpose.msra.mxu0 %v2740
        %2744 = vmatprep.subr.bf16.mxu0 0
        %2745 = vmatpush1.bf16.xpose.msra.mxu0 0
        %2746 = vmatprep.subr.bf16.mxu0 0
        %2747 = vmatpush1.bf16.xpose.msra.mxu0 0
        %2748 = vmatprep.subr.bf16.mxu0 0
        %2749 = vmatpush1.bf16.xpose.msra.mxu0 0
        %2750 = vmatprep.subr.bf16.mxu0 0
        %2751 = vmatpush1.bf16.xpose.msra.mxu0 0
        %2752 = vmatprep.subr.bf16.mxu0 0
        %2753 = vmatpush1.bf16.xpose.msra.mxu0 0
        %2754 = vmatprep.subr.bf16.mxu0 0
        %2755 = vmatpush1.bf16.xpose.msra.mxu0 0
        %2756 = vmatprep.subr.bf16.mxu0 0
        %2757 = vmatpush1.bf16.xpose.msra.mxu0 0
        %2758 = vmatprep.subr.bf16.mxu0 0
        %2759 = vmatpush1.bf16.xpose.msra.mxu0 0
        %2760 = vmatprep.subr.bf16.mxu0 0
        %2761 = vmatpush1.bf16.xpose.msra.mxu0 0
        %2762 = vmatprep.subr.bf16.mxu0 0
        %2763 = vmatpush1.bf16.xpose.msra.mxu0 0
        %2764 = vmatprep.subr.bf16.mxu0 0
        %2765 = vmatpush1.bf16.xpose.msra.mxu0 0
        %2766 = vmatprep.subr.bf16.mxu0 0
        %2767 = vmatpush1.bf16.xpose.msra.mxu0 0
        %2768 = vmatprep.subr.bf16.mxu0 0
        %2769 = vmatpush1.bf16.xpose.msra.mxu0 0
        %2770 = vmatprep.subr.bf16.mxu0 0
        %2771 = vmatpush1.bf16.xpose.msra.mxu0 0
        %2772 = vmatprep.subr.bf16.mxu0 0
        %2773 = vmatpush1.bf16.xpose.msra.mxu0 0
        %2774 = vmatprep.mubr.bf16.mxu0 0
        %2775 = vmatmul.mubr.bf16.gmra.mrb[0].mxu0 %v2740
        %v2776 = vpop.f32.mrb[0].mxu0
        %v2777 = vadd.f32 0.0, %v2776
        %v2778 = vpop.f32.mrb[0].mxu0
        %v2779 = vpop.f32.mrb[0].mxu0
        %v2780 = vadd.f32 0.0, %v2779
        %v2781 = vpop.f32.mrb[0].mxu0
        %2782 = vdwg.mxu0
        %v2784 = vsel %vm2562, %v2559, 0
        %2786 = vmatprep.subr.bf16.mxu0 0
        %2787 = vmatpush1.bf16.xpose.msra.mxu0 %v2784
        %2788 = vmatprep.subr.bf16.mxu0 0
        %2789 = vmatpush1.bf16.xpose.msra.mxu0 0
        %2790 = vmatprep.subr.bf16.mxu0 0
        %2791 = vmatpush1.bf16.xpose.msra.mxu0 0
        %2792 = vmatprep.subr.bf16.mxu0 0
        %2793 = vmatpush1.bf16.xpose.msra.mxu0 0
        %2794 = vmatprep.subr.bf16.mxu0 0
        %2795 = vmatpush1.bf16.xpose.msra.mxu0 0
        %2796 = vmatprep.subr.bf16.mxu0 0
        %2797 = vmatpush1.bf16.xpose.msra.mxu0 0
        %2798 = vmatprep.subr.bf16.mxu0 0
        %2799 = vmatpush1.bf16.xpose.msra.mxu0 0
        %2800 = vmatprep.subr.bf16.mxu0 0
        %2801 = vmatpush1.bf16.xpose.msra.mxu0 0
        %2802 = vmatprep.subr.bf16.mxu0 0
        %2803 = vmatpush1.bf16.xpose.msra.mxu0 0
        %2804 = vmatprep.subr.bf16.mxu0 0
        %2805 = vmatpush1.bf16.xpose.msra.mxu0 0
        %2806 = vmatprep.subr.bf16.mxu0 0
        %2807 = vmatpush1.bf16.xpose.msra.mxu0 0
        %2808 = vmatprep.subr.bf16.mxu0 0
        %2809 = vmatpush1.bf16.xpose.msra.mxu0 0
        %2810 = vmatprep.subr.bf16.mxu0 0
        %2811 = vmatpush1.bf16.xpose.msra.mxu0 0
        %2812 = vmatprep.subr.bf16.mxu0 0
        %2813 = vmatpush1.bf16.xpose.msra.mxu0 0
        %2814 = vmatprep.subr.bf16.mxu0 0
        %2815 = vmatpush1.bf16.xpose.msra.mxu0 0
        %2816 = vmatprep.subr.bf16.mxu0 0
        %2817 = vmatpush1.bf16.xpose.msra.mxu0 0
        %2818 = vmatprep.mubr.bf16.mxu0 0
        %2819 = vmatmul.mubr.bf16.gmra.mrb[0].mxu0 %v2784
        %v2820 = vpop.f32.mrb[0].mxu0
        %v2821 = vadd.f32 0.0, %v2820
        %v2822 = vpop.f32.mrb[0].mxu0
        %v2823 = vpop.f32.mrb[0].mxu0
        %v2824 = vadd.f32 0.0, %v2823
        %v2825 = vpop.f32.mrb[0].mxu0
        %2826 = vdwg.mxu0
        %v2828 = vsel %vm2562, %v2560, 0
        %2830 = vmatprep.subr.bf16.mxu0 0
        %2831 = vmatpush1.bf16.xpose.msra.mxu0 %v2828
        %2832 = vmatprep.subr.bf16.mxu0 0
        %2833 = vmatpush1.bf16.xpose.msra.mxu0 0
        %2834 = vmatprep.subr.bf16.mxu0 0
        %2835 = vmatpush1.bf16.xpose.msra.mxu0 0
        %2836 = vmatprep.subr.bf16.mxu0 0
        %2837 = vmatpush1.bf16.xpose.msra.mxu0 0
        %2838 = vmatprep.subr.bf16.mxu0 0
        %2839 = vmatpush1.bf16.xpose.msra.mxu0 0
        %2840 = vmatprep.subr.bf16.mxu0 0
        %2841 = vmatpush1.bf16.xpose.msra.mxu0 0
        %2842 = vmatprep.subr.bf16.mxu0 0
        %2843 = vmatpush1.bf16.xpose.msra.mxu0 0
        %2844 = vmatprep.subr.bf16.mxu0 0
        %2845 = vmatpush1.bf16.xpose.msra.mxu0 0
        %2846 = vmatprep.subr.bf16.mxu0 0
        %2847 = vmatpush1.bf16.xpose.msra.mxu0 0
        %2848 = vmatprep.subr.bf16.mxu0 0
        %2849 = vmatpush1.bf16.xpose.msra.mxu0 0
        %2850 = vmatprep.subr.bf16.mxu0 0
        %2851 = vmatpush1.bf16.xpose.msra.mxu0 0
        %2852 = vmatprep.subr.bf16.mxu0 0
        %2853 = vmatpush1.bf16.xpose.msra.mxu0 0
        %2854 = vmatprep.subr.bf16.mxu0 0
        %2855 = vmatpush1.bf16.xpose.msra.mxu0 0
        %2856 = vmatprep.subr.bf16.mxu0 0
        %2857 = vmatpush1.bf16.xpose.msra.mxu0 0
        %2858 = vmatprep.subr.bf16.mxu0 0
        %2859 = vmatpush1.bf16.xpose.msra.mxu0 0
        %2860 = vmatprep.subr.bf16.mxu0 0
        %2861 = vmatpush1.bf16.xpose.msra.mxu0 0
        %2862 = vmatprep.mubr.bf16.mxu0 0
        %2863 = vmatmul.mubr.bf16.gmra.mrb[0].mxu0 %v2828
        %v2864 = vpop.f32.mrb[0].mxu0
        %v2865 = vadd.f32 0.0, %v2864
        %v2866 = vpop.f32.mrb[0].mxu0
        %v2867 = vpop.f32.mrb[0].mxu0
        %v2868 = vadd.f32 0.0, %v2867
        %v2869 = vpop.f32.mrb[0].mxu0
        %2870 = vdwg.mxu0
        %v2872 = vsel %vm2562, %v2561, 0
        %2874 = vmatprep.subr.bf16.mxu0 0
        %2875 = vmatpush1.bf16.xpose.msra.mxu0 %v2872
        %2876 = vmatprep.subr.bf16.mxu0 0
        %2877 = vmatpush1.bf16.xpose.msra.mxu0 0
        %2878 = vmatprep.subr.bf16.mxu0 0
        %2879 = vmatpush1.bf16.xpose.msra.mxu0 0
        %2880 = vmatprep.subr.bf16.mxu0 0
        %2881 = vmatpush1.bf16.xpose.msra.mxu0 0
        %2882 = vmatprep.subr.bf16.mxu0 0
        %2883 = vmatpush1.bf16.xpose.msra.mxu0 0
        %2884 = vmatprep.subr.bf16.mxu0 0
        %2885 = vmatpush1.bf16.xpose.msra.mxu0 0
        %2886 = vmatprep.subr.bf16.mxu0 0
        %2887 = vmatpush1.bf16.xpose.msra.mxu0 0
        %2888 = vmatprep.subr.bf16.mxu0 0
        %2889 = vmatpush1.bf16.xpose.msra.mxu0 0
        %2890 = vmatprep.subr.bf16.mxu0 0
        %2891 = vmatpush1.bf16.xpose.msra.mxu0 0
        %2892 = vmatprep.subr.bf16.mxu0 0
        %2893 = vmatpush1.bf16.xpose.msra.mxu0 0
        %2894 = vmatprep.subr.bf16.mxu0 0
        %2895 = vmatpush1.bf16.xpose.msra.mxu0 0
        %2896 = vmatprep.subr.bf16.mxu0 0
        %2897 = vmatpush1.bf16.xpose.msra.mxu0 0
        %2898 = vmatprep.subr.bf16.mxu0 0
        %2899 = vmatpush1.bf16.xpose.msra.mxu0 0
        %2900 = vmatprep.subr.bf16.mxu0 0
        %2901 = vmatpush1.bf16.xpose.msra.mxu0 0
        %2902 = vmatprep.subr.bf16.mxu0 0
        %2903 = vmatpush1.bf16.xpose.msra.mxu0 0
        %2904 = vmatprep.subr.bf16.mxu0 0
        %2905 = vmatpush1.bf16.xpose.msra.mxu0 0
        %2906 = vmatprep.mubr.bf16.mxu0 0
        %2907 = vmatmul.mubr.bf16.gmra.mrb[0].mxu0 %v2872
        %v2908 = vpop.f32.mrb[0].mxu0
        %v2909 = vadd.f32 0.0, %v2908
        %v2910 = vpop.f32.mrb[0].mxu0
        %v2911 = vpop.f32.mrb[0].mxu0
        %v2912 = vadd.f32 0.0, %v2911
        %v2913 = vpop.f32.mrb[0].mxu0
        %2914 = vdwg.mxu0
        %v2915 = vmul.f32 %v2601, 0.0625
        %v2916 = vmul.f32 %v2604, 0.0625
        %v2917 = vmul.f32 %v2645, 0.0625
        %v2918 = vmul.f32 %v2648, 0.0625
        %v2919 = vmul.f32 %v2689, 0.0625
        %v2920 = vmul.f32 %v2692, 0.0625
        %v2921 = vmul.f32 %v2733, 0.0625
        %v2922 = vmul.f32 %v2736, 0.0625
        %v2923 = vmul.f32 %v2777, 0.0625
        %v2924 = vmul.f32 %v2780, 0.0625
        %v2925 = vmul.f32 %v2821, 0.0625
        %v2926 = vmul.f32 %v2824, 0.0625
        %v2927 = vmul.f32 %v2865, 0.0625
        %v2928 = vmul.f32 %v2868, 0.0625
        %v2929 = vmul.f32 %v2909, 0.0625
        %v2930 = vmul.f32 %v2912, 0.0625
        %v2931 = vld [vmem:[%s1] sm:$0xff]
        %v2932 = vld [vmem:[%s1 + $0x8] sm:$0xff]
        %v2933 = vadd.f32 %v2915, %v2931
        %v2934 = vadd.f32 %v2916, %v2932
        %v2935 = vadd.f32 %v2917, %v2931
        %v2936 = vadd.f32 %v2918, %v2932
        %v2937 = vadd.f32 %v2919, %v2931
        %v2938 = vadd.f32 %v2920, %v2932
        %v2939 = vadd.f32 %v2921, %v2931
        %v2940 = vadd.f32 %v2922, %v2932
        %v2941 = vadd.f32 %v2923, %v2931
        %v2942 = vadd.f32 %v2924, %v2932
        %v2943 = vadd.f32 %v2925, %v2931
        %v2944 = vadd.f32 %v2926, %v2932
        %v2945 = vadd.f32 %v2927, %v2931
        %v2946 = vadd.f32 %v2928, %v2932
        %v2947 = vadd.f32 %v2929, %v2931
        %v2948 = vadd.f32 %v2930, %v2932
        %v2949 = vsel %vm2562, %v2933, -inf
        %2950 = vmax.xlane.f32.xlu0 %v2949
        %v2951 = vpop.xlane.xlu0 %2950
        %v2952 = vsel %vm2562, %v2934, -inf
        %2953 = vmax.xlane.f32.xlu0 %v2952
        %v2954 = vpop.xlane.xlu0 %2953
        %v2955 = vsel %vm2562, %v2935, -inf
        %2956 = vmax.xlane.f32.xlu0 %v2955
        %v2957 = vpop.xlane.xlu0 %2956
        %v2958 = vsel %vm2562, %v2936, -inf
        %2959 = vmax.xlane.f32.xlu0 %v2958
        %v2960 = vpop.xlane.xlu0 %2959
        %v2961 = vsel %vm2562, %v2937, -inf
        %2962 = vmax.xlane.f32.xlu0 %v2961
        %v2963 = vpop.xlane.xlu0 %2962
        %v2964 = vsel %vm2562, %v2938, -inf
        %2965 = vmax.xlane.f32.xlu0 %v2964
        %v2966 = vpop.xlane.xlu0 %2965
        %v2967 = vsel %vm2562, %v2939, -inf
        %2968 = vmax.xlane.f32.xlu0 %v2967
        %v2969 = vpop.xlane.xlu0 %2968
        %v2970 = vsel %vm2562, %v2940, -inf
        %2971 = vmax.xlane.f32.xlu0 %v2970
        %v2972 = vpop.xlane.xlu0 %2971
        %v2973 = vsel %vm2562, %v2941, -inf
        %2974 = vmax.xlane.f32.xlu0 %v2973
        %v2975 = vpop.xlane.xlu0 %2974
        %v2976 = vsel %vm2562, %v2942, -inf
        %2977 = vmax.xlane.f32.xlu0 %v2976
        %v2978 = vpop.xlane.xlu0 %2977
        %v2979 = vsel %vm2562, %v2943, -inf
        %2980 = vmax.xlane.f32.xlu0 %v2979
        %v2981 = vpop.xlane.xlu0 %2980
        %v2982 = vsel %vm2562, %v2944, -inf
        %2983 = vmax.xlane.f32.xlu0 %v2982
        %v2984 = vpop.xlane.xlu0 %2983
        %v2985 = vsel %vm2562, %v2945, -inf
        %2986 = vmax.xlane.f32.xlu0 %v2985
        %v2987 = vpop.xlane.xlu0 %2986
        %v2988 = vsel %vm2562, %v2946, -inf
        %2989 = vmax.xlane.f32.xlu0 %v2988
        %v2990 = vpop.xlane.xlu0 %2989
        %v2991 = vsel %vm2562, %v2947, -inf
        %2992 = vmax.xlane.f32.xlu0 %v2991
        %v2993 = vpop.xlane.xlu0 %2992
        %v2994 = vsel %vm2562, %v2948, -inf
        %2995 = vmax.xlane.f32.xlu0 %v2994
        %v2996 = vpop.xlane.xlu0 %2995
        %v2997 = vsub.f32 %v2933, %v2951
        %v2998 = vsub.f32 %v2934, %v2954
        %v2999 = vsub.f32 %v2935, %v2957
        %v3000 = vsub.f32 %v2936, %v2960
        %v3001 = vsub.f32 %v2937, %v2963
        %v3002 = vsub.f32 %v2938, %v2966
        %v3003 = vsub.f32 %v2939, %v2969
        %v3004 = vsub.f32 %v2940, %v2972
        %v3005 = vsub.f32 %v2941, %v2975
        %v3006 = vsub.f32 %v2942, %v2978
        %v3007 = vsub.f32 %v2943, %v2981
        %v3008 = vsub.f32 %v2944, %v2984
        %v3009 = vsub.f32 %v2945, %v2987
        %v3010 = vsub.f32 %v2946, %v2990
        %v3011 = vsub.f32 %v2947, %v2993
        %v3012 = vsub.f32 %v2948, %v2996
        %v3013 = vmul.f32 %v2997, 1.442695
        %v3014 = vpow.pop %v3013
        %v3015 = vmul.f32 %v2998, 1.442695
        %v3016 = vpow.pop %v3015
        %v3017 = vmul.f32 %v2999, 1.442695
        %v3018 = vpow.pop %v3017
        %v3019 = vmul.f32 %v3000, 1.442695
        %v3020 = vpow.pop %v3019
        %v3021 = vmul.f32 %v3001, 1.442695
        %v3022 = vpow.pop %v3021
        %v3023 = vmul.f32 %v3002, 1.442695
        %v3024 = vpow.pop %v3023
        %v3025 = vmul.f32 %v3003, 1.442695
        %v3026 = vpow.pop %v3025
        %v3027 = vmul.f32 %v3004, 1.442695
        %v3028 = vpow.pop %v3027
        %v3029 = vmul.f32 %v3005, 1.442695
        %v3030 = vpow.pop %v3029
        %v3031 = vmul.f32 %v3006, 1.442695
        %v3032 = vpow.pop %v3031
        %v3033 = vmul.f32 %v3007, 1.442695
        %v3034 = vpow.pop %v3033
        %v3035 = vmul.f32 %v3008, 1.442695
        %v3036 = vpow.pop %v3035
        %v3037 = vmul.f32 %v3009, 1.442695
        %v3038 = vpow.pop %v3037
        %v3039 = vmul.f32 %v3010, 1.442695
        %v3040 = vpow.pop %v3039
        %v3041 = vmul.f32 %v3011, 1.442695
        %v3042 = vpow.pop %v3041
        %v3043 = vmul.f32 %v3012, 1.442695
        %v3044 = vpow.pop %v3043
        %v3045 = vsel %vm2562, %v3014, 0.0
        %3046 = vadd.xlane.f32.xlu0 %v3045
        %v3047 = vpop.xlane.xlu0 %3046
        %v3048 = vsel %vm2562, %v3016, 0.0
        %3049 = vadd.xlane.f32.xlu0 %v3048
        %v3050 = vpop.xlane.xlu0 %3049
        %v3051 = vsel %vm2562, %v3018, 0.0
        %3052 = vadd.xlane.f32.xlu0 %v3051
        %v3053 = vpop.xlane.xlu0 %3052
        %v3054 = vsel %vm2562, %v3020, 0.0
        %3055 = vadd.xlane.f32.xlu0 %v3054
        %v3056 = vpop.xlane.xlu0 %3055
        %v3057 = vsel %vm2562, %v3022, 0.0
        %3058 = vadd.xlane.f32.xlu0 %v3057
        %v3059 = vpop.xlane.xlu0 %3058
        %v3060 = vsel %vm2562, %v3024, 0.0
        %3061 = vadd.xlane.f32.xlu0 %v3060
        %v3062 = vpop.xlane.xlu0 %3061
        %v3063 = vsel %vm2562, %v3026, 0.0
        %3064 = vadd.xlane.f32.xlu0 %v3063
        %v3065 = vpop.xlane.xlu0 %3064
        %v3066 = vsel %vm2562, %v3028, 0.0
        %3067 = vadd.xlane.f32.xlu0 %v3066
        %v3068 = vpop.xlane.xlu0 %3067
        %v3069 = vsel %vm2562, %v3030, 0.0
        %3070 = vadd.xlane.f32.xlu0 %v3069
        %v3071 = vpop.xlane.xlu0 %3070
        %v3072 = vsel %vm2562, %v3032, 0.0
        %3073 = vadd.xlane.f32.xlu0 %v3072
        %v3074 = vpop.xlane.xlu0 %3073
        %v3075 = vsel %vm2562, %v3034, 0.0
        %3076 = vadd.xlane.f32.xlu0 %v3075
        %v3077 = vpop.xlane.xlu0 %3076
        %v3078 = vsel %vm2562, %v3036, 0.0
        %3079 = vadd.xlane.f32.xlu0 %v3078
        %v3080 = vpop.xlane.xlu0 %3079
        %v3081 = vsel %vm2562, %v3038, 0.0
        %3082 = vadd.xlane.f32.xlu0 %v3081
        %v3083 = vpop.xlane.xlu0 %3082
        %v3084 = vsel %vm2562, %v3040, 0.0
        %3085 = vadd.xlane.f32.xlu0 %v3084
        %v3086 = vpop.xlane.xlu0 %3085
        %v3087 = vsel %vm2562, %v3042, 0.0
        %3088 = vadd.xlane.f32.xlu0 %v3087
        %v3089 = vpop.xlane.xlu0 %3088
        %v3090 = vsel %vm2562, %v3044, 0.0
        %3091 = vadd.xlane.f32.xlu0 %v3090
        %v3092 = vpop.xlane.xlu0 %3091
        %v3093 = vrcp.pop %v3047
        %v3094 = vrcp.pop %v3050
        %v3095 = vrcp.pop %v3053
        %v3096 = vrcp.pop %v3056
        %v3097 = vrcp.pop %v3059
        %v3098 = vrcp.pop %v3062
        %v3099 = vrcp.pop %v3065
        %v3100 = vrcp.pop %v3068
        %v3101 = vrcp.pop %v3071
        %v3102 = vrcp.pop %v3074
        %v3103 = vrcp.pop %v3077
        %v3104 = vrcp.pop %v3080
        %v3105 = vrcp.pop %v3083
        %v3106 = vrcp.pop %v3086
        %v3107 = vrcp.pop %v3089
        %v3108 = vrcp.pop %v3092
        %v3109 = vmul.f32 %v3014, %v3093
        %v3110 = vmul.f32 %v3016, %v3094
        %v3111 = vmul.f32 %v3018, %v3095
        %v3112 = vmul.f32 %v3020, %v3096
        %v3113 = vmul.f32 %v3022, %v3097
        %v3114 = vmul.f32 %v3024, %v3098
        %v3115 = vmul.f32 %v3026, %v3099
        %v3116 = vmul.f32 %v3028, %v3100
        %v3117 = vmul.f32 %v3030, %v3101
        %v3118 = vmul.f32 %v3032, %v3102
        %v3119 = vmul.f32 %v3034, %v3103
        %v3120 = vmul.f32 %v3036, %v3104
        %v3121 = vmul.f32 %v3038, %v3105
        %v3122 = vmul.f32 %v3040, %v3106
        %v3123 = vmul.f32 %v3042, %v3107
        %v3124 = vmul.f32 %v3044, %v3108
        %v3125 = vpack.c.bf16 %v3110, %v3109
        %v3126 = vpack.c.bf16 %v3112, %v3111
        %v3127 = vpack.c.bf16 %v3114, %v3113
        %v3128 = vpack.c.bf16 %v3116, %v3115
        %v3129 = vpack.c.bf16 %v3118, %v3117
        %v3130 = vpack.c.bf16 %v3120, %v3119
        %v3131 = vpack.c.bf16 %v3122, %v3121
        %v3132 = vpack.c.bf16 %v3124, %v3123
        %v3133 = vpack.c.bf16 %v2256, %v2253
        %v3134 = vpack.c.bf16 %v2264, %v2261
        %v3135 = vpack.c.bf16 %v2272, %v2269
        %v3136 = vpack.c.bf16 %v2280, %v2277
        %v3137 = vpack.c.bf16 %v2288, %v2285
        %v3138 = vpack.c.bf16 %v2296, %v2293
        %v3139 = vpack.c.bf16 %v2304, %v2301
        %v3140 = vpack.c.bf16 %v2312, %v2309
        %v3142 = vsel %vm2562, %v3125, 0
        %3144 = vmatprep.subr.bf16.mxu0 0
        %3145 = vmatpush1.bf16.msra.mxu0 %v3133
        %3146 = vmatprep.subr.bf16.mxu0 0
        %3147 = vmatpush1.bf16.msra.mxu0 0
        %3148 = vmatprep.subr.bf16.mxu0 0
        %3149 = vmatpush1.bf16.msra.mxu0 0
        %3150 = vmatprep.subr.bf16.mxu0 0
        %3151 = vmatpush1.bf16.msra.mxu0 0
        %3152 = vmatprep.subr.bf16.mxu0 0
        %3153 = vmatpush1.bf16.msra.mxu0 0
        %3154 = vmatprep.subr.bf16.mxu0 0
        %3155 = vmatpush1.bf16.msra.mxu0 0
        %3156 = vmatprep.subr.bf16.mxu0 0
        %3157 = vmatpush1.bf16.msra.mxu0 0
        %3158 = vmatprep.subr.bf16.mxu0 0
        %3159 = vmatpush1.bf16.msra.mxu0 0
        %3160 = vmatprep.subr.bf16.mxu0 0
        %3161 = vmatpush1.bf16.msra.mxu0 0
        %3162 = vmatprep.subr.bf16.mxu0 0
        %3163 = vmatpush1.bf16.msra.mxu0 0
        %3164 = vmatprep.subr.bf16.mxu0 0
        %3165 = vmatpush1.bf16.msra.mxu0 0
        %3166 = vmatprep.subr.bf16.mxu0 0
        %3167 = vmatpush1.bf16.msra.mxu0 0
        %3168 = vmatprep.subr.bf16.mxu0 0
        %3169 = vmatpush1.bf16.msra.mxu0 0
        %3170 = vmatprep.subr.bf16.mxu0 0
        %3171 = vmatpush1.bf16.msra.mxu0 0
        %3172 = vmatprep.subr.bf16.mxu0 0
        %3173 = vmatpush1.bf16.msra.mxu0 0
        %3174 = vmatprep.subr.bf16.mxu0 0
        %3175 = vmatpush1.bf16.msra.mxu0 0
        %3176 = vmatprep.mubr.bf16.mxu0 0
        %3177 = vmatmul.mubr.bf16.gmra.mrb[0].mxu0 %v3142
        %v3178 = vpop.f32.mrb[0].mxu0
        %v3179 = vadd.f32 0.0, %v3178
        %v3180 = vpop.f32.mrb[0].mxu0
        %v3181 = vpop.f32.mrb[0].mxu0
        %v3182 = vadd.f32 0.0, %v3181
        %v3183 = vpop.f32.mrb[0].mxu0
        %3184 = vdwg.mxu0
        %v3186 = vsel %vm2562, %v3126, 0
        %3188 = vmatprep.subr.bf16.mxu0 0
        %3189 = vmatpush1.bf16.msra.mxu0 %v3134
        %3190 = vmatprep.subr.bf16.mxu0 0
        %3191 = vmatpush1.bf16.msra.mxu0 0
        %3192 = vmatprep.subr.bf16.mxu0 0
        %3193 = vmatpush1.bf16.msra.mxu0 0
        %3194 = vmatprep.subr.bf16.mxu0 0
        %3195 = vmatpush1.bf16.msra.mxu0 0
        %3196 = vmatprep.subr.bf16.mxu0 0
        %3197 = vmatpush1.bf16.msra.mxu0 0
        %3198 = vmatprep.subr.bf16.mxu0 0
        %3199 = vmatpush1.bf16.msra.mxu0 0
        %3200 = vmatprep.subr.bf16.mxu0 0
        %3201 = vmatpush1.bf16.msra.mxu0 0
        %3202 = vmatprep.subr.bf16.mxu0 0
        %3203 = vmatpush1.bf16.msra.mxu0 0
        %3204 = vmatprep.subr.bf16.mxu0 0
        %3205 = vmatpush1.bf16.msra.mxu0 0
        %3206 = vmatprep.subr.bf16.mxu0 0
        %3207 = vmatpush1.bf16.msra.mxu0 0
        %3208 = vmatprep.subr.bf16.mxu0 0
        %3209 = vmatpush1.bf16.msra.mxu0 0
        %3210 = vmatprep.subr.bf16.mxu0 0
        %3211 = vmatpush1.bf16.msra.mxu0 0
        %3212 = vmatprep.subr.bf16.mxu0 0
        %3213 = vmatpush1.bf16.msra.mxu0 0
        %3214 = vmatprep.subr.bf16.mxu0 0
        %3215 = vmatpush1.bf16.msra.mxu0 0
        %3216 = vmatprep.subr.bf16.mxu0 0
        %3217 = vmatpush1.bf16.msra.mxu0 0
        %3218 = vmatprep.subr.bf16.mxu0 0
        %3219 = vmatpush1.bf16.msra.mxu0 0
        %3220 = vmatprep.mubr.bf16.mxu0 0
        %3221 = vmatmul.mubr.bf16.gmra.mrb[0].mxu0 %v3186
        %v3222 = vpop.f32.mrb[0].mxu0
        %v3223 = vadd.f32 0.0, %v3222
        %v3224 = vpop.f32.mrb[0].mxu0
        %v3225 = vpop.f32.mrb[0].mxu0
        %v3226 = vadd.f32 0.0, %v3225
        %v3227 = vpop.f32.mrb[0].mxu0
        %3228 = vdwg.mxu0
        %v3230 = vsel %vm2562, %v3127, 0
        %3232 = vmatprep.subr.bf16.mxu0 0
        %3233 = vmatpush1.bf16.msra.mxu0 %v3135
        %3234 = vmatprep.subr.bf16.mxu0 0
        %3235 = vmatpush1.bf16.msra.mxu0 0
        %3236 = vmatprep.subr.bf16.mxu0 0
        %3237 = vmatpush1.bf16.msra.mxu0 0
        %3238 = vmatprep.subr.bf16.mxu0 0
        %3239 = vmatpush1.bf16.msra.mxu0 0
        %3240 = vmatprep.subr.bf16.mxu0 0
        %3241 = vmatpush1.bf16.msra.mxu0 0
        %3242 = vmatprep.subr.bf16.mxu0 0
        %3243 = vmatpush1.bf16.msra.mxu0 0
        %3244 = vmatprep.subr.bf16.mxu0 0
        %3245 = vmatpush1.bf16.msra.mxu0 0
        %3246 = vmatprep.subr.bf16.mxu0 0
        %3247 = vmatpush1.bf16.msra.mxu0 0
        %3248 = vmatprep.subr.bf16.mxu0 0
        %3249 = vmatpush1.bf16.msra.mxu0 0
        %3250 = vmatprep.subr.bf16.mxu0 0
        %3251 = vmatpush1.bf16.msra.mxu0 0
        %3252 = vmatprep.subr.bf16.mxu0 0
        %3253 = vmatpush1.bf16.msra.mxu0 0
        %3254 = vmatprep.subr.bf16.mxu0 0
        %3255 = vmatpush1.bf16.msra.mxu0 0
        %3256 = vmatprep.subr.bf16.mxu0 0
        %3257 = vmatpush1.bf16.msra.mxu0 0
        %3258 = vmatprep.subr.bf16.mxu0 0
        %3259 = vmatpush1.bf16.msra.mxu0 0
        %3260 = vmatprep.subr.bf16.mxu0 0
        %3261 = vmatpush1.bf16.msra.mxu0 0
        %3262 = vmatprep.subr.bf16.mxu0 0
        %3263 = vmatpush1.bf16.msra.mxu0 0
        %3264 = vmatprep.mubr.bf16.mxu0 0
        %3265 = vmatmul.mubr.bf16.gmra.mrb[0].mxu0 %v3230
        %v3266 = vpop.f32.mrb[0].mxu0
        %v3267 = vadd.f32 0.0, %v3266
        %v3268 = vpop.f32.mrb[0].mxu0
        %v3269 = vpop.f32.mrb[0].mxu0
        %v3270 = vadd.f32 0.0, %v3269
        %v3271 = vpop.f32.mrb[0].mxu0
        %3272 = vdwg.mxu0
        %v3274 = vsel %vm2562, %v3128, 0
        %3276 = vmatprep.subr.bf16.mxu0 0
        %3277 = vmatpush1.bf16.msra.mxu0 %v3136
        %3278 = vmatprep.subr.bf16.mxu0 0
        %3279 = vmatpush1.bf16.msra.mxu0 0
        %3280 = vmatprep.subr.bf16.mxu0 0
        %3281 = vmatpush1.bf16.msra.mxu0 0
        %3282 = vmatprep.subr.bf16.mxu0 0
        %3283 = vmatpush1.bf16.msra.mxu0 0
        %3284 = vmatprep.subr.bf16.mxu0 0
        %3285 = vmatpush1.bf16.msra.mxu0 0
        %3286 = vmatprep.subr.bf16.mxu0 0
        %3287 = vmatpush1.bf16.msra.mxu0 0
        %3288 = vmatprep.subr.bf16.mxu0 0
        %3289 = vmatpush1.bf16.msra.mxu0 0
        %3290 = vmatprep.subr.bf16.mxu0 0
        %3291 = vmatpush1.bf16.msra.mxu0 0
        %3292 = vmatprep.subr.bf16.mxu0 0
        %3293 = vmatpush1.bf16.msra.mxu0 0
        %3294 = vmatprep.subr.bf16.mxu0 0
        %3295 = vmatpush1.bf16.msra.mxu0 0
        %3296 = vmatprep.subr.bf16.mxu0 0
        %3297 = vmatpush1.bf16.msra.mxu0 0
        %3298 = vmatprep.subr.bf16.mxu0 0
        %3299 = vmatpush1.bf16.msra.mxu0 0
        %3300 = vmatprep.subr.bf16.mxu0 0
        %3301 = vmatpush1.bf16.msra.mxu0 0
        %3302 = vmatprep.subr.bf16.mxu0 0
        %3303 = vmatpush1.bf16.msra.mxu0 0
        %3304 = vmatprep.subr.bf16.mxu0 0
        %3305 = vmatpush1.bf16.msra.mxu0 0
        %3306 = vmatprep.subr.bf16.mxu0 0
        %3307 = vmatpush1.bf16.msra.mxu0 0
        %3308 = vmatprep.mubr.bf16.mxu0 0
        %3309 = vmatmul.mubr.bf16.gmra.mrb[0].mxu0 %v3274
        %v3310 = vpop.f32.mrb[0].mxu0
        %v3311 = vadd.f32 0.0, %v3310
        %v3312 = vpop.f32.mrb[0].mxu0
        %v3313 = vpop.f32.mrb[0].mxu0
        %v3314 = vadd.f32 0.0, %v3313
        %v3315 = vpop.f32.mrb[0].mxu0
        %3316 = vdwg.mxu0
        %v3318 = vsel %vm2562, %v3129, 0
        %3320 = vmatprep.subr.bf16.mxu0 0
        %3321 = vmatpush1.bf16.msra.mxu0 %v3137
        %3322 = vmatprep.subr.bf16.mxu0 0
        %3323 = vmatpush1.bf16.msra.mxu0 0
        %3324 = vmatprep.subr.bf16.mxu0 0
        %3325 = vmatpush1.bf16.msra.mxu0 0
        %3326 = vmatprep.subr.bf16.mxu0 0
        %3327 = vmatpush1.bf16.msra.mxu0 0
        %3328 = vmatprep.subr.bf16.mxu0 0
        %3329 = vmatpush1.bf16.msra.mxu0 0
        %3330 = vmatprep.subr.bf16.mxu0 0
        %3331 = vmatpush1.bf16.msra.mxu0 0
        %3332 = vmatprep.subr.bf16.mxu0 0
        %3333 = vmatpush1.bf16.msra.mxu0 0
        %3334 = vmatprep.subr.bf16.mxu0 0
        %3335 = vmatpush1.bf16.msra.mxu0 0
        %3336 = vmatprep.subr.bf16.mxu0 0
        %3337 = vmatpush1.bf16.msra.mxu0 0
        %3338 = vmatprep.subr.bf16.mxu0 0
        %3339 = vmatpush1.bf16.msra.mxu0 0
        %3340 = vmatprep.subr.bf16.mxu0 0
        %3341 = vmatpush1.bf16.msra.mxu0 0
        %3342 = vmatprep.subr.bf16.mxu0 0
        %3343 = vmatpush1.bf16.msra.mxu0 0
        %3344 = vmatprep.subr.bf16.mxu0 0
        %3345 = vmatpush1.bf16.msra.mxu0 0
        %3346 = vmatprep.subr.bf16.mxu0 0
        %3347 = vmatpush1.bf16.msra.mxu0 0
        %3348 = vmatprep.subr.bf16.mxu0 0
        %3349 = vmatpush1.bf16.msra.mxu0 0
        %3350 = vmatprep.subr.bf16.mxu0 0
        %3351 = vmatpush1.bf16.msra.mxu0 0
        %3352 = vmatprep.mubr.bf16.mxu0 0
        %3353 = vmatmul.mubr.bf16.gmra.mrb[0].mxu0 %v3318
        %v3354 = vpop.f32.mrb[0].mxu0
        %v3355 = vadd.f32 0.0, %v3354
        %v3356 = vpop.f32.mrb[0].mxu0
        %v3357 = vpop.f32.mrb[0].mxu0
        %v3358 = vadd.f32 0.0, %v3357
        %v3359 = vpop.f32.mrb[0].mxu0
        %3360 = vdwg.mxu0
        %v3362 = vsel %vm2562, %v3130, 0
        %3364 = vmatprep.subr.bf16.mxu0 0
        %3365 = vmatpush1.bf16.msra.mxu0 %v3138
        %3366 = vmatprep.subr.bf16.mxu0 0
        %3367 = vmatpush1.bf16.msra.mxu0 0
        %3368 = vmatprep.subr.bf16.mxu0 0
        %3369 = vmatpush1.bf16.msra.mxu0 0
        %3370 = vmatprep.subr.bf16.mxu0 0
        %3371 = vmatpush1.bf16.msra.mxu0 0
        %3372 = vmatprep.subr.bf16.mxu0 0
        %3373 = vmatpush1.bf16.msra.mxu0 0
        %3374 = vmatprep.subr.bf16.mxu0 0
        %3375 = vmatpush1.bf16.msra.mxu0 0
        %3376 = vmatprep.subr.bf16.mxu0 0
        %3377 = vmatpush1.bf16.msra.mxu0 0
        %3378 = vmatprep.subr.bf16.mxu0 0
        %3379 = vmatpush1.bf16.msra.mxu0 0
        %3380 = vmatprep.subr.bf16.mxu0 0
        %3381 = vmatpush1.bf16.msra.mxu0 0
        %3382 = vmatprep.subr.bf16.mxu0 0
        %3383 = vmatpush1.bf16.msra.mxu0 0
        %3384 = vmatprep.subr.bf16.mxu0 0
        %3385 = vmatpush1.bf16.msra.mxu0 0
        %3386 = vmatprep.subr.bf16.mxu0 0
        %3387 = vmatpush1.bf16.msra.mxu0 0
        %3388 = vmatprep.subr.bf16.mxu0 0
        %3389 = vmatpush1.bf16.msra.mxu0 0
        %3390 = vmatprep.subr.bf16.mxu0 0
        %3391 = vmatpush1.bf16.msra.mxu0 0
        %3392 = vmatprep.subr.bf16.mxu0 0
        %3393 = vmatpush1.bf16.msra.mxu0 0
        %3394 = vmatprep.subr.bf16.mxu0 0
        %3395 = vmatpush1.bf16.msra.mxu0 0
        %3396 = vmatprep.mubr.bf16.mxu0 0
        %3397 = vmatmul.mubr.bf16.gmra.mrb[0].mxu0 %v3362
        %v3398 = vpop.f32.mrb[0].mxu0
        %v3399 = vadd.f32 0.0, %v3398
        %v3400 = vpop.f32.mrb[0].mxu0
        %v3401 = vpop.f32.mrb[0].mxu0
        %v3402 = vadd.f32 0.0, %v3401
        %v3403 = vpop.f32.mrb[0].mxu0
        %3404 = vdwg.mxu0
        %v3406 = vsel %vm2562, %v3131, 0
        %3408 = vmatprep.subr.bf16.mxu0 0
        %3409 = vmatpush1.bf16.msra.mxu0 %v3139
        %3410 = vmatprep.subr.bf16.mxu0 0
        %3411 = vmatpush1.bf16.msra.mxu0 0
        %3412 = vmatprep.subr.bf16.mxu0 0
        %3413 = vmatpush1.bf16.msra.mxu0 0
        %3414 = vmatprep.subr.bf16.mxu0 0
        %3415 = vmatpush1.bf16.msra.mxu0 0
        %3416 = vmatprep.subr.bf16.mxu0 0
        %3417 = vmatpush1.bf16.msra.mxu0 0
        %3418 = vmatprep.subr.bf16.mxu0 0
        %3419 = vmatpush1.bf16.msra.mxu0 0
        %3420 = vmatprep.subr.bf16.mxu0 0
        %3421 = vmatpush1.bf16.msra.mxu0 0
        %3422 = vmatprep.subr.bf16.mxu0 0
        %3423 = vmatpush1.bf16.msra.mxu0 0
        %3424 = vmatprep.subr.bf16.mxu0 0
        %3425 = vmatpush1.bf16.msra.mxu0 0
        %3426 = vmatprep.subr.bf16.mxu0 0
        %3427 = vmatpush1.bf16.msra.mxu0 0
        %3428 = vmatprep.subr.bf16.mxu0 0
        %3429 = vmatpush1.bf16.msra.mxu0 0
        %3430 = vmatprep.subr.bf16.mxu0 0
        %3431 = vmatpush1.bf16.msra.mxu0 0
        %3432 = vmatprep.subr.bf16.mxu0 0
        %3433 = vmatpush1.bf16.msra.mxu0 0
        %3434 = vmatprep.subr.bf16.mxu0 0
        %3435 = vmatpush1.bf16.msra.mxu0 0
        %3436 = vmatprep.subr.bf16.mxu0 0
        %3437 = vmatpush1.bf16.msra.mxu0 0
        %3438 = vmatprep.subr.bf16.mxu0 0
        %3439 = vmatpush1.bf16.msra.mxu0 0
        %3440 = vmatprep.mubr.bf16.mxu0 0
        %3441 = vmatmul.mubr.bf16.gmra.mrb[0].mxu0 %v3406
        %v3442 = vpop.f32.mrb[0].mxu0
        %v3443 = vadd.f32 0.0, %v3442
        %v3444 = vpop.f32.mrb[0].mxu0
        %v3445 = vpop.f32.mrb[0].mxu0
        %v3446 = vadd.f32 0.0, %v3445
        %v3447 = vpop.f32.mrb[0].mxu0
        %3448 = vdwg.mxu0
        %v3450 = vsel %vm2562, %v3132, 0
        %3452 = vmatprep.subr.bf16.mxu0 0
        %3453 = vmatpush1.bf16.msra.mxu0 %v3140
        %3454 = vmatprep.subr.bf16.mxu0 0
        %3455 = vmatpush1.bf16.msra.mxu0 0
        %3456 = vmatprep.subr.bf16.mxu0 0
        %3457 = vmatpush1.bf16.msra.mxu0 0
        %3458 = vmatprep.subr.bf16.mxu0 0
        %3459 = vmatpush1.bf16.msra.mxu0 0
        %3460 = vmatprep.subr.bf16.mxu0 0
        %3461 = vmatpush1.bf16.msra.mxu0 0
        %3462 = vmatprep.subr.bf16.mxu0 0
        %3463 = vmatpush1.bf16.msra.mxu0 0
        %3464 = vmatprep.subr.bf16.mxu0 0
        %3465 = vmatpush1.bf16.msra.mxu0 0
        %3466 = vmatprep.subr.bf16.mxu0 0
        %3467 = vmatpush1.bf16.msra.mxu0 0
        %3468 = vmatprep.subr.bf16.mxu0 0
        %3469 = vmatpush1.bf16.msra.mxu0 0
        %3470 = vmatprep.subr.bf16.mxu0 0
        %3471 = vmatpush1.bf16.msra.mxu0 0
        %3472 = vmatprep.subr.bf16.mxu0 0
        %3473 = vmatpush1.bf16.msra.mxu0 0
        %3474 = vmatprep.subr.bf16.mxu0 0
        %3475 = vmatpush1.bf16.msra.mxu0 0
        %3476 = vmatprep.subr.bf16.mxu0 0
        %3477 = vmatpush1.bf16.msra.mxu0 0
        %3478 = vmatprep.subr.bf16.mxu0 0
        %3479 = vmatpush1.bf16.msra.mxu0 0
        %3480 = vmatprep.subr.bf16.mxu0 0
        %3481 = vmatpush1.bf16.msra.mxu0 0
        %3482 = vmatprep.subr.bf16.mxu0 0
        %3483 = vmatpush1.bf16.msra.mxu0 0
        %3484 = vmatprep.mubr.bf16.mxu0 0
        %3485 = vmatmul.mubr.bf16.gmra.mrb[0].mxu0 %v3450
        %v3486 = vpop.f32.mrb[0].mxu0
        %v3487 = vadd.f32 0.0, %v3486
        %v3488 = vpop.f32.mrb[0].mxu0
        %v3489 = vpop.f32.mrb[0].mxu0
        %v3490 = vadd.f32 0.0, %v3489
        %v3491 = vpop.f32.mrb[0].mxu0
        %3492 = vdwg.mxu0
        %v3493 = vpack.c.bf16 %v3182, %v3179
        %v3494 = vpack.c.bf16 %v3226, %v3223
        %v3495 = vpack.c.bf16 %v3270, %v3267
        %v3496 = vpack.c.bf16 %v3314, %v3311
        %v3497 = vpack.c.bf16 %v3358, %v3355
        %v3498 = vpack.c.bf16 %v3402, %v3399
        %v3499 = vpack.c.bf16 %v3446, %v3443
        %v3500 = vpack.c.bf16 %v3490, %v3487
        %v3501 = vld [vmem:[%s13] sm:$0xf]
        %v3502 = vld [vmem:[%s13 + $0x4] sm:$0xf]
        %v3505 = vunpack.c.l.b16 %v3501
        %v3506 = vunpack.c.l.b16 %v3502
        %v3507 = vpack.c.b16 %v3506, %v3505
        %v3510 = vsel %vm2562, %v3493, 0
        %v3513 = vsel %vm2562, %v3494, 0
        %v3516 = vsel %vm2562, %v3495, 0
        %v3519 = vsel %vm2562, %v3496, 0
        %v3522 = vsel %vm2562, %v3497, 0
        %v3525 = vsel %vm2562, %v3498, 0
        %v3528 = vsel %vm2562, %v3499, 0
        %v3531 = vsel %vm2562, %v3500, 0
        %3533 = vmatprep.subr.bf16.mxu0 0
        %3534 = vmatpush1.bf16.msra.mxu0 %v3507
        %3535 = vmatprep.subr.bf16.mxu0 0
        %3536 = vmatpush1.bf16.msra.mxu0 0
        %3537 = vmatprep.subr.bf16.mxu0 0
        %3538 = vmatpush1.bf16.msra.mxu0 0
        %3539 = vmatprep.subr.bf16.mxu0 0
        %3540 = vmatpush1.bf16.msra.mxu0 0
        %3541 = vmatprep.subr.bf16.mxu0 0
        %3542 = vmatpush1.bf16.msra.mxu0 0
        %3543 = vmatprep.subr.bf16.mxu0 0
        %3544 = vmatpush1.bf16.msra.mxu0 0
        %3545 = vmatprep.subr.bf16.mxu0 0
        %3546 = vmatpush1.bf16.msra.mxu0 0
        %3547 = vmatprep.subr.bf16.mxu0 0
        %3548 = vmatpush1.bf16.msra.mxu0 0
        %3549 = vmatprep.subr.bf16.mxu0 0
        %3550 = vmatpush1.bf16.msra.mxu0 0
        %3551 = vmatprep.subr.bf16.mxu0 0
        %3552 = vmatpush1.bf16.msra.mxu0 0
        %3553 = vmatprep.subr.bf16.mxu0 0
        %3554 = vmatpush1.bf16.msra.mxu0 0
        %3555 = vmatprep.subr.bf16.mxu0 0
        %3556 = vmatpush1.bf16.msra.mxu0 0
        %3557 = vmatprep.subr.bf16.mxu0 0
        %3558 = vmatpush1.bf16.msra.mxu0 0
        %3559 = vmatprep.subr.bf16.mxu0 0
        %3560 = vmatpush1.bf16.msra.mxu0 0
        %3561 = vmatprep.subr.bf16.mxu0 0
        %3562 = vmatpush1.bf16.msra.mxu0 0
        %3563 = vmatprep.subr.bf16.mxu0 0
        %3564 = vmatpush1.bf16.msra.mxu0 0
        %3565 = vmatprep.mubr.bf16.mxu0 0
        %3566 = vmatmul.mubr.bf16.gmra.mrb[0].mxu0 %v3510
        %v3567 = vpop.f32.mrb[0].mxu0
        %v3568 = vadd.f32 0.0, %v3567
        %v3569 = vpop.f32.mrb[0].mxu0
        %v3570 = vpop.f32.mrb[0].mxu0
        %v3571 = vadd.f32 0.0, %v3570
        %v3572 = vpop.f32.mrb[0].mxu0
        %3573 = vmatprep.mubr.bf16.mxu0 0
        %3574 = vmatmul.mubr.bf16.gmra.mrb[0].mxu0 %v3513
        %v3575 = vpop.f32.mrb[0].mxu0
        %v3576 = vadd.f32 0.0, %v3575
        %v3577 = vpop.f32.mrb[0].mxu0
        %v3578 = vpop.f32.mrb[0].mxu0
        %v3579 = vadd.f32 0.0, %v3578
        %v3580 = vpop.f32.mrb[0].mxu0
        %3581 = vmatprep.mubr.bf16.mxu0 0
        %3582 = vmatmul.mubr.bf16.gmra.mrb[0].mxu0 %v3516
        %v3583 = vpop.f32.mrb[0].mxu0
        %v3584 = vadd.f32 0.0, %v3583
        %v3585 = vpop.f32.mrb[0].mxu0
        %v3586 = vpop.f32.mrb[0].mxu0
        %v3587 = vadd.f32 0.0, %v3586
        %v3588 = vpop.f32.mrb[0].mxu0
        %3589 = vmatprep.mubr.bf16.mxu0 0
        %3590 = vmatmul.mubr.bf16.gmra.mrb[0].mxu0 %v3519
        %v3591 = vpop.f32.mrb[0].mxu0
        %v3592 = vadd.f32 0.0, %v3591
        %v3593 = vpop.f32.mrb[0].mxu0
        %v3594 = vpop.f32.mrb[0].mxu0
        %v3595 = vadd.f32 0.0, %v3594
        %v3596 = vpop.f32.mrb[0].mxu0
        %3597 = vmatprep.mubr.bf16.mxu0 0
        %3598 = vmatmul.mubr.bf16.gmra.mrb[0].mxu0 %v3522
        %v3599 = vpop.f32.mrb[0].mxu0
        %v3600 = vadd.f32 0.0, %v3599
        %v3601 = vpop.f32.mrb[0].mxu0
        %v3602 = vpop.f32.mrb[0].mxu0
        %v3603 = vadd.f32 0.0, %v3602
        %v3604 = vpop.f32.mrb[0].mxu0
        %3605 = vmatprep.mubr.bf16.mxu0 0
        %3606 = vmatmul.mubr.bf16.gmra.mrb[0].mxu0 %v3525
        %v3607 = vpop.f32.mrb[0].mxu0
        %v3608 = vadd.f32 0.0, %v3607
        %v3609 = vpop.f32.mrb[0].mxu0
        %v3610 = vpop.f32.mrb[0].mxu0
        %v3611 = vadd.f32 0.0, %v3610
        %v3612 = vpop.f32.mrb[0].mxu0
        %3613 = vmatprep.mubr.bf16.mxu0 0
        %3614 = vmatmul.mubr.bf16.gmra.mrb[0].mxu0 %v3528
        %v3615 = vpop.f32.mrb[0].mxu0
        %v3616 = vadd.f32 0.0, %v3615
        %v3617 = vpop.f32.mrb[0].mxu0
        %v3618 = vpop.f32.mrb[0].mxu0
        %v3619 = vadd.f32 0.0, %v3618
        %v3620 = vpop.f32.mrb[0].mxu0
        %3621 = vmatprep.mubr.bf16.mxu0 0
        %3622 = vmatmul.mubr.bf16.gmra.mrb[0].mxu0 %v3531
        %v3623 = vpop.f32.mrb[0].mxu0
        %v3624 = vadd.f32 0.0, %v3623
        %v3625 = vpop.f32.mrb[0].mxu0
        %v3626 = vpop.f32.mrb[0].mxu0
        %v3627 = vadd.f32 0.0, %v3626
        %v3628 = vpop.f32.mrb[0].mxu0
        %3629 = vdwg.mxu0
        %v3630 = vld [vmem:[%s14] sm:$0x1]
        %v3632 = vlaneseq
        %v3633 = vshrl.u32 %v3632, 7
        %v3634 = vsub.s32 0, %v3633
        %v3635 = vrot.slane %v3630, %v3634
        %v3637 = vmul.f32 %v3568, %v3635
        %v3638 = vmul.f32 %v3571, %v3635
        %v3639 = vmul.f32 %v3576, %v3635
        %v3640 = vmul.f32 %v3579, %v3635
        %v3641 = vmul.f32 %v3584, %v3635
        %v3642 = vmul.f32 %v3587, %v3635
        %v3643 = vmul.f32 %v3592, %v3635
        %v3644 = vmul.f32 %v3595, %v3635
        %v3645 = vmul.f32 %v3600, %v3635
        %v3646 = vmul.f32 %v3603, %v3635
        %v3647 = vmul.f32 %v3608, %v3635
        %v3648 = vmul.f32 %v3611, %v3635
        %v3649 = vmul.f32 %v3616, %v3635
        %v3650 = vmul.f32 %v3619, %v3635
        %v3651 = vmul.f32 %v3624, %v3635
        %v3652 = vmul.f32 %v3627, %v3635
        %v3653 = vld [vmem:[%s15] sm:$0x1]
        %v3655 = vlaneseq
        %v3656 = vshrl.u32 %v3655, 7
        %v3657 = vsub.s32 0, %v3656
        %v3658 = vrot.slane %v3653, %v3657
        %v3660 = vadd.f32 %v3637, %v3658
        %v3661 = vadd.f32 %v3638, %v3658
        %v3662 = vadd.f32 %v3639, %v3658
        %v3663 = vadd.f32 %v3640, %v3658
        %v3664 = vadd.f32 %v3641, %v3658
        %v3665 = vadd.f32 %v3642, %v3658
        %v3666 = vadd.f32 %v3643, %v3658
        %v3667 = vadd.f32 %v3644, %v3658
        %v3668 = vadd.f32 %v3645, %v3658
        %v3669 = vadd.f32 %v3646, %v3658
        %v3670 = vadd.f32 %v3647, %v3658
        %v3671 = vadd.f32 %v3648, %v3658
        %v3672 = vadd.f32 %v3649, %v3658
        %v3673 = vadd.f32 %v3650, %v3658
        %v3674 = vadd.f32 %v3651, %v3658
        %v3675 = vadd.f32 %v3652, %v3658
        %vm3676 = vcmp.ge.f32.partialorder %v3660, 0.0
        %vm3677 = vcmp.ge.f32.partialorder %v3661, 0.0
        %vm3678 = vcmp.ge.f32.partialorder %v3662, 0.0
        %vm3679 = vcmp.ge.f32.partialorder %v3663, 0.0
        %vm3680 = vcmp.ge.f32.partialorder %v3664, 0.0
        %vm3681 = vcmp.ge.f32.partialorder %v3665, 0.0
        %vm3682 = vcmp.ge.f32.partialorder %v3666, 0.0
        %vm3683 = vcmp.ge.f32.partialorder %v3667, 0.0
        %vm3684 = vcmp.ge.f32.partialorder %v3668, 0.0
        %vm3685 = vcmp.ge.f32.partialorder %v3669, 0.0
        %vm3686 = vcmp.ge.f32.partialorder %v3670, 0.0
        %vm3687 = vcmp.ge.f32.partialorder %v3671, 0.0
        %vm3688 = vcmp.ge.f32.partialorder %v3672, 0.0
        %vm3689 = vcmp.ge.f32.partialorder %v3673, 0.0
        %vm3690 = vcmp.ge.f32.partialorder %v3674, 0.0
        %vm3691 = vcmp.ge.f32.partialorder %v3675, 0.0
        %v3692 = vmul.f32 %v3660, 0.25
        %v3693 = vmul.f32 %v3661, 0.25
        %v3694 = vmul.f32 %v3662, 0.25
        %v3695 = vmul.f32 %v3663, 0.25
        %v3696 = vmul.f32 %v3664, 0.25
        %v3697 = vmul.f32 %v3665, 0.25
        %v3698 = vmul.f32 %v3666, 0.25
        %v3699 = vmul.f32 %v3667, 0.25
        %v3700 = vmul.f32 %v3668, 0.25
        %v3701 = vmul.f32 %v3669, 0.25
        %v3702 = vmul.f32 %v3670, 0.25
        %v3703 = vmul.f32 %v3671, 0.25
        %v3704 = vmul.f32 %v3672, 0.25
        %v3705 = vmul.f32 %v3673, 0.25
        %v3706 = vmul.f32 %v3674, 0.25
        %v3707 = vmul.f32 %v3675, 0.25
        %v3708 = vsel %vm3676, %v3660, %v3692
        %v3709 = vsel %vm3677, %v3661, %v3693
        %v3710 = vsel %vm3678, %v3662, %v3694
        %v3711 = vsel %vm3679, %v3663, %v3695
        %v3712 = vsel %vm3680, %v3664, %v3696
        %v3713 = vsel %vm3681, %v3665, %v3697
        %v3714 = vsel %vm3682, %v3666, %v3698
        %v3715 = vsel %vm3683, %v3667, %v3699
        %v3716 = vsel %vm3684, %v3668, %v3700
        %v3717 = vsel %vm3685, %v3669, %v3701
        %v3718 = vsel %vm3686, %v3670, %v3702
        %v3719 = vsel %vm3687, %v3671, %v3703
        %v3720 = vsel %vm3688, %v3672, %v3704
        %v3721 = vsel %vm3689, %v3673, %v3705
        %v3722 = vsel %vm3690, %v3674, %v3706
        %v3723 = vsel %vm3691, %v3675, %v3707
        %v3724 = vadd.f32 %v556, %v3708
        %v3725 = vadd.f32 %v557, %v3709
        %v3726 = vadd.f32 %v558, %v3710
        %v3727 = vadd.f32 %v559, %v3711
        %v3728 = vadd.f32 %v560, %v3712
        %v3729 = vadd.f32 %v561, %v3713
        %v3730 = vadd.f32 %v562, %v3714
        %v3731 = vadd.f32 %v563, %v3715
        %v3732 = vadd.f32 %v564, %v3716
        %v3733 = vadd.f32 %v565, %v3717
        %v3734 = vadd.f32 %v566, %v3718
        %v3735 = vadd.f32 %v567, %v3719
        %v3736 = vadd.f32 %v568, %v3720
        %v3737 = vadd.f32 %v569, %v3721
        %v3738 = vadd.f32 %v570, %v3722
        %v3739 = vadd.f32 %v571, %v3723
        %3740 = vst.msk [vmem:[%s554] sm:$0xff] %vm572, %v3724
        %3741 = vst.msk [vmem:[%s554 + $0x8] sm:$0xff] %vm572, %v3725
        %3742 = vst.msk [vmem:[%s554 + $0x10] sm:$0xff] %vm572, %v3726
        %3743 = vst.msk [vmem:[%s554 + $0x18] sm:$0xff] %vm572, %v3727
        %3744 = vst.msk [vmem:[%s554 + $0x20] sm:$0xff] %vm572, %v3728
        %3745 = vst.msk [vmem:[%s554 + $0x28] sm:$0xff] %vm572, %v3729
        %3746 = vst.msk [vmem:[%s554 + $0x30] sm:$0xff] %vm572, %v3730
        %3747 = vst.msk [vmem:[%s554 + $0x38] sm:$0xff] %vm572, %v3731
        %3748 = vst.msk [vmem:[%s554 + $0x40] sm:$0xff] %vm572, %v3732
        %3749 = vst.msk [vmem:[%s554 + $0x48] sm:$0xff] %vm572, %v3733
        %3750 = vst.msk [vmem:[%s554 + $0x50] sm:$0xff] %vm572, %v3734
        %3751 = vst.msk [vmem:[%s554 + $0x58] sm:$0xff] %vm572, %v3735
        %3752 = vst.msk [vmem:[%s554 + $0x60] sm:$0xff] %vm572, %v3736
        %3753 = vst.msk [vmem:[%s554 + $0x68] sm:$0xff] %vm572, %v3737
        %3754 = vst.msk [vmem:[%s554 + $0x70] sm:$0xff] %vm572, %v3738
        %3755 = vst.msk [vmem:[%s554 + $0x78] sm:$0xff] %vm572, %v3739
        %s3756 = sand.u32 %s383, 1
        %s3757 = scalar_lea.sflag [#allocation6], %s3756
        %s3758 = sand.u32 %s383, 1
        %s3759 = smul.addr %s3758, 128
        %s3760 = scalar_lea.vmem [#allocation9], %s3759
        // Predicated region
        $region93: #{tpu_custom_call.1} parent=83 // pred_check
          %p3761 = pneg %p393
        $region94: #{tpu_custom_call.1} parent=83 // pred_check_branch
          %3763 = sbr.rel (%p3761) target = $region96
        $region95: #{tpu_custom_call.1} parent=83 // pred_region
          %s3765 = ssub.s32 2048, 2048
          %3766 = vsyncadd %s3757, %s3765
          %s3767 = smul.addr %s34, 16
          %s3768 = smul.addr %s3767, 128
          %s3769 = scalar_lea.hbm %s16, %s3768
          %s3770 = sshll.u32 %s3760, 4
          %s3771 = int_to_ptr.vmem [resolvable:$true] %s3770
          %3776 = dma.vmem_to_hbm [thread:$0]  %s3771, 2048, %s3769, %s3757, 128, 128, 8
        $region96: #{tpu_custom_call.1} parent=83 // pred_fallthru
          _
      $region84: #{tpu_custom_call.1} parent=5 // pred_fallthru
        _
      %p3777 = scmp.le.s32.totalorder 2, %s29
      // Predicated region
      $region97: #{tpu_custom_call.1} parent=5 // pred_check
        %p3778 = pneg %p3777
      $region98: #{tpu_custom_call.1} parent=5 // pred_check_branch
        %3780 = sbr.rel (%p3778) target = $region100
      $region99: #{tpu_custom_call.1} parent=5 // pred_region
        %s3781 = ssub.s32 %s29, 2
        // Predicated region
        $region101: #{tpu_custom_call.1} parent=99 // pred_check
          %p3782 = pneg %p399
        $region102: #{tpu_custom_call.1} parent=99 // pred_check_branch
          %3784 = sbr.rel (%p3782) target = $region104
        $region103: #{tpu_custom_call.1} parent=99 // pred_region
          %s3785 = sand.u32 %s384, 1
          %s3786 = scalar_lea.sflag [#allocation6], %s3785
          %s3787 = sand.u32 %s384, 1
          %s3788 = smul.addr %s3787, 128
          %s3789 = scalar_lea.vmem [#allocation9], %s3788
          %3790 = dma.done %s3786, 2048
        $region104: #{tpu_custom_call.1} parent=99 // pred_fallthru
          _
      $region100: #{tpu_custom_call.1} parent=5 // pred_fallthru
        _
    $region6: #{tpu_custom_call.1} parent=1 // loop_footer
      %s33 = sadd.s32 1, %s29
    $region7: #{tpu_custom_call.1} parent=1 // loop_footer_branch
      %28 = sbr.rel target = $region3
    $region8: #{tpu_custom_call.1} parent=1 // loop_exit
      _
    %3791 = vsyncpa [#allocation5], 1
    %s3792 = scalar_lea.sflag [#allocation5], 1
    %3793 = vsyncpa %s3792, 1
    %3794 = vsyncpa [#allocation8], 1
    %3795 = vsyncpa [#allocation6], 1
    %s3796 = scalar_lea.sflag [#allocation6], 1
    %3797 = vsyncpa %s3796, 1

</llo_original>
